<compile_context>
chip_gen: v7x
topology: tpu7x:2x2x1
jax: 0.10.0
libtpu: 0.0.40
codegen_flags: <defaults>
</compile_context>

<pallas_src>
import jax
import jax.numpy as jnp
from jax import lax
from jax.experimental import pallas as pl
from jax.experimental.pallas import tpu as pltpu


# ---------------------------------------------------------------------------
# Wrapper + fused kernel.  Layout conventions (per batch element):
#   * half-res "row padded flat" coords: a row of Wo valid columns + 2 junk
#     columns, flattened; Wp2 = Wo + 2, one output slab = Mo = Ho*Wp2 lanes.
#   * stride-2 stages use a 2x2 phase split of the zero-padded full-res input
#     so every tap is a contiguous (unit-stride) lane window.
#     xph[n, 2*py+px, c, u*Wp2 + v] = xpad[n, c, 2u+py, 2v+px]
# ---------------------------------------------------------------------------
def gelayer_down_pallas(x_nchw, P):
    x = x_nchw.astype(jnp.float32)                      # NCHW (kept; no transpose)
    N, Ci, H, W = x.shape
    assert H % 2 == 0 and W % 2 == 0, "spatial dims must be even"
    Ho, Wo = H // 2, W // 2
    Wp2 = Wo + 2                     # row-padded width of the half-res flat layout
    Mo = Ho * Wp2                    # one output slab (Wo valid + 2 junk cols/row)
    Lx = (Ho + 2) * Wp2              # one phase buffer (x phases and y phases)
    Ld = (Ho + 3) * Wp2              # dwconv2 input buffer (zero ring + read slack)
    mid = P["wd1"].shape[0]
    Co = P["w2"].shape[0]

    # ---- VMEM budget guard (whole image resident; see row-tiling TODO) -----
    vmem_bytes = 4 * (2 * 4 * Ci * Lx + 2 * Co * Mo + 4 * mid * Lx + mid * Ld
                      + 16 * mid * Ci + 32 * mid + Co * (mid + Ci) + Mo)
    assert vmem_bytes < 48 * 1024 * 1024, \
        "resolution too large for the untiled kernel (add row tiling)"
    vmem_limit = int(min(100 * 2 ** 20, max(4 * vmem_bytes, 8 * 2 ** 20)))

    # ---- input boundary glue: zero-pad + 2x2 phase split (small tensor) ----
    # (Output needs no transpose at all; only this small input prep remains.)
    xpad = jnp.pad(x, ((0, 0), (0, 0), (1, 1), (1, 1)))
    xph = xpad.reshape(N, Ci, Ho + 1, 2, Wo + 1, 2)
    xph = jnp.transpose(xph, (0, 3, 5, 1, 2, 4)).reshape(N, 4, Ci, Ho + 1, Wo + 1)
    xph = jnp.pad(xph, ((0, 0), (0, 0), (0, 0), (0, 1), (0, 1)))
    xph = xph.reshape(N, 4, Ci, Lx)

    # Lane-validity mask: 1.0 at the Wo real columns of each row, 0.0 at the
    # 2 junk columns the flat row-padded layout carries.
    maskf = (jnp.arange(Mo, dtype=jnp.int32) % Wp2 < Wo).astype(jnp.float32)
    maskf = maskf.reshape(1, Mo)

    def kernel(x_ref, mask_ref,
               w1e_ref, b1e_ref, wd1_ref, bd1_ref, wd2_ref, bd2_ref,
               w2_ref, wsd_ref, bsd_ref, wsp_ref, bfin_ref,
               o_ref, y_scr, d_scr):
        f32 = jnp.float32

        # ---- loop-invariant loads, hoisted once -----------------------------
        valid = mask_ref[...] > 0.5          # (1, Mo) bool
        w1e = w1e_ref[...]                   # (9, mid, Ci)  conv1 taps (BN folded, expanded)
        b1e = b1e_ref[...]                   # (mid, 1)
        wd1 = wd1_ref[...]                   # (mid, 9)      dwconv1 taps
        bd1 = bd1_ref[...]                   # (mid, 1)
        wd2 = wd2_ref[...]                   # (mid, 9)      dwconv2 taps
        bd2 = bd2_ref[...]                   # (mid, 1)
        w2 = w2_ref[...]                     # (Co, mid)     conv2 1x1
        wsd = wsd_ref[...]                   # (Ci, 9)       shortcut dw taps
        bsd = bsd_ref[...]                   # (Ci, 1)
        wsp = wsp_ref[...]                   # (Co, Ci)      shortcut 1x1
        bfin = bfin_ref[...]                 # (Co, 1) = folded (b2 + bsp)

        # ---- border-only scratch zeroing (per step; no cross-step state) ----
        # Invariant: every scratch cell read on behalf of a VALID output column
        # is either (a) rewritten below with correct data, (b) rewritten with an
        # exact zero (the masked junk columns land exactly on zero-pad ring
        # positions), or (c) one of the border rows zeroed right here.  The
        # interiors are fully rewritten every step, so no full memset is needed
        # and no state is carried across grid steps ("parallel" is safe).
        zrow1 = jnp.zeros((mid, Wp2 + 1), f32)
        zrow = jnp.zeros((mid, Wp2), f32)
        for p in range(4):
            y_scr[p, :, 0:Wp2 + 1] = zrow1                       # top pad row (+1 cell)
            y_scr[p, :, Ho * Wp2:(Ho + 1) * Wp2] = zrow          # bottom pad row
        d_scr[:, 0:Wp2 + 1] = zrow1
        d_scr[:, (Ho + 1) * Wp2:(Ho + 2) * Wp2] = zrow

        # ---- conv1 3x3/s1 (+BN+ReLU), output pre-expanded to `mid` rows -----
        # Per output 2x2 phase (q, r): 9 tiny (mid, Ci) x (Ci, Mo) MXU matmuls
        # whose RHS are contiguous lane windows of one input phase (spatial on
        # lanes -> lane-dense; no im2col concat, no reshapes).
        for q in range(2):
            for r in range(2):
                acc = jnp.zeros((mid, Mo), f32)
                for ey in range(3):
                    for ex in range(3):
                        s, t = q + ey, r + ex
                        p_in = 2 * (s % 2) + (t % 2)
                        off = (s // 2) * Wp2 + (t // 2)
                        acc = acc + jnp.dot(
                            w1e[ey * 3 + ex],
                            x_ref[0, p_in, :, off:off + Mo],
                            preferred_element_type=f32)
                yv = jnp.where(valid, jnp.maximum(acc + b1e, 0.0), 0.0)
                # y output phase (q, r) lands in padded-phase (1-q, 1-r) of the
                # scratch at flat offset q*Wp2 + r (builds y's zero-pad ring).
                y_scr[2 * (1 - q) + (1 - r), :,
                      q * Wp2 + r:q * Wp2 + r + Mo] = yv

        # ---- dwconv1 3x3/s2 (+BN)  and  shortcut dw 3x3/s2 (+BN): pure VPU ---
        accd = jnp.zeros((mid, Mo), f32)
        accs = jnp.zeros((Ci, Mo), f32)
        for dy in range(3):
            for dx in range(3):
                t = dy * 3 + dx
                p = 2 * (dy % 2) + (dx % 2)
                off = (dy // 2) * Wp2 + (dx // 2)
                accd = accd + wd1[:, t:t + 1] * y_scr[p, :, off:off + Mo]
                accs = accs + wsd[:, t:t + 1] * x_ref[0, p, :, off:off + Mo]
        sc = accs + bsd                               # (Ci, Mo), no ReLU
        d = jnp.where(valid, accd + bd1, 0.0)         # (mid, Mo), no ReLU
        d_scr[:, Wp2 + 1:Wp2 + 1 + Mo] = d            # into d's zero-ring layout

        # ---- dwconv2 3x3/s1 (+BN+ReLU): pure VPU ----------------------------
        accz = jnp.zeros((mid, Mo), f32)
        for dy in range(3):
            for dx in range(3):
                t = dy * 3 + dx
                off = dy * Wp2 + dx
                accz = accz + wd2[:, t:t + 1] * d_scr[:, off:off + Mo]
        z = jnp.maximum(accz + bd2, 0.0)

        # ---- conv2 1x1 + shortcut 1x1, fused epilogue (bias+residual+ReLU) --
        out = jnp.dot(w2, z, preferred_element_type=f32)
        out = out + jnp.dot(wsp, sc, preferred_element_type=f32)
        o_ref[0] = jnp.maximum(out + bfin, 0.0)       # (Co, Mo) NCHW-flat, lane-dense

    weights = (maskf, P["w1e"], P["b1e"], P["wd1"], P["bd1"], P["wd2"], P["bd2"],
               P["w2"], P["wsd"], P["bsd"], P["wsp"], P["bfin"])

    def _const_spec(a):
        zeros = (0,) * a.ndim
        return pl.BlockSpec(a.shape, lambda n, _z=zeros: _z)

    grid_spec = pltpu.PrefetchScalarGridSpec(
        num_scalar_prefetch=0,
        grid=(N,),
        in_specs=[pl.BlockSpec((1, 4, Ci, Lx), lambda n: (n, 0, 0, 0))] +
                 [_const_spec(w) for w in weights],
        out_specs=pl.BlockSpec((1, Co, Mo), lambda n: (n, 0, 0)),
        scratch_shapes=[pltpu.VMEM((4, mid, Lx), jnp.float32),   # y phases (padded)
                        pltpu.VMEM((mid, Ld), jnp.float32)],     # dwconv2 input
    )
    out = pl.pallas_call(
        kernel,
        out_shape=jax.ShapeDtypeStruct((N, Co, Mo), jnp.float32),
        grid_spec=grid_spec,
        compiler_params=pltpu.CompilerParams(
            dimension_semantics=("parallel",),
            vmem_limit_bytes=vmem_limit),
    )(xph, *weights)

    # Output is already NCHW-flat; just drop the 2 junk columns per row.
    return out.reshape(N, Co, Ho, Wp2)[:, :, :, :Wo]


# ---------------------------------------------------------------------------
# Parameter prep: fold BN (inference mode) into conv weights; lay out weights
# for the transposed (channels-on-sublanes) kernel layout.
# ---------------------------------------------------------------------------
def prepare_params(w_conv1, w_dw1, w_dw2, w_pw2, w_scdw, w_scpw,
                   bn1, bnd1, bnd2, bn2, bnsd, bnsp, exp_ratio, eps=1e-5):
    def fold(bn):
        gamma, beta, mean, var = bn
        s = gamma / jnp.sqrt(var + eps)
        return s, beta - mean * s

    s1, c1 = fold(bn1)
    sd1, cd1 = fold(bnd1)
    sd2, cd2 = fold(bnd2)
    s2, c2 = fold(bn2)
    ssd, csd = fold(bnsd)
    ssp, csp = fold(bnsp)

    Cin = w_conv1.shape[1]
    Cout = w_pw2.shape[0]
    mid = w_dw1.shape[0]

    # conv1: (O, I, 3, 3) -> (tap, O, I); fold BN1 scale on O; pre-expand O to
    # `mid` (PyTorch grouped expand: dwconv1 out-channel m reads in m//ratio)
    # so the kernel's dwconv1 is a pure per-row multiply.
    w1 = jnp.transpose(w_conv1, (2, 3, 0, 1)).reshape(9, Cin, Cin)
    w1 = w1 * s1.reshape(1, Cin, 1)
    w1e = jnp.repeat(w1, exp_ratio, axis=1)                 # (9, mid, Cin)
    b1e = jnp.repeat(c1, exp_ratio).reshape(mid, 1)         # (mid, 1)

    dwt = lambda w, s: w[:, 0].reshape(w.shape[0], 9) * s.reshape(-1, 1)
    wd1 = dwt(w_dw1, sd1)                                   # (mid, 9)
    wd2 = dwt(w_dw2, sd2)                                   # (mid, 9)
    wsd = dwt(w_scdw, ssd)                                  # (Cin, 9)
    w2 = w_pw2[:, :, 0, 0] * s2.reshape(Cout, 1)            # (Cout, mid)
    wsp = w_scpw[:, :, 0, 0] * ssp.reshape(Cout, 1)         # (Cout, Cin)

    return dict(w1e=w1e, b1e=b1e,
                wd1=wd1, bd1=cd1.reshape(mid, 1),
                wd2=wd2, bd2=cd2.reshape(mid, 1),
                w2=w2, wsd=wsd, bsd=csd.reshape(Cin, 1),
                wsp=wsp, bfin=(c2 + csp).reshape(Cout, 1))


if __name__ == "__main__":
    N, Cin, H, W = 2, 4, 16, 16
    exp_ratio = 6
    mid = Cin * exp_ratio            # 24
    Cout = 8

    key = jax.random.PRNGKey(0)
    ks = jax.random.split(key, 16)

    def rnd(k, shape, scale=0.2):
        return scale * jax.random.normal(k, shape, dtype=jnp.float32)

    x_nchw = rnd(ks[0], (N, Cin, H, W), 1.0)

    # PyTorch-shaped conv weights (out, in/groups, kh, kw)
    w_conv1 = rnd(ks[1], (Cin, Cin, 3, 3))
    w_dw1 = rnd(ks[2], (mid, 1, 3, 3))
    w_dw2 = rnd(ks[3], (mid, 1, 3, 3))
    w_pw2 = rnd(ks[4], (Cout, mid, 1, 1))
    w_scdw = rnd(ks[5], (Cin, 1, 3, 3))
    w_scpw = rnd(ks[6], (Cout, Cin, 1, 1))

    def bn_params(k, c):
        k1, k2, k3, k4 = jax.random.split(k, 4)
        gamma = 1.0 + 0.1 * jax.random.normal(k1, (c,), dtype=jnp.float32)
        beta = 0.1 * jax.random.normal(k2, (c,), dtype=jnp.float32)
        mean = 0.1 * jax.random.normal(k3, (c,), dtype=jnp.float32)
        var = 1.0 + 0.1 * jax.random.uniform(k4, (c,), dtype=jnp.float32)
        return gamma, beta, mean, var

    bn1 = bn_params(ks[7], Cin)
    bnd1 = bn_params(ks[8], mid)
    bnd2 = bn_params(ks[9], mid)
    bn2 = bn_params(ks[10], Cout)
    bnsd = bn_params(ks[11], Cin)
    bnsp = bn_params(ks[12], Cout)

    P = prepare_params(w_conv1, w_dw1, w_dw2, w_pw2, w_scdw, w_scpw,
                       bn1, bnd1, bnd2, bn2, bnsd, bnsp, exp_ratio)

    out = jax.jit(gelayer_down_pallas)(x_nchw, P)
    out = jax.block_until_ready(out)
    assert out.shape == (N, Cout, H // 2, W // 2), out.shape

    # ---- pure-JAX reference (lax grouped convs, un-folded BN) --------------
    def reference_forward(x_):
        xh = jnp.transpose(x_, (0, 2, 3, 1))
        p1, p0 = [(1, 1), (1, 1)], [(0, 0), (0, 0)]

        def conv(lhs, w, stride, groups, padding):
            return lax.conv_general_dilated(
                lhs, jnp.transpose(w, (2, 3, 1, 0)),
                window_strides=(stride, stride), padding=padding,
                dimension_numbers=("NHWC", "HWIO", "NHWC"),
                feature_group_count=groups)

        def bn(v, params, eps=1e-5):
            gamma, beta, mean, var = params
            return (v - mean) / jnp.sqrt(var + eps) * gamma + beta

        f = jnp.maximum(bn(conv(xh, w_conv1, 1, 1, p1), bn1), 0.0)
        f = bn(conv(f, w_dw1, 2, Cin, p1), bnd1)
        f = jnp.maximum(bn(conv(f, w_dw2, 1, mid, p1), bnd2), 0.0)
        f = bn(conv(f, w_pw2, 1, 1, p0), bn2)
        s = bn(conv(xh, w_scdw, 2, Cin, p1), bnsd)
        s = bn(conv(s, w_scpw, 1, 1, p0), bnsp)
        o = jnp.maximum(f + s, 0.0)
        return jnp.transpose(o, (0, 3, 1, 2))

    ref = jax.block_until_ready(reference_forward(x_nchw))
    assert bool(jnp.all(jnp.isfinite(out)))
    assert bool(jnp.allclose(out, ref, rtol=1e-3, atol=1e-3)), \
        float(jnp.max(jnp.abs(out - ref)))
    print("KERNEL_OK")
</pallas_src>

<mosaic_0001>
module attributes {stable_mosaic.version = 11 : i64} {
  func.func @kernel(%arg0: i32, %arg1: memref<1x4x4x100xf32, #tpu.memory_space<vmem>>, %arg2: memref<1x80xf32, #tpu.memory_space<vmem>>, %arg3: memref<9x24x4xf32, #tpu.memory_space<vmem>>, %arg4: memref<24x1xf32, #tpu.memory_space<vmem>>, %arg5: memref<24x9xf32, #tpu.memory_space<vmem>>, %arg6: memref<24x1xf32, #tpu.memory_space<vmem>>, %arg7: memref<24x9xf32, #tpu.memory_space<vmem>>, %arg8: memref<24x1xf32, #tpu.memory_space<vmem>>, %arg9: memref<8x24xf32, #tpu.memory_space<vmem>>, %arg10: memref<4x9xf32, #tpu.memory_space<vmem>>, %arg11: memref<4x1xf32, #tpu.memory_space<vmem>>, %arg12: memref<8x4xf32, #tpu.memory_space<vmem>>, %arg13: memref<8x1xf32, #tpu.memory_space<vmem>>, %arg14: memref<1x8x80xf32, #tpu.memory_space<vmem>>, %arg15: memref<4x24x100xf32, #tpu.memory_space<vmem>>, %arg16: memref<24x110xf32, #tpu.memory_space<vmem>>) attributes {dimension_semantics = [#tpu.dimension_semantics<parallel>], iteration_bounds = array<i64: 2>, scalar_prefetch = 0 : i64, scratch_operands = 2 : i64, tpu.core_type = #tpu.core_type<tc>, window_params = [{transform_indices = @transform_0, window_bounds = array<i64: 1, 4, 4, 100>}, {pipeline_mode = #tpu.pipeline_mode<synchronous>, transform_indices = @transform_1, window_bounds = array<i64: 1, 80>}, {pipeline_mode = #tpu.pipeline_mode<synchronous>, transform_indices = @transform_2, window_bounds = array<i64: 9, 24, 4>}, {pipeline_mode = #tpu.pipeline_mode<synchronous>, transform_indices = @transform_3, window_bounds = array<i64: 24, 1>}, {pipeline_mode = #tpu.pipeline_mode<synchronous>, transform_indices = @transform_4, window_bounds = array<i64: 24, 9>}, {pipeline_mode = #tpu.pipeline_mode<synchronous>, transform_indices = @transform_5, window_bounds = array<i64: 24, 1>}, {pipeline_mode = #tpu.pipeline_mode<synchronous>, transform_indices = @transform_6, window_bounds = array<i64: 24, 9>}, {pipeline_mode = #tpu.pipeline_mode<synchronous>, transform_indices = @transform_7, window_bounds = array<i64: 24, 1>}, {pipeline_mode = #tpu.pipeline_mode<synchronous>, transform_indices = @transform_8, window_bounds = array<i64: 8, 24>}, {pipeline_mode = #tpu.pipeline_mode<synchronous>, transform_indices = @transform_9, window_bounds = array<i64: 4, 9>}, {pipeline_mode = #tpu.pipeline_mode<synchronous>, transform_indices = @transform_10, window_bounds = array<i64: 4, 1>}, {pipeline_mode = #tpu.pipeline_mode<synchronous>, transform_indices = @transform_11, window_bounds = array<i64: 8, 4>}, {pipeline_mode = #tpu.pipeline_mode<synchronous>, transform_indices = @transform_12, window_bounds = array<i64: 8, 1>}, {transform_indices = @transform_13, window_bounds = array<i64: 1, 8, 80>}]} {
    %c0 = arith.constant 0 : index
    %c0_0 = arith.constant 0 : index
    %0 = vector.load %arg2[%c0, %c0_0] : memref<1x80xf32, #tpu.memory_space<vmem>>, vector<1x80xf32>
    %cst = arith.constant 5.000000e-01 : f32
    %1 = vector.broadcast %cst : f32 to vector<1x80xf32>
    %2 = arith.cmpf ogt, %0, %1 : vector<1x80xf32>
    %c0_1 = arith.constant 0 : index
    %c0_2 = arith.constant 0 : index
    %c0_3 = arith.constant 0 : index
    %3 = vector.load %arg3[%c0_1, %c0_2, %c0_3] : memref<9x24x4xf32, #tpu.memory_space<vmem>>, vector<9x24x4xf32>
    %c0_4 = arith.constant 0 : index
    %c0_5 = arith.constant 0 : index
    %4 = vector.load %arg4[%c0_4, %c0_5] : memref<24x1xf32, #tpu.memory_space<vmem>>, vector<24x1xf32>
    %c0_6 = arith.constant 0 : index
    %c0_7 = arith.constant 0 : index
    %5 = vector.load %arg5[%c0_6, %c0_7] : memref<24x9xf32, #tpu.memory_space<vmem>>, vector<24x9xf32>
    %c0_8 = arith.constant 0 : index
    %c0_9 = arith.constant 0 : index
    %6 = vector.load %arg6[%c0_8, %c0_9] : memref<24x1xf32, #tpu.memory_space<vmem>>, vector<24x1xf32>
    %c0_10 = arith.constant 0 : index
    %c0_11 = arith.constant 0 : index
    %7 = vector.load %arg7[%c0_10, %c0_11] : memref<24x9xf32, #tpu.memory_space<vmem>>, vector<24x9xf32>
    %c0_12 = arith.constant 0 : index
    %c0_13 = arith.constant 0 : index
    %8 = vector.load %arg8[%c0_12, %c0_13] : memref<24x1xf32, #tpu.memory_space<vmem>>, vector<24x1xf32>
    %c0_14 = arith.constant 0 : index
    %c0_15 = arith.constant 0 : index
    %9 = vector.load %arg9[%c0_14, %c0_15] : memref<8x24xf32, #tpu.memory_space<vmem>>, vector<8x24xf32>
    %c0_16 = arith.constant 0 : index
    %c0_17 = arith.constant 0 : index
    %10 = vector.load %arg10[%c0_16, %c0_17] : memref<4x9xf32, #tpu.memory_space<vmem>>, vector<4x9xf32>
    %c0_18 = arith.constant 0 : index
    %c0_19 = arith.constant 0 : index
    %11 = vector.load %arg11[%c0_18, %c0_19] : memref<4x1xf32, #tpu.memory_space<vmem>>, vector<4x1xf32>
    %c0_20 = arith.constant 0 : index
    %c0_21 = arith.constant 0 : index
    %12 = vector.load %arg12[%c0_20, %c0_21] : memref<8x4xf32, #tpu.memory_space<vmem>>, vector<8x4xf32>
    %c0_22 = arith.constant 0 : index
    %c0_23 = arith.constant 0 : index
    %13 = vector.load %arg13[%c0_22, %c0_23] : memref<8x1xf32, #tpu.memory_space<vmem>>, vector<8x1xf32>
    %cst_24 = arith.constant 0.000000e+00 : f32
    %14 = vector.broadcast %cst_24 : f32 to vector<24x11xf32>
    %cst_25 = arith.constant 0.000000e+00 : f32
    %15 = vector.broadcast %cst_25 : f32 to vector<24x10xf32>
    %c0_26 = arith.constant 0 : index
    %c0_27 = arith.constant 0 : index
    %c0_28 = arith.constant 0 : index
    %16 = vector.load %arg15[%c0_26, %c0_27, %c0_28] : memref<4x24x100xf32, #tpu.memory_space<vmem>>, vector<1x24x11xf32>
    %17 = vector.shape_cast %16 : vector<1x24x11xf32> to vector<24x11xf32>
    %18 = vector.shape_cast %14 : vector<24x11xf32> to vector<1x24x11xf32>
    tpu.vector_store %arg15[%c0_26, %c0_27, %c0_28], %18 {strides = array<i32>} : memref<4x24x100xf32, #tpu.memory_space<vmem>>, vector<1x24x11xf32>,
    %c0_29 = arith.constant 0 : index
    %c0_30 = arith.constant 0 : index
    %c80 = arith.constant 80 : index
    %19 = vector.load %arg15[%c0_29, %c0_30, %c80] : memref<4x24x100xf32, #tpu.memory_space<vmem>>, vector<1x24x10xf32>
    %20 = vector.shape_cast %19 : vector<1x24x10xf32> to vector<24x10xf32>
    %21 = vector.shape_cast %15 : vector<24x10xf32> to vector<1x24x10xf32>
    tpu.vector_store %arg15[%c0_29, %c0_30, %c80], %21 {strides = array<i32>} : memref<4x24x100xf32, #tpu.memory_space<vmem>>, vector<1x24x10xf32>,
    %c1 = arith.constant 1 : index
    %c0_31 = arith.constant 0 : index
    %c0_32 = arith.constant 0 : index
    %22 = vector.load %arg15[%c1, %c0_31, %c0_32] : memref<4x24x100xf32, #tpu.memory_space<vmem>>, vector<1x24x11xf32>
    %23 = vector.shape_cast %22 : vector<1x24x11xf32> to vector<24x11xf32>
    %24 = vector.shape_cast %14 : vector<24x11xf32> to vector<1x24x11xf32>
    tpu.vector_store %arg15[%c1, %c0_31, %c0_32], %24 {strides = array<i32>} : memref<4x24x100xf32, #tpu.memory_space<vmem>>, vector<1x24x11xf32>,
    %c1_33 = arith.constant 1 : index
    %c0_34 = arith.constant 0 : index
    %c80_35 = arith.constant 80 : index
    %25 = vector.load %arg15[%c1_33, %c0_34, %c80_35] : memref<4x24x100xf32, #tpu.memory_space<vmem>>, vector<1x24x10xf32>
    %26 = vector.shape_cast %25 : vector<1x24x10xf32> to vector<24x10xf32>
    %27 = vector.shape_cast %15 : vector<24x10xf32> to vector<1x24x10xf32>
    tpu.vector_store %arg15[%c1_33, %c0_34, %c80_35], %27 {strides = array<i32>} : memref<4x24x100xf32, #tpu.memory_space<vmem>>, vector<1x24x10xf32>,
    %c2 = arith.constant 2 : index
    %c0_36 = arith.constant 0 : index
    %c0_37 = arith.constant 0 : index
    %28 = vector.load %arg15[%c2, %c0_36, %c0_37] : memref<4x24x100xf32, #tpu.memory_space<vmem>>, vector<1x24x11xf32>
    %29 = vector.shape_cast %28 : vector<1x24x11xf32> to vector<24x11xf32>
    %30 = vector.shape_cast %14 : vector<24x11xf32> to vector<1x24x11xf32>
    tpu.vector_store %arg15[%c2, %c0_36, %c0_37], %30 {strides = array<i32>} : memref<4x24x100xf32, #tpu.memory_space<vmem>>, vector<1x24x11xf32>,
    %c2_38 = arith.constant 2 : index
    %c0_39 = arith.constant 0 : index
    %c80_40 = arith.constant 80 : index
    %31 = vector.load %arg15[%c2_38, %c0_39, %c80_40] : memref<4x24x100xf32, #tpu.memory_space<vmem>>, vector<1x24x10xf32>
    %32 = vector.shape_cast %31 : vector<1x24x10xf32> to vector<24x10xf32>
    %33 = vector.shape_cast %15 : vector<24x10xf32> to vector<1x24x10xf32>
    tpu.vector_store %arg15[%c2_38, %c0_39, %c80_40], %33 {strides = array<i32>} : memref<4x24x100xf32, #tpu.memory_space<vmem>>, vector<1x24x10xf32>,
    %c3 = arith.constant 3 : index
    %c0_41 = arith.constant 0 : index
    %c0_42 = arith.constant 0 : index
    %34 = vector.load %arg15[%c3, %c0_41, %c0_42] : memref<4x24x100xf32, #tpu.memory_space<vmem>>, vector<1x24x11xf32>
    %35 = vector.shape_cast %34 : vector<1x24x11xf32> to vector<24x11xf32>
    %36 = vector.shape_cast %14 : vector<24x11xf32> to vector<1x24x11xf32>
    tpu.vector_store %arg15[%c3, %c0_41, %c0_42], %36 {strides = array<i32>} : memref<4x24x100xf32, #tpu.memory_space<vmem>>, vector<1x24x11xf32>,
    %c3_43 = arith.constant 3 : index
    %c0_44 = arith.constant 0 : index
    %c80_45 = arith.constant 80 : index
    %37 = vector.load %arg15[%c3_43, %c0_44, %c80_45] : memref<4x24x100xf32, #tpu.memory_space<vmem>>, vector<1x24x10xf32>
    %38 = vector.shape_cast %37 : vector<1x24x10xf32> to vector<24x10xf32>
    %39 = vector.shape_cast %15 : vector<24x10xf32> to vector<1x24x10xf32>
    tpu.vector_store %arg15[%c3_43, %c0_44, %c80_45], %39 {strides = array<i32>} : memref<4x24x100xf32, #tpu.memory_space<vmem>>, vector<1x24x10xf32>,
    %c0_46 = arith.constant 0 : index
    %c0_47 = arith.constant 0 : index
    %40 = vector.load %arg16[%c0_46, %c0_47] : memref<24x110xf32, #tpu.memory_space<vmem>>, vector<24x11xf32>
    tpu.vector_store %arg16[%c0_46, %c0_47], %14 {strides = array<i32>} : memref<24x110xf32, #tpu.memory_space<vmem>>, vector<24x11xf32>,
    %c0_48 = arith.constant 0 : index
    %c90 = arith.constant 90 : index
    %41 = vector.load %arg16[%c0_48, %c90] : memref<24x110xf32, #tpu.memory_space<vmem>>, vector<24x10xf32>
    tpu.vector_store %arg16[%c0_48, %c90], %15 {strides = array<i32>} : memref<24x110xf32, #tpu.memory_space<vmem>>, vector<24x10xf32>,
    %cst_49 = arith.constant 0.000000e+00 : f32
    %42 = vector.broadcast %cst_49 : f32 to vector<24x80xf32>
    %43 = vector.extract_strided_slice %3 {offsets = [0, 0, 0], sizes = [1, 24, 4], strides = [1, 1, 1]} : vector<9x24x4xf32> to vector<1x24x4xf32>
    %44 = vector.shape_cast %43 : vector<1x24x4xf32> to vector<24x4xf32>
    %c0_50 = arith.constant 0 : index
    %c0_51 = arith.constant 0 : index
    %c0_52 = arith.constant 0 : index
    %c0_53 = arith.constant 0 : index
    %45 = vector.load %arg1[%c0_50, %c0_51, %c0_52, %c0_53] : memref<1x4x4x100xf32, #tpu.memory_space<vmem>>, vector<1x1x4x80xf32>
    %46 = vector.shape_cast %45 : vector<1x1x4x80xf32> to vector<4x80xf32>
    %cst_54 = arith.constant dense<0.000000e+00> : vector<24x80xf32>
    %47 = tpu.matmul %44, %46, %cst_54 {dimension_numbers = #tpu.dot_dimension_numbers<[1], [0], [0], [1], [0, 0, 1, 1], [], []>} : vector<24x4xf32>, vector<4x80xf32>, vector<24x80xf32> -> vector<24x80xf32>
    %48 = arith.addf %42, %47 : vector<24x80xf32>
    %49 = vector.extract_strided_slice %3 {offsets = [1, 0, 0], sizes = [1, 24, 4], strides = [1, 1, 1]} : vector<9x24x4xf32> to vector<1x24x4xf32>
    %50 = vector.shape_cast %49 : vector<1x24x4xf32> to vector<24x4xf32>
    %c0_55 = arith.constant 0 : index
    %c1_56 = arith.constant 1 : index
    %c0_57 = arith.constant 0 : index
    %c0_58 = arith.constant 0 : index
    %51 = vector.load %arg1[%c0_55, %c1_56, %c0_57, %c0_58] : memref<1x4x4x100xf32, #tpu.memory_space<vmem>>, vector<1x1x4x80xf32>
    %52 = vector.shape_cast %51 : vector<1x1x4x80xf32> to vector<4x80xf32>
    %cst_59 = arith.constant dense<0.000000e+00> : vector<24x80xf32>
    %53 = tpu.matmul %50, %52, %cst_59 {dimension_numbers = #tpu.dot_dimension_numbers<[1], [0], [0], [1], [0, 0, 1, 1], [], []>} : vector<24x4xf32>, vector<4x80xf32>, vector<24x80xf32> -> vector<24x80xf32>
    %54 = arith.addf %48, %53 : vector<24x80xf32>
    %55 = vector.extract_strided_slice %3 {offsets = [2, 0, 0], sizes = [1, 24, 4], strides = [1, 1, 1]} : vector<9x24x4xf32> to vector<1x24x4xf32>
    %56 = vector.shape_cast %55 : vector<1x24x4xf32> to vector<24x4xf32>
    %c0_60 = arith.constant 0 : index
    %c0_61 = arith.constant 0 : index
    %c0_62 = arith.constant 0 : index
    %c1_63 = arith.constant 1 : index
    %57 = vector.load %arg1[%c0_60, %c0_61, %c0_62, %c1_63] : memref<1x4x4x100xf32, #tpu.memory_space<vmem>>, vector<1x1x4x80xf32>
    %58 = vector.shape_cast %57 : vector<1x1x4x80xf32> to vector<4x80xf32>
    %cst_64 = arith.constant dense<0.000000e+00> : vector<24x80xf32>
    %59 = tpu.matmul %56, %58, %cst_64 {dimension_numbers = #tpu.dot_dimension_numbers<[1], [0], [0], [1], [0, 0, 1, 1], [], []>} : vector<24x4xf32>, vector<4x80xf32>, vector<24x80xf32> -> vector<24x80xf32>
    %60 = arith.addf %54, %59 : vector<24x80xf32>
    %61 = vector.extract_strided_slice %3 {offsets = [3, 0, 0], sizes = [1, 24, 4], strides = [1, 1, 1]} : vector<9x24x4xf32> to vector<1x24x4xf32>
    %62 = vector.shape_cast %61 : vector<1x24x4xf32> to vector<24x4xf32>
    %c0_65 = arith.constant 0 : index
    %c2_66 = arith.constant 2 : index
    %c0_67 = arith.constant 0 : index
    %c0_68 = arith.constant 0 : index
    %63 = vector.load %arg1[%c0_65, %c2_66, %c0_67, %c0_68] : memref<1x4x4x100xf32, #tpu.memory_space<vmem>>, vector<1x1x4x80xf32>
    %64 = vector.shape_cast %63 : vector<1x1x4x80xf32> to vector<4x80xf32>
    %cst_69 = arith.constant dense<0.000000e+00> : vector<24x80xf32>
    %65 = tpu.matmul %62, %64, %cst_69 {dimension_numbers = #tpu.dot_dimension_numbers<[1], [0], [0], [1], [0, 0, 1, 1], [], []>} : vector<24x4xf32>, vector<4x80xf32>, vector<24x80xf32> -> vector<24x80xf32>
    %66 = arith.addf %60, %65 : vector<24x80xf32>
    %67 = vector.extract_strided_slice %3 {offsets = [4, 0, 0], sizes = [1, 24, 4], strides = [1, 1, 1]} : vector<9x24x4xf32> to vector<1x24x4xf32>
    %68 = vector.shape_cast %67 : vector<1x24x4xf32> to vector<24x4xf32>
    %c0_70 = arith.constant 0 : index
    %c3_71 = arith.constant 3 : index
    %c0_72 = arith.constant 0 : index
    %c0_73 = arith.constant 0 : index
    %69 = vector.load %arg1[%c0_70, %c3_71, %c0_72, %c0_73] : memref<1x4x4x100xf32, #tpu.memory_space<vmem>>, vector<1x1x4x80xf32>
    %70 = vector.shape_cast %69 : vector<1x1x4x80xf32> to vector<4x80xf32>
    %cst_74 = arith.constant dense<0.000000e+00> : vector<24x80xf32>
    %71 = tpu.matmul %68, %70, %cst_74 {dimension_numbers = #tpu.dot_dimension_numbers<[1], [0], [0], [1], [0, 0, 1, 1], [], []>} : vector<24x4xf32>, vector<4x80xf32>, vector<24x80xf32> -> vector<24x80xf32>
    %72 = arith.addf %66, %71 : vector<24x80xf32>
    %73 = vector.extract_strided_slice %3 {offsets = [5, 0, 0], sizes = [1, 24, 4], strides = [1, 1, 1]} : vector<9x24x4xf32> to vector<1x24x4xf32>
    %74 = vector.shape_cast %73 : vector<1x24x4xf32> to vector<24x4xf32>
    %c0_75 = arith.constant 0 : index
    %c2_76 = arith.constant 2 : index
    %c0_77 = arith.constant 0 : index
    %c1_78 = arith.constant 1 : index
    %75 = vector.load %arg1[%c0_75, %c2_76, %c0_77, %c1_78] : memref<1x4x4x100xf32, #tpu.memory_space<vmem>>, vector<1x1x4x80xf32>
    %76 = vector.shape_cast %75 : vector<1x1x4x80xf32> to vector<4x80xf32>
    %cst_79 = arith.constant dense<0.000000e+00> : vector<24x80xf32>
    %77 = tpu.matmul %74, %76, %cst_79 {dimension_numbers = #tpu.dot_dimension_numbers<[1], [0], [0], [1], [0, 0, 1, 1], [], []>} : vector<24x4xf32>, vector<4x80xf32>, vector<24x80xf32> -> vector<24x80xf32>
    %78 = arith.addf %72, %77 : vector<24x80xf32>
    %79 = vector.extract_strided_slice %3 {offsets = [6, 0, 0], sizes = [1, 24, 4], strides = [1, 1, 1]} : vector<9x24x4xf32> to vector<1x24x4xf32>
    %80 = vector.shape_cast %79 : vector<1x24x4xf32> to vector<24x4xf32>
    %c0_80 = arith.constant 0 : index
    %c0_81 = arith.constant 0 : index
    %c0_82 = arith.constant 0 : index
    %c10 = arith.constant 10 : index
    %81 = vector.load %arg1[%c0_80, %c0_81, %c0_82, %c10] : memref<1x4x4x100xf32, #tpu.memory_space<vmem>>, vector<1x1x4x80xf32>
    %82 = vector.shape_cast %81 : vector<1x1x4x80xf32> to vector<4x80xf32>
    %cst_83 = arith.constant dense<0.000000e+00> : vector<24x80xf32>
    %83 = tpu.matmul %80, %82, %cst_83 {dimension_numbers = #tpu.dot_dimension_numbers<[1], [0], [0], [1], [0, 0, 1, 1], [], []>} : vector<24x4xf32>, vector<4x80xf32>, vector<24x80xf32> -> vector<24x80xf32>
    %84 = arith.addf %78, %83 : vector<24x80xf32>
    %85 = vector.extract_strided_slice %3 {offsets = [7, 0, 0], sizes = [1, 24, 4], strides = [1, 1, 1]} : vector<9x24x4xf32> to vector<1x24x4xf32>
    %86 = vector.shape_cast %85 : vector<1x24x4xf32> to vector<24x4xf32>
    %c0_84 = arith.constant 0 : index
    %c1_85 = arith.constant 1 : index
    %c0_86 = arith.constant 0 : index
    %c10_87 = arith.constant 10 : index
    %87 = vector.load %arg1[%c0_84, %c1_85, %c0_86, %c10_87] : memref<1x4x4x100xf32, #tpu.memory_space<vmem>>, vector<1x1x4x80xf32>
    %88 = vector.shape_cast %87 : vector<1x1x4x80xf32> to vector<4x80xf32>
    %cst_88 = arith.constant dense<0.000000e+00> : vector<24x80xf32>
    %89 = tpu.matmul %86, %88, %cst_88 {dimension_numbers = #tpu.dot_dimension_numbers<[1], [0], [0], [1], [0, 0, 1, 1], [], []>} : vector<24x4xf32>, vector<4x80xf32>, vector<24x80xf32> -> vector<24x80xf32>
    %90 = arith.addf %84, %89 : vector<24x80xf32>
    %91 = vector.extract_strided_slice %3 {offsets = [8, 0, 0], sizes = [1, 24, 4], strides = [1, 1, 1]} : vector<9x24x4xf32> to vector<1x24x4xf32>
    %92 = vector.shape_cast %91 : vector<1x24x4xf32> to vector<24x4xf32>
    %c0_89 = arith.constant 0 : index
    %c0_90 = arith.constant 0 : index
    %c0_91 = arith.constant 0 : index
    %c11 = arith.constant 11 : index
    %93 = vector.load %arg1[%c0_89, %c0_90, %c0_91, %c11] : memref<1x4x4x100xf32, #tpu.memory_space<vmem>>, vector<1x1x4x80xf32>
    %94 = vector.shape_cast %93 : vector<1x1x4x80xf32> to vector<4x80xf32>
    %cst_92 = arith.constant dense<0.000000e+00> : vector<24x80xf32>
    %95 = tpu.matmul %92, %94, %cst_92 {dimension_numbers = #tpu.dot_dimension_numbers<[1], [0], [0], [1], [0, 0, 1, 1], [], []>} : vector<24x4xf32>, vector<4x80xf32>, vector<24x80xf32> -> vector<24x80xf32>
    %96 = arith.addf %90, %95 : vector<24x80xf32>
    %97 = vector.broadcast %4 : vector<24x1xf32> to vector<24x80xf32>
    %98 = arith.addf %96, %97 : vector<24x80xf32>
    %cst_93 = arith.constant 0.000000e+00 : f32
    %99 = vector.broadcast %cst_93 : f32 to vector<24x80xf32>
    %100 = arith.maximumf %98, %99 : vector<24x80xf32>
    %cst_94 = arith.constant 0.000000e+00 : f32
    %101 = vector.shape_cast %2 : vector<1x80xi1> to vector<1x80xi1>
    %102 = vector.broadcast %101 : vector<1x80xi1> to vector<24x80xi1>
    %103 = vector.broadcast %cst_94 : f32 to vector<24x80xf32>
    %104 = arith.select %102, %100, %103 : vector<24x80xi1>, vector<24x80xf32>
    %c3_95 = arith.constant 3 : index
    %c0_96 = arith.constant 0 : index
    %c0_97 = arith.constant 0 : index
    %105 = vector.load %arg15[%c3_95, %c0_96, %c0_97] : memref<4x24x100xf32, #tpu.memory_space<vmem>>, vector<1x24x80xf32>
    %106 = vector.shape_cast %105 : vector<1x24x80xf32> to vector<24x80xf32>
    %107 = vector.shape_cast %104 : vector<24x80xf32> to vector<1x24x80xf32>
    tpu.vector_store %arg15[%c3_95, %c0_96, %c0_97], %107 {strides = array<i32>} : memref<4x24x100xf32, #tpu.memory_space<vmem>>, vector<1x24x80xf32>,
    %cst_98 = arith.constant 0.000000e+00 : f32
    %108 = vector.broadcast %cst_98 : f32 to vector<24x80xf32>
    %109 = vector.extract_strided_slice %3 {offsets = [0, 0, 0], sizes = [1, 24, 4], strides = [1, 1, 1]} : vector<9x24x4xf32> to vector<1x24x4xf32>
    %110 = vector.shape_cast %109 : vector<1x24x4xf32> to vector<24x4xf32>
    %c0_99 = arith.constant 0 : index
    %c1_100 = arith.constant 1 : index
    %c0_101 = arith.constant 0 : index
    %c0_102 = arith.constant 0 : index
    %111 = vector.load %arg1[%c0_99, %c1_100, %c0_101, %c0_102] : memref<1x4x4x100xf32, #tpu.memory_space<vmem>>, vector<1x1x4x80xf32>
    %112 = vector.shape_cast %111 : vector<1x1x4x80xf32> to vector<4x80xf32>
    %cst_103 = arith.constant dense<0.000000e+00> : vector<24x80xf32>
    %113 = tpu.matmul %110, %112, %cst_103 {dimension_numbers = #tpu.dot_dimension_numbers<[1], [0], [0], [1], [0, 0, 1, 1], [], []>} : vector<24x4xf32>, vector<4x80xf32>, vector<24x80xf32> -> vector<24x80xf32>
    %114 = arith.addf %108, %113 : vector<24x80xf32>
    %115 = vector.extract_strided_slice %3 {offsets = [1, 0, 0], sizes = [1, 24, 4], strides = [1, 1, 1]} : vector<9x24x4xf32> to vector<1x24x4xf32>
    %116 = vector.shape_cast %115 : vector<1x24x4xf32> to vector<24x4xf32>
    %c0_104 = arith.constant 0 : index
    %c0_105 = arith.constant 0 : index
    %c0_106 = arith.constant 0 : index
    %c1_107 = arith.constant 1 : index
    %117 = vector.load %arg1[%c0_104, %c0_105, %c0_106, %c1_107] : memref<1x4x4x100xf32, #tpu.memory_space<vmem>>, vector<1x1x4x80xf32>
    %118 = vector.shape_cast %117 : vector<1x1x4x80xf32> to vector<4x80xf32>
    %cst_108 = arith.constant dense<0.000000e+00> : vector<24x80xf32>
    %119 = tpu.matmul %116, %118, %cst_108 {dimension_numbers = #tpu.dot_dimension_numbers<[1], [0], [0], [1], [0, 0, 1, 1], [], []>} : vector<24x4xf32>, vector<4x80xf32>, vector<24x80xf32> -> vector<24x80xf32>
    %120 = arith.addf %114, %119 : vector<24x80xf32>
    %121 = vector.extract_strided_slice %3 {offsets = [2, 0, 0], sizes = [1, 24, 4], strides = [1, 1, 1]} : vector<9x24x4xf32> to vector<1x24x4xf32>
    %122 = vector.shape_cast %121 : vector<1x24x4xf32> to vector<24x4xf32>
    %c0_109 = arith.constant 0 : index
    %c1_110 = arith.constant 1 : index
    %c0_111 = arith.constant 0 : index
    %c1_112 = arith.constant 1 : index
    %123 = vector.load %arg1[%c0_109, %c1_110, %c0_111, %c1_112] : memref<1x4x4x100xf32, #tpu.memory_space<vmem>>, vector<1x1x4x80xf32>
    %124 = vector.shape_cast %123 : vector<1x1x4x80xf32> to vector<4x80xf32>
    %cst_113 = arith.constant dense<0.000000e+00> : vector<24x80xf32>
    %125 = tpu.matmul %122, %124, %cst_113 {dimension_numbers = #tpu.dot_dimension_numbers<[1], [0], [0], [1], [0, 0, 1, 1], [], []>} : vector<24x4xf32>, vector<4x80xf32>, vector<24x80xf32> -> vector<24x80xf32>
    %126 = arith.addf %120, %125 : vector<24x80xf32>
    %127 = vector.extract_strided_slice %3 {offsets = [3, 0, 0], sizes = [1, 24, 4], strides = [1, 1, 1]} : vector<9x24x4xf32> to vector<1x24x4xf32>
    %128 = vector.shape_cast %127 : vector<1x24x4xf32> to vector<24x4xf32>
    %c0_114 = arith.constant 0 : index
    %c3_115 = arith.constant 3 : index
    %c0_116 = arith.constant 0 : index
    %c0_117 = arith.constant 0 : index
    %129 = vector.load %arg1[%c0_114, %c3_115, %c0_116, %c0_117] : memref<1x4x4x100xf32, #tpu.memory_space<vmem>>, vector<1x1x4x80xf32>
    %130 = vector.shape_cast %129 : vector<1x1x4x80xf32> to vector<4x80xf32>
    %cst_118 = arith.constant dense<0.000000e+00> : vector<24x80xf32>
    %131 = tpu.matmul %128, %130, %cst_118 {dimension_numbers = #tpu.dot_dimension_numbers<[1], [0], [0], [1], [0, 0, 1, 1], [], []>} : vector<24x4xf32>, vector<4x80xf32>, vector<24x80xf32> -> vector<24x80xf32>
    %132 = arith.addf %126, %131 : vector<24x80xf32>
    %133 = vector.extract_strided_slice %3 {offsets = [4, 0, 0], sizes = [1, 24, 4], strides = [1, 1, 1]} : vector<9x24x4xf32> to vector<1x24x4xf32>
    %134 = vector.shape_cast %133 : vector<1x24x4xf32> to vector<24x4xf32>
    %c0_119 = arith.constant 0 : index
    %c2_120 = arith.constant 2 : index
    %c0_121 = arith.constant 0 : index
    %c1_122 = arith.constant 1 : index
    %135 = vector.load %arg1[%c0_119, %c2_120, %c0_121, %c1_122] : memref<1x4x4x100xf32, #tpu.memory_space<vmem>>, vector<1x1x4x80xf32>
    %136 = vector.shape_cast %135 : vector<1x1x4x80xf32> to vector<4x80xf32>
    %cst_123 = arith.constant dense<0.000000e+00> : vector<24x80xf32>
    %137 = tpu.matmul %134, %136, %cst_123 {dimension_numbers = #tpu.dot_dimension_numbers<[1], [0], [0], [1], [0, 0, 1, 1], [], []>} : vector<24x4xf32>, vector<4x80xf32>, vector<24x80xf32> -> vector<24x80xf32>
    %138 = arith.addf %132, %137 : vector<24x80xf32>
    %139 = vector.extract_strided_slice %3 {offsets = [5, 0, 0], sizes = [1, 24, 4], strides = [1, 1, 1]} : vector<9x24x4xf32> to vector<1x24x4xf32>
    %140 = vector.shape_cast %139 : vector<1x24x4xf32> to vector<24x4xf32>
    %c0_124 = arith.constant 0 : index
    %c3_125 = arith.constant 3 : index
    %c0_126 = arith.constant 0 : index
    %c1_127 = arith.constant 1 : index
    %141 = vector.load %arg1[%c0_124, %c3_125, %c0_126, %c1_127] : memref<1x4x4x100xf32, #tpu.memory_space<vmem>>, vector<1x1x4x80xf32>
    %142 = vector.shape_cast %141 : vector<1x1x4x80xf32> to vector<4x80xf32>
    %cst_128 = arith.constant dense<0.000000e+00> : vector<24x80xf32>
    %143 = tpu.matmul %140, %142, %cst_128 {dimension_numbers = #tpu.dot_dimension_numbers<[1], [0], [0], [1], [0, 0, 1, 1], [], []>} : vector<24x4xf32>, vector<4x80xf32>, vector<24x80xf32> -> vector<24x80xf32>
    %144 = arith.addf %138, %143 : vector<24x80xf32>
    %145 = vector.extract_strided_slice %3 {offsets = [6, 0, 0], sizes = [1, 24, 4], strides = [1, 1, 1]} : vector<9x24x4xf32> to vector<1x24x4xf32>
    %146 = vector.shape_cast %145 : vector<1x24x4xf32> to vector<24x4xf32>
    %c0_129 = arith.constant 0 : index
    %c1_130 = arith.constant 1 : index
    %c0_131 = arith.constant 0 : index
    %c10_132 = arith.constant 10 : index
    %147 = vector.load %arg1[%c0_129, %c1_130, %c0_131, %c10_132] : memref<1x4x4x100xf32, #tpu.memory_space<vmem>>, vector<1x1x4x80xf32>
    %148 = vector.shape_cast %147 : vector<1x1x4x80xf32> to vector<4x80xf32>
    %cst_133 = arith.constant dense<0.000000e+00> : vector<24x80xf32>
    %149 = tpu.matmul %146, %148, %cst_133 {dimension_numbers = #tpu.dot_dimension_numbers<[1], [0], [0], [1], [0, 0, 1, 1], [], []>} : vector<24x4xf32>, vector<4x80xf32>, vector<24x80xf32> -> vector<24x80xf32>
    %150 = arith.addf %144, %149 : vector<24x80xf32>
    %151 = vector.extract_strided_slice %3 {offsets = [7, 0, 0], sizes = [1, 24, 4], strides = [1, 1, 1]} : vector<9x24x4xf32> to vector<1x24x4xf32>
    %152 = vector.shape_cast %151 : vector<1x24x4xf32> to vector<24x4xf32>
    %c0_134 = arith.constant 0 : index
    %c0_135 = arith.constant 0 : index
    %c0_136 = arith.constant 0 : index
    %c11_137 = arith.constant 11 : index
    %153 = vector.load %arg1[%c0_134, %c0_135, %c0_136, %c11_137] : memref<1x4x4x100xf32, #tpu.memory_space<vmem>>, vector<1x1x4x80xf32>
    %154 = vector.shape_cast %153 : vector<1x1x4x80xf32> to vector<4x80xf32>
    %cst_138 = arith.constant dense<0.000000e+00> : vector<24x80xf32>
    %155 = tpu.matmul %152, %154, %cst_138 {dimension_numbers = #tpu.dot_dimension_numbers<[1], [0], [0], [1], [0, 0, 1, 1], [], []>} : vector<24x4xf32>, vector<4x80xf32>, vector<24x80xf32> -> vector<24x80xf32>
    %156 = arith.addf %150, %155 : vector<24x80xf32>
    %157 = vector.extract_strided_slice %3 {offsets = [8, 0, 0], sizes = [1, 24, 4], strides = [1, 1, 1]} : vector<9x24x4xf32> to vector<1x24x4xf32>
    %158 = vector.shape_cast %157 : vector<1x24x4xf32> to vector<24x4xf32>
    %c0_139 = arith.constant 0 : index
    %c1_140 = arith.constant 1 : index
    %c0_141 = arith.constant 0 : index
    %c11_142 = arith.constant 11 : index
    %159 = vector.load %arg1[%c0_139, %c1_140, %c0_141, %c11_142] : memref<1x4x4x100xf32, #tpu.memory_space<vmem>>, vector<1x1x4x80xf32>
    %160 = vector.shape_cast %159 : vector<1x1x4x80xf32> to vector<4x80xf32>
    %cst_143 = arith.constant dense<0.000000e+00> : vector<24x80xf32>
    %161 = tpu.matmul %158, %160, %cst_143 {dimension_numbers = #tpu.dot_dimension_numbers<[1], [0], [0], [1], [0, 0, 1, 1], [], []>} : vector<24x4xf32>, vector<4x80xf32>, vector<24x80xf32> -> vector<24x80xf32>
    %162 = arith.addf %156, %161 : vector<24x80xf32>
    %163 = vector.broadcast %4 : vector<24x1xf32> to vector<24x80xf32>
    %164 = arith.addf %162, %163 : vector<24x80xf32>
    %cst_144 = arith.constant 0.000000e+00 : f32
    %165 = vector.broadcast %cst_144 : f32 to vector<24x80xf32>
    %166 = arith.maximumf %164, %165 : vector<24x80xf32>
    %cst_145 = arith.constant 0.000000e+00 : f32
    %167 = vector.shape_cast %2 : vector<1x80xi1> to vector<1x80xi1>
    %168 = vector.broadcast %167 : vector<1x80xi1> to vector<24x80xi1>
    %169 = vector.broadcast %cst_145 : f32 to vector<24x80xf32>
    %170 = arith.select %168, %166, %169 : vector<24x80xi1>, vector<24x80xf32>
    %c2_146 = arith.constant 2 : index
    %c0_147 = arith.constant 0 : index
    %c1_148 = arith.constant 1 : index
    %171 = vector.load %arg15[%c2_146, %c0_147, %c1_148] : memref<4x24x100xf32, #tpu.memory_space<vmem>>, vector<1x24x80xf32>
    %172 = vector.shape_cast %171 : vector<1x24x80xf32> to vector<24x80xf32>
    %173 = vector.shape_cast %170 : vector<24x80xf32> to vector<1x24x80xf32>
    tpu.vector_store %arg15[%c2_146, %c0_147, %c1_148], %173 {strides = array<i32>} : memref<4x24x100xf32, #tpu.memory_space<vmem>>, vector<1x24x80xf32>,
    %cst_149 = arith.constant 0.000000e+00 : f32
    %174 = vector.broadcast %cst_149 : f32 to vector<24x80xf32>
    %175 = vector.extract_strided_slice %3 {offsets = [0, 0, 0], sizes = [1, 24, 4], strides = [1, 1, 1]} : vector<9x24x4xf32> to vector<1x24x4xf32>
    %176 = vector.shape_cast %175 : vector<1x24x4xf32> to vector<24x4xf32>
    %c0_150 = arith.constant 0 : index
    %c2_151 = arith.constant 2 : index
    %c0_152 = arith.constant 0 : index
    %c0_153 = arith.constant 0 : index
    %177 = vector.load %arg1[%c0_150, %c2_151, %c0_152, %c0_153] : memref<1x4x4x100xf32, #tpu.memory_space<vmem>>, vector<1x1x4x80xf32>
    %178 = vector.shape_cast %177 : vector<1x1x4x80xf32> to vector<4x80xf32>
    %cst_154 = arith.constant dense<0.000000e+00> : vector<24x80xf32>
    %179 = tpu.matmul %176, %178, %cst_154 {dimension_numbers = #tpu.dot_dimension_numbers<[1], [0], [0], [1], [0, 0, 1, 1], [], []>} : vector<24x4xf32>, vector<4x80xf32>, vector<24x80xf32> -> vector<24x80xf32>
    %180 = arith.addf %174, %179 : vector<24x80xf32>
    %181 = vector.extract_strided_slice %3 {offsets = [1, 0, 0], sizes = [1, 24, 4], strides = [1, 1, 1]} : vector<9x24x4xf32> to vector<1x24x4xf32>
    %182 = vector.shape_cast %181 : vector<1x24x4xf32> to vector<24x4xf32>
    %c0_155 = arith.constant 0 : index
    %c3_156 = arith.constant 3 : index
    %c0_157 = arith.constant 0 : index
    %c0_158 = arith.constant 0 : index
    %183 = vector.load %arg1[%c0_155, %c3_156, %c0_157, %c0_158] : memref<1x4x4x100xf32, #tpu.memory_space<vmem>>, vector<1x1x4x80xf32>
    %184 = vector.shape_cast %183 : vector<1x1x4x80xf32> to vector<4x80xf32>
    %cst_159 = arith.constant dense<0.000000e+00> : vector<24x80xf32>
    %185 = tpu.matmul %182, %184, %cst_159 {dimension_numbers = #tpu.dot_dimension_numbers<[1], [0], [0], [1], [0, 0, 1, 1], [], []>} : vector<24x4xf32>, vector<4x80xf32>, vector<24x80xf32> -> vector<24x80xf32>
    %186 = arith.addf %180, %185 : vector<24x80xf32>
    %187 = vector.extract_strided_slice %3 {offsets = [2, 0, 0], sizes = [1, 24, 4], strides = [1, 1, 1]} : vector<9x24x4xf32> to vector<1x24x4xf32>
    %188 = vector.shape_cast %187 : vector<1x24x4xf32> to vector<24x4xf32>
    %c0_160 = arith.constant 0 : index
    %c2_161 = arith.constant 2 : index
    %c0_162 = arith.constant 0 : index
    %c1_163 = arith.constant 1 : index
    %189 = vector.load %arg1[%c0_160, %c2_161, %c0_162, %c1_163] : memref<1x4x4x100xf32, #tpu.memory_space<vmem>>, vector<1x1x4x80xf32>
    %190 = vector.shape_cast %189 : vector<1x1x4x80xf32> to vector<4x80xf32>
    %cst_164 = arith.constant dense<0.000000e+00> : vector<24x80xf32>
    %191 = tpu.matmul %188, %190, %cst_164 {dimension_numbers = #tpu.dot_dimension_numbers<[1], [0], [0], [1], [0, 0, 1, 1], [], []>} : vector<24x4xf32>, vector<4x80xf32>, vector<24x80xf32> -> vector<24x80xf32>
    %192 = arith.addf %186, %191 : vector<24x80xf32>
    %193 = vector.extract_strided_slice %3 {offsets = [3, 0, 0], sizes = [1, 24, 4], strides = [1, 1, 1]} : vector<9x24x4xf32> to vector<1x24x4xf32>
    %194 = vector.shape_cast %193 : vector<1x24x4xf32> to vector<24x4xf32>
    %c0_165 = arith.constant 0 : index
    %c0_166 = arith.constant 0 : index
    %c0_167 = arith.constant 0 : index
    %c10_168 = arith.constant 10 : index
    %195 = vector.load %arg1[%c0_165, %c0_166, %c0_167, %c10_168] : memref<1x4x4x100xf32, #tpu.memory_space<vmem>>, vector<1x1x4x80xf32>
    %196 = vector.shape_cast %195 : vector<1x1x4x80xf32> to vector<4x80xf32>
    %cst_169 = arith.constant dense<0.000000e+00> : vector<24x80xf32>
    %197 = tpu.matmul %194, %196, %cst_169 {dimension_numbers = #tpu.dot_dimension_numbers<[1], [0], [0], [1], [0, 0, 1, 1], [], []>} : vector<24x4xf32>, vector<4x80xf32>, vector<24x80xf32> -> vector<24x80xf32>
    %198 = arith.addf %192, %197 : vector<24x80xf32>
    %199 = vector.extract_strided_slice %3 {offsets = [4, 0, 0], sizes = [1, 24, 4], strides = [1, 1, 1]} : vector<9x24x4xf32> to vector<1x24x4xf32>
    %200 = vector.shape_cast %199 : vector<1x24x4xf32> to vector<24x4xf32>
    %c0_170 = arith.constant 0 : index
    %c1_171 = arith.constant 1 : index
    %c0_172 = arith.constant 0 : index
    %c10_173 = arith.constant 10 : index
    %201 = vector.load %arg1[%c0_170, %c1_171, %c0_172, %c10_173] : memref<1x4x4x100xf32, #tpu.memory_space<vmem>>, vector<1x1x4x80xf32>
    %202 = vector.shape_cast %201 : vector<1x1x4x80xf32> to vector<4x80xf32>
    %cst_174 = arith.constant dense<0.000000e+00> : vector<24x80xf32>
    %203 = tpu.matmul %200, %202, %cst_174 {dimension_numbers = #tpu.dot_dimension_numbers<[1], [0], [0], [1], [0, 0, 1, 1], [], []>} : vector<24x4xf32>, vector<4x80xf32>, vector<24x80xf32> -> vector<24x80xf32>
    %204 = arith.addf %198, %203 : vector<24x80xf32>
    %205 = vector.extract_strided_slice %3 {offsets = [5, 0, 0], sizes = [1, 24, 4], strides = [1, 1, 1]} : vector<9x24x4xf32> to vector<1x24x4xf32>
    %206 = vector.shape_cast %205 : vector<1x24x4xf32> to vector<24x4xf32>
    %c0_175 = arith.constant 0 : index
    %c0_176 = arith.constant 0 : index
    %c0_177 = arith.constant 0 : index
    %c11_178 = arith.constant 11 : index
    %207 = vector.load %arg1[%c0_175, %c0_176, %c0_177, %c11_178] : memref<1x4x4x100xf32, #tpu.memory_space<vmem>>, vector<1x1x4x80xf32>
    %208 = vector.shape_cast %207 : vector<1x1x4x80xf32> to vector<4x80xf32>
    %cst_179 = arith.constant dense<0.000000e+00> : vector<24x80xf32>
    %209 = tpu.matmul %206, %208, %cst_179 {dimension_numbers = #tpu.dot_dimension_numbers<[1], [0], [0], [1], [0, 0, 1, 1], [], []>} : vector<24x4xf32>, vector<4x80xf32>, vector<24x80xf32> -> vector<24x80xf32>
    %210 = arith.addf %204, %209 : vector<24x80xf32>
    %211 = vector.extract_strided_slice %3 {offsets = [6, 0, 0], sizes = [1, 24, 4], strides = [1, 1, 1]} : vector<9x24x4xf32> to vector<1x24x4xf32>
    %212 = vector.shape_cast %211 : vector<1x24x4xf32> to vector<24x4xf32>
    %c0_180 = arith.constant 0 : index
    %c2_181 = arith.constant 2 : index
    %c0_182 = arith.constant 0 : index
    %c10_183 = arith.constant 10 : index
    %213 = vector.load %arg1[%c0_180, %c2_181, %c0_182, %c10_183] : memref<1x4x4x100xf32, #tpu.memory_space<vmem>>, vector<1x1x4x80xf32>
    %214 = vector.shape_cast %213 : vector<1x1x4x80xf32> to vector<4x80xf32>
    %cst_184 = arith.constant dense<0.000000e+00> : vector<24x80xf32>
    %215 = tpu.matmul %212, %214, %cst_184 {dimension_numbers = #tpu.dot_dimension_numbers<[1], [0], [0], [1], [0, 0, 1, 1], [], []>} : vector<24x4xf32>, vector<4x80xf32>, vector<24x80xf32> -> vector<24x80xf32>
    %216 = arith.addf %210, %215 : vector<24x80xf32>
    %217 = vector.extract_strided_slice %3 {offsets = [7, 0, 0], sizes = [1, 24, 4], strides = [1, 1, 1]} : vector<9x24x4xf32> to vector<1x24x4xf32>
    %218 = vector.shape_cast %217 : vector<1x24x4xf32> to vector<24x4xf32>
    %c0_185 = arith.constant 0 : index
    %c3_186 = arith.constant 3 : index
    %c0_187 = arith.constant 0 : index
    %c10_188 = arith.constant 10 : index
    %219 = vector.load %arg1[%c0_185, %c3_186, %c0_187, %c10_188] : memref<1x4x4x100xf32, #tpu.memory_space<vmem>>, vector<1x1x4x80xf32>
    %220 = vector.shape_cast %219 : vector<1x1x4x80xf32> to vector<4x80xf32>
    %cst_189 = arith.constant dense<0.000000e+00> : vector<24x80xf32>
    %221 = tpu.matmul %218, %220, %cst_189 {dimension_numbers = #tpu.dot_dimension_numbers<[1], [0], [0], [1], [0, 0, 1, 1], [], []>} : vector<24x4xf32>, vector<4x80xf32>, vector<24x80xf32> -> vector<24x80xf32>
    %222 = arith.addf %216, %221 : vector<24x80xf32>
    %223 = vector.extract_strided_slice %3 {offsets = [8, 0, 0], sizes = [1, 24, 4], strides = [1, 1, 1]} : vector<9x24x4xf32> to vector<1x24x4xf32>
    %224 = vector.shape_cast %223 : vector<1x24x4xf32> to vector<24x4xf32>
    %c0_190 = arith.constant 0 : index
    %c2_191 = arith.constant 2 : index
    %c0_192 = arith.constant 0 : index
    %c11_193 = arith.constant 11 : index
    %225 = vector.load %arg1[%c0_190, %c2_191, %c0_192, %c11_193] : memref<1x4x4x100xf32, #tpu.memory_space<vmem>>, vector<1x1x4x80xf32>
    %226 = vector.shape_cast %225 : vector<1x1x4x80xf32> to vector<4x80xf32>
    %cst_194 = arith.constant dense<0.000000e+00> : vector<24x80xf32>
    %227 = tpu.matmul %224, %226, %cst_194 {dimension_numbers = #tpu.dot_dimension_numbers<[1], [0], [0], [1], [0, 0, 1, 1], [], []>} : vector<24x4xf32>, vector<4x80xf32>, vector<24x80xf32> -> vector<24x80xf32>
    %228 = arith.addf %222, %227 : vector<24x80xf32>
    %229 = vector.broadcast %4 : vector<24x1xf32> to vector<24x80xf32>
    %230 = arith.addf %228, %229 : vector<24x80xf32>
    %cst_195 = arith.constant 0.000000e+00 : f32
    %231 = vector.broadcast %cst_195 : f32 to vector<24x80xf32>
    %232 = arith.maximumf %230, %231 : vector<24x80xf32>
    %cst_196 = arith.constant 0.000000e+00 : f32
    %233 = vector.shape_cast %2 : vector<1x80xi1> to vector<1x80xi1>
    %234 = vector.broadcast %233 : vector<1x80xi1> to vector<24x80xi1>
    %235 = vector.broadcast %cst_196 : f32 to vector<24x80xf32>
    %236 = arith.select %234, %232, %235 : vector<24x80xi1>, vector<24x80xf32>
    %c1_197 = arith.constant 1 : index
    %c0_198 = arith.constant 0 : index
    %c10_199 = arith.constant 10 : index
    %237 = vector.load %arg15[%c1_197, %c0_198, %c10_199] : memref<4x24x100xf32, #tpu.memory_space<vmem>>, vector<1x24x80xf32>
    %238 = vector.shape_cast %237 : vector<1x24x80xf32> to vector<24x80xf32>
    %239 = vector.shape_cast %236 : vector<24x80xf32> to vector<1x24x80xf32>
    tpu.vector_store %arg15[%c1_197, %c0_198, %c10_199], %239 {strides = array<i32>} : memref<4x24x100xf32, #tpu.memory_space<vmem>>, vector<1x24x80xf32>,
    %cst_200 = arith.constant 0.000000e+00 : f32
    %240 = vector.broadcast %cst_200 : f32 to vector<24x80xf32>
    %241 = vector.extract_strided_slice %3 {offsets = [0, 0, 0], sizes = [1, 24, 4], strides = [1, 1, 1]} : vector<9x24x4xf32> to vector<1x24x4xf32>
    %242 = vector.shape_cast %241 : vector<1x24x4xf32> to vector<24x4xf32>
    %c0_201 = arith.constant 0 : index
    %c3_202 = arith.constant 3 : index
    %c0_203 = arith.constant 0 : index
    %c0_204 = arith.constant 0 : index
    %243 = vector.load %arg1[%c0_201, %c3_202, %c0_203, %c0_204] : memref<1x4x4x100xf32, #tpu.memory_space<vmem>>, vector<1x1x4x80xf32>
    %244 = vector.shape_cast %243 : vector<1x1x4x80xf32> to vector<4x80xf32>
    %cst_205 = arith.constant dense<0.000000e+00> : vector<24x80xf32>
    %245 = tpu.matmul %242, %244, %cst_205 {dimension_numbers = #tpu.dot_dimension_numbers<[1], [0], [0], [1], [0, 0, 1, 1], [], []>} : vector<24x4xf32>, vector<4x80xf32>, vector<24x80xf32> -> vector<24x80xf32>
    %246 = arith.addf %240, %245 : vector<24x80xf32>
    %247 = vector.extract_strided_slice %3 {offsets = [1, 0, 0], sizes = [1, 24, 4], strides = [1, 1, 1]} : vector<9x24x4xf32> to vector<1x24x4xf32>
    %248 = vector.shape_cast %247 : vector<1x24x4xf32> to vector<24x4xf32>
    %c0_206 = arith.constant 0 : index
    %c2_207 = arith.constant 2 : index
    %c0_208 = arith.constant 0 : index
    %c1_209 = arith.constant 1 : index
    %249 = vector.load %arg1[%c0_206, %c2_207, %c0_208, %c1_209] : memref<1x4x4x100xf32, #tpu.memory_space<vmem>>, vector<1x1x4x80xf32>
    %250 = vector.shape_cast %249 : vector<1x1x4x80xf32> to vector<4x80xf32>
    %cst_210 = arith.constant dense<0.000000e+00> : vector<24x80xf32>
    %251 = tpu.matmul %248, %250, %cst_210 {dimension_numbers = #tpu.dot_dimension_numbers<[1], [0], [0], [1], [0, 0, 1, 1], [], []>} : vector<24x4xf32>, vector<4x80xf32>, vector<24x80xf32> -> vector<24x80xf32>
    %252 = arith.addf %246, %251 : vector<24x80xf32>
    %253 = vector.extract_strided_slice %3 {offsets = [2, 0, 0], sizes = [1, 24, 4], strides = [1, 1, 1]} : vector<9x24x4xf32> to vector<1x24x4xf32>
    %254 = vector.shape_cast %253 : vector<1x24x4xf32> to vector<24x4xf32>
    %c0_211 = arith.constant 0 : index
    %c3_212 = arith.constant 3 : index
    %c0_213 = arith.constant 0 : index
    %c1_214 = arith.constant 1 : index
    %255 = vector.load %arg1[%c0_211, %c3_212, %c0_213, %c1_214] : memref<1x4x4x100xf32, #tpu.memory_space<vmem>>, vector<1x1x4x80xf32>
    %256 = vector.shape_cast %255 : vector<1x1x4x80xf32> to vector<4x80xf32>
    %cst_215 = arith.constant dense<0.000000e+00> : vector<24x80xf32>
    %257 = tpu.matmul %254, %256, %cst_215 {dimension_numbers = #tpu.dot_dimension_numbers<[1], [0], [0], [1], [0, 0, 1, 1], [], []>} : vector<24x4xf32>, vector<4x80xf32>, vector<24x80xf32> -> vector<24x80xf32>
    %258 = arith.addf %252, %257 : vector<24x80xf32>
    %259 = vector.extract_strided_slice %3 {offsets = [3, 0, 0], sizes = [1, 24, 4], strides = [1, 1, 1]} : vector<9x24x4xf32> to vector<1x24x4xf32>
    %260 = vector.shape_cast %259 : vector<1x24x4xf32> to vector<24x4xf32>
    %c0_216 = arith.constant 0 : index
    %c1_217 = arith.constant 1 : index
    %c0_218 = arith.constant 0 : index
    %c10_219 = arith.constant 10 : index
    %261 = vector.load %arg1[%c0_216, %c1_217, %c0_218, %c10_219] : memref<1x4x4x100xf32, #tpu.memory_space<vmem>>, vector<1x1x4x80xf32>
    %262 = vector.shape_cast %261 : vector<1x1x4x80xf32> to vector<4x80xf32>
    %cst_220 = arith.constant dense<0.000000e+00> : vector<24x80xf32>
    %263 = tpu.matmul %260, %262, %cst_220 {dimension_numbers = #tpu.dot_dimension_numbers<[1], [0], [0], [1], [0, 0, 1, 1], [], []>} : vector<24x4xf32>, vector<4x80xf32>, vector<24x80xf32> -> vector<24x80xf32>
    %264 = arith.addf %258, %263 : vector<24x80xf32>
    %265 = vector.extract_strided_slice %3 {offsets = [4, 0, 0], sizes = [1, 24, 4], strides = [1, 1, 1]} : vector<9x24x4xf32> to vector<1x24x4xf32>
    %266 = vector.shape_cast %265 : vector<1x24x4xf32> to vector<24x4xf32>
    %c0_221 = arith.constant 0 : index
    %c0_222 = arith.constant 0 : index
    %c0_223 = arith.constant 0 : index
    %c11_224 = arith.constant 11 : index
    %267 = vector.load %arg1[%c0_221, %c0_222, %c0_223, %c11_224] : memref<1x4x4x100xf32, #tpu.memory_space<vmem>>, vector<1x1x4x80xf32>
    %268 = vector.shape_cast %267 : vector<1x1x4x80xf32> to vector<4x80xf32>
    %cst_225 = arith.constant dense<0.000000e+00> : vector<24x80xf32>
    %269 = tpu.matmul %266, %268, %cst_225 {dimension_numbers = #tpu.dot_dimension_numbers<[1], [0], [0], [1], [0, 0, 1, 1], [], []>} : vector<24x4xf32>, vector<4x80xf32>, vector<24x80xf32> -> vector<24x80xf32>
    %270 = arith.addf %264, %269 : vector<24x80xf32>
    %271 = vector.extract_strided_slice %3 {offsets = [5, 0, 0], sizes = [1, 24, 4], strides = [1, 1, 1]} : vector<9x24x4xf32> to vector<1x24x4xf32>
    %272 = vector.shape_cast %271 : vector<1x24x4xf32> to vector<24x4xf32>
    %c0_226 = arith.constant 0 : index
    %c1_227 = arith.constant 1 : index
    %c0_228 = arith.constant 0 : index
    %c11_229 = arith.constant 11 : index
    %273 = vector.load %arg1[%c0_226, %c1_227, %c0_228, %c11_229] : memref<1x4x4x100xf32, #tpu.memory_space<vmem>>, vector<1x1x4x80xf32>
    %274 = vector.shape_cast %273 : vector<1x1x4x80xf32> to vector<4x80xf32>
    %cst_230 = arith.constant dense<0.000000e+00> : vector<24x80xf32>
    %275 = tpu.matmul %272, %274, %cst_230 {dimension_numbers = #tpu.dot_dimension_numbers<[1], [0], [0], [1], [0, 0, 1, 1], [], []>} : vector<24x4xf32>, vector<4x80xf32>, vector<24x80xf32> -> vector<24x80xf32>
    %276 = arith.addf %270, %275 : vector<24x80xf32>
    %277 = vector.extract_strided_slice %3 {offsets = [6, 0, 0], sizes = [1, 24, 4], strides = [1, 1, 1]} : vector<9x24x4xf32> to vector<1x24x4xf32>
    %278 = vector.shape_cast %277 : vector<1x24x4xf32> to vector<24x4xf32>
    %c0_231 = arith.constant 0 : index
    %c3_232 = arith.constant 3 : index
    %c0_233 = arith.constant 0 : index
    %c10_234 = arith.constant 10 : index
    %279 = vector.load %arg1[%c0_231, %c3_232, %c0_233, %c10_234] : memref<1x4x4x100xf32, #tpu.memory_space<vmem>>, vector<1x1x4x80xf32>
    %280 = vector.shape_cast %279 : vector<1x1x4x80xf32> to vector<4x80xf32>
    %cst_235 = arith.constant dense<0.000000e+00> : vector<24x80xf32>
    %281 = tpu.matmul %278, %280, %cst_235 {dimension_numbers = #tpu.dot_dimension_numbers<[1], [0], [0], [1], [0, 0, 1, 1], [], []>} : vector<24x4xf32>, vector<4x80xf32>, vector<24x80xf32> -> vector<24x80xf32>
    %282 = arith.addf %276, %281 : vector<24x80xf32>
    %283 = vector.extract_strided_slice %3 {offsets = [7, 0, 0], sizes = [1, 24, 4], strides = [1, 1, 1]} : vector<9x24x4xf32> to vector<1x24x4xf32>
    %284 = vector.shape_cast %283 : vector<1x24x4xf32> to vector<24x4xf32>
    %c0_236 = arith.constant 0 : index
    %c2_237 = arith.constant 2 : index
    %c0_238 = arith.constant 0 : index
    %c11_239 = arith.constant 11 : index
    %285 = vector.load %arg1[%c0_236, %c2_237, %c0_238, %c11_239] : memref<1x4x4x100xf32, #tpu.memory_space<vmem>>, vector<1x1x4x80xf32>
    %286 = vector.shape_cast %285 : vector<1x1x4x80xf32> to vector<4x80xf32>
    %cst_240 = arith.constant dense<0.000000e+00> : vector<24x80xf32>
    %287 = tpu.matmul %284, %286, %cst_240 {dimension_numbers = #tpu.dot_dimension_numbers<[1], [0], [0], [1], [0, 0, 1, 1], [], []>} : vector<24x4xf32>, vector<4x80xf32>, vector<24x80xf32> -> vector<24x80xf32>
    %288 = arith.addf %282, %287 : vector<24x80xf32>
    %289 = vector.extract_strided_slice %3 {offsets = [8, 0, 0], sizes = [1, 24, 4], strides = [1, 1, 1]} : vector<9x24x4xf32> to vector<1x24x4xf32>
    %290 = vector.shape_cast %289 : vector<1x24x4xf32> to vector<24x4xf32>
    %c0_241 = arith.constant 0 : index
    %c3_242 = arith.constant 3 : index
    %c0_243 = arith.constant 0 : index
    %c11_244 = arith.constant 11 : index
    %291 = vector.load %arg1[%c0_241, %c3_242, %c0_243, %c11_244] : memref<1x4x4x100xf32, #tpu.memory_space<vmem>>, vector<1x1x4x80xf32>
    %292 = vector.shape_cast %291 : vector<1x1x4x80xf32> to vector<4x80xf32>
    %cst_245 = arith.constant dense<0.000000e+00> : vector<24x80xf32>
    %293 = tpu.matmul %290, %292, %cst_245 {dimension_numbers = #tpu.dot_dimension_numbers<[1], [0], [0], [1], [0, 0, 1, 1], [], []>} : vector<24x4xf32>, vector<4x80xf32>, vector<24x80xf32> -> vector<24x80xf32>
    %294 = arith.addf %288, %293 : vector<24x80xf32>
    %295 = vector.broadcast %4 : vector<24x1xf32> to vector<24x80xf32>
    %296 = arith.addf %294, %295 : vector<24x80xf32>
    %cst_246 = arith.constant 0.000000e+00 : f32
    %297 = vector.broadcast %cst_246 : f32 to vector<24x80xf32>
    %298 = arith.maximumf %296, %297 : vector<24x80xf32>
    %cst_247 = arith.constant 0.000000e+00 : f32
    %299 = vector.shape_cast %2 : vector<1x80xi1> to vector<1x80xi1>
    %300 = vector.broadcast %299 : vector<1x80xi1> to vector<24x80xi1>
    %301 = vector.broadcast %cst_247 : f32 to vector<24x80xf32>
    %302 = arith.select %300, %298, %301 : vector<24x80xi1>, vector<24x80xf32>
    %c0_248 = arith.constant 0 : index
    %c0_249 = arith.constant 0 : index
    %c11_250 = arith.constant 11 : index
    %303 = vector.load %arg15[%c0_248, %c0_249, %c11_250] : memref<4x24x100xf32, #tpu.memory_space<vmem>>, vector<1x24x80xf32>
    %304 = vector.shape_cast %303 : vector<1x24x80xf32> to vector<24x80xf32>
    %305 = vector.shape_cast %302 : vector<24x80xf32> to vector<1x24x80xf32>
    tpu.vector_store %arg15[%c0_248, %c0_249, %c11_250], %305 {strides = array<i32>} : memref<4x24x100xf32, #tpu.memory_space<vmem>>, vector<1x24x80xf32>,
    %cst_251 = arith.constant 0.000000e+00 : f32
    %306 = vector.broadcast %cst_251 : f32 to vector<24x80xf32>
    %cst_252 = arith.constant 0.000000e+00 : f32
    %307 = vector.broadcast %cst_252 : f32 to vector<4x80xf32>
    %308 = vector.extract_strided_slice %5 {offsets = [0, 0], sizes = [24, 1], strides = [1, 1]} : vector<24x9xf32> to vector<24x1xf32>
    %c0_253 = arith.constant 0 : index
    %c0_254 = arith.constant 0 : index
    %c0_255 = arith.constant 0 : index
    %309 = vector.load %arg15[%c0_253, %c0_254, %c0_255] : memref<4x24x100xf32, #tpu.memory_space<vmem>>, vector<1x24x80xf32>
    %310 = vector.shape_cast %309 : vector<1x24x80xf32> to vector<24x80xf32>
    %311 = vector.broadcast %308 : vector<24x1xf32> to vector<24x80xf32>
    %312 = arith.mulf %311, %310 : vector<24x80xf32>
    %313 = arith.addf %306, %312 : vector<24x80xf32>
    %314 = vector.extract_strided_slice %10 {offsets = [0, 0], sizes = [4, 1], strides = [1, 1]} : vector<4x9xf32> to vector<4x1xf32>
    %c0_256 = arith.constant 0 : index
    %c0_257 = arith.constant 0 : index
    %c0_258 = arith.constant 0 : index
    %c0_259 = arith.constant 0 : index
    %315 = vector.load %arg1[%c0_256, %c0_257, %c0_258, %c0_259] : memref<1x4x4x100xf32, #tpu.memory_space<vmem>>, vector<1x1x4x80xf32>
    %316 = vector.shape_cast %315 : vector<1x1x4x80xf32> to vector<4x80xf32>
    %317 = vector.broadcast %314 : vector<4x1xf32> to vector<4x80xf32>
    %318 = arith.mulf %317, %316 : vector<4x80xf32>
    %319 = arith.addf %307, %318 : vector<4x80xf32>
    %320 = vector.extract_strided_slice %5 {offsets = [0, 1], sizes = [24, 1], strides = [1, 1]} : vector<24x9xf32> to vector<24x1xf32>
    %c1_260 = arith.constant 1 : index
    %c0_261 = arith.constant 0 : index
    %c0_262 = arith.constant 0 : index
    %321 = vector.load %arg15[%c1_260, %c0_261, %c0_262] : memref<4x24x100xf32, #tpu.memory_space<vmem>>, vector<1x24x80xf32>
    %322 = vector.shape_cast %321 : vector<1x24x80xf32> to vector<24x80xf32>
    %323 = vector.broadcast %320 : vector<24x1xf32> to vector<24x80xf32>
    %324 = arith.mulf %323, %322 : vector<24x80xf32>
    %325 = arith.addf %313, %324 : vector<24x80xf32>
    %326 = vector.extract_strided_slice %10 {offsets = [0, 1], sizes = [4, 1], strides = [1, 1]} : vector<4x9xf32> to vector<4x1xf32>
    %c0_263 = arith.constant 0 : index
    %c1_264 = arith.constant 1 : index
    %c0_265 = arith.constant 0 : index
    %c0_266 = arith.constant 0 : index
    %327 = vector.load %arg1[%c0_263, %c1_264, %c0_265, %c0_266] : memref<1x4x4x100xf32, #tpu.memory_space<vmem>>, vector<1x1x4x80xf32>
    %328 = vector.shape_cast %327 : vector<1x1x4x80xf32> to vector<4x80xf32>
    %329 = vector.broadcast %326 : vector<4x1xf32> to vector<4x80xf32>
    %330 = arith.mulf %329, %328 : vector<4x80xf32>
    %331 = arith.addf %319, %330 : vector<4x80xf32>
    %332 = vector.extract_strided_slice %5 {offsets = [0, 2], sizes = [24, 1], strides = [1, 1]} : vector<24x9xf32> to vector<24x1xf32>
    %c0_267 = arith.constant 0 : index
    %c0_268 = arith.constant 0 : index
    %c1_269 = arith.constant 1 : index
    %333 = vector.load %arg15[%c0_267, %c0_268, %c1_269] : memref<4x24x100xf32, #tpu.memory_space<vmem>>, vector<1x24x80xf32>
    %334 = vector.shape_cast %333 : vector<1x24x80xf32> to vector<24x80xf32>
    %335 = vector.broadcast %332 : vector<24x1xf32> to vector<24x80xf32>
    %336 = arith.mulf %335, %334 : vector<24x80xf32>
    %337 = arith.addf %325, %336 : vector<24x80xf32>
    %338 = vector.extract_strided_slice %10 {offsets = [0, 2], sizes = [4, 1], strides = [1, 1]} : vector<4x9xf32> to vector<4x1xf32>
    %c0_270 = arith.constant 0 : index
    %c0_271 = arith.constant 0 : index
    %c0_272 = arith.constant 0 : index
    %c1_273 = arith.constant 1 : index
    %339 = vector.load %arg1[%c0_270, %c0_271, %c0_272, %c1_273] : memref<1x4x4x100xf32, #tpu.memory_space<vmem>>, vector<1x1x4x80xf32>
    %340 = vector.shape_cast %339 : vector<1x1x4x80xf32> to vector<4x80xf32>
    %341 = vector.broadcast %338 : vector<4x1xf32> to vector<4x80xf32>
    %342 = arith.mulf %341, %340 : vector<4x80xf32>
    %343 = arith.addf %331, %342 : vector<4x80xf32>
    %344 = vector.extract_strided_slice %5 {offsets = [0, 3], sizes = [24, 1], strides = [1, 1]} : vector<24x9xf32> to vector<24x1xf32>
    %c2_274 = arith.constant 2 : index
    %c0_275 = arith.constant 0 : index
    %c0_276 = arith.constant 0 : index
    %345 = vector.load %arg15[%c2_274, %c0_275, %c0_276] : memref<4x24x100xf32, #tpu.memory_space<vmem>>, vector<1x24x80xf32>
    %346 = vector.shape_cast %345 : vector<1x24x80xf32> to vector<24x80xf32>
    %347 = vector.broadcast %344 : vector<24x1xf32> to vector<24x80xf32>
    %348 = arith.mulf %347, %346 : vector<24x80xf32>
    %349 = arith.addf %337, %348 : vector<24x80xf32>
    %350 = vector.extract_strided_slice %10 {offsets = [0, 3], sizes = [4, 1], strides = [1, 1]} : vector<4x9xf32> to vector<4x1xf32>
    %c0_277 = arith.constant 0 : index
    %c2_278 = arith.constant 2 : index
    %c0_279 = arith.constant 0 : index
    %c0_280 = arith.constant 0 : index
    %351 = vector.load %arg1[%c0_277, %c2_278, %c0_279, %c0_280] : memref<1x4x4x100xf32, #tpu.memory_space<vmem>>, vector<1x1x4x80xf32>
    %352 = vector.shape_cast %351 : vector<1x1x4x80xf32> to vector<4x80xf32>
    %353 = vector.broadcast %350 : vector<4x1xf32> to vector<4x80xf32>
    %354 = arith.mulf %353, %352 : vector<4x80xf32>
    %355 = arith.addf %343, %354 : vector<4x80xf32>
    %356 = vector.extract_strided_slice %5 {offsets = [0, 4], sizes = [24, 1], strides = [1, 1]} : vector<24x9xf32> to vector<24x1xf32>
    %c3_281 = arith.constant 3 : index
    %c0_282 = arith.constant 0 : index
    %c0_283 = arith.constant 0 : index
    %357 = vector.load %arg15[%c3_281, %c0_282, %c0_283] : memref<4x24x100xf32, #tpu.memory_space<vmem>>, vector<1x24x80xf32>
    %358 = vector.shape_cast %357 : vector<1x24x80xf32> to vector<24x80xf32>
    %359 = vector.broadcast %356 : vector<24x1xf32> to vector<24x80xf32>
    %360 = arith.mulf %359, %358 : vector<24x80xf32>
    %361 = arith.addf %349, %360 : vector<24x80xf32>
    %362 = vector.extract_strided_slice %10 {offsets = [0, 4], sizes = [4, 1], strides = [1, 1]} : vector<4x9xf32> to vector<4x1xf32>
    %c0_284 = arith.constant 0 : index
    %c3_285 = arith.constant 3 : index
    %c0_286 = arith.constant 0 : index
    %c0_287 = arith.constant 0 : index
    %363 = vector.load %arg1[%c0_284, %c3_285, %c0_286, %c0_287] : memref<1x4x4x100xf32, #tpu.memory_space<vmem>>, vector<1x1x4x80xf32>
    %364 = vector.shape_cast %363 : vector<1x1x4x80xf32> to vector<4x80xf32>
    %365 = vector.broadcast %362 : vector<4x1xf32> to vector<4x80xf32>
    %366 = arith.mulf %365, %364 : vector<4x80xf32>
    %367 = arith.addf %355, %366 : vector<4x80xf32>
    %368 = vector.extract_strided_slice %5 {offsets = [0, 5], sizes = [24, 1], strides = [1, 1]} : vector<24x9xf32> to vector<24x1xf32>
    %c2_288 = arith.constant 2 : index
    %c0_289 = arith.constant 0 : index
    %c1_290 = arith.constant 1 : index
    %369 = vector.load %arg15[%c2_288, %c0_289, %c1_290] : memref<4x24x100xf32, #tpu.memory_space<vmem>>, vector<1x24x80xf32>
    %370 = vector.shape_cast %369 : vector<1x24x80xf32> to vector<24x80xf32>
    %371 = vector.broadcast %368 : vector<24x1xf32> to vector<24x80xf32>
    %372 = arith.mulf %371, %370 : vector<24x80xf32>
    %373 = arith.addf %361, %372 : vector<24x80xf32>
    %374 = vector.extract_strided_slice %10 {offsets = [0, 5], sizes = [4, 1], strides = [1, 1]} : vector<4x9xf32> to vector<4x1xf32>
    %c0_291 = arith.constant 0 : index
    %c2_292 = arith.constant 2 : index
    %c0_293 = arith.constant 0 : index
    %c1_294 = arith.constant 1 : index
    %375 = vector.load %arg1[%c0_291, %c2_292, %c0_293, %c1_294] : memref<1x4x4x100xf32, #tpu.memory_space<vmem>>, vector<1x1x4x80xf32>
    %376 = vector.shape_cast %375 : vector<1x1x4x80xf32> to vector<4x80xf32>
    %377 = vector.broadcast %374 : vector<4x1xf32> to vector<4x80xf32>
    %378 = arith.mulf %377, %376 : vector<4x80xf32>
    %379 = arith.addf %367, %378 : vector<4x80xf32>
    %380 = vector.extract_strided_slice %5 {offsets = [0, 6], sizes = [24, 1], strides = [1, 1]} : vector<24x9xf32> to vector<24x1xf32>
    %c0_295 = arith.constant 0 : index
    %c0_296 = arith.constant 0 : index
    %c10_297 = arith.constant 10 : index
    %381 = vector.load %arg15[%c0_295, %c0_296, %c10_297] : memref<4x24x100xf32, #tpu.memory_space<vmem>>, vector<1x24x80xf32>
    %382 = vector.shape_cast %381 : vector<1x24x80xf32> to vector<24x80xf32>
    %383 = vector.broadcast %380 : vector<24x1xf32> to vector<24x80xf32>
    %384 = arith.mulf %383, %382 : vector<24x80xf32>
    %385 = arith.addf %373, %384 : vector<24x80xf32>
    %386 = vector.extract_strided_slice %10 {offsets = [0, 6], sizes = [4, 1], strides = [1, 1]} : vector<4x9xf32> to vector<4x1xf32>
    %c0_298 = arith.constant 0 : index
    %c0_299 = arith.constant 0 : index
    %c0_300 = arith.constant 0 : index
    %c10_301 = arith.constant 10 : index
    %387 = vector.load %arg1[%c0_298, %c0_299, %c0_300, %c10_301] : memref<1x4x4x100xf32, #tpu.memory_space<vmem>>, vector<1x1x4x80xf32>
    %388 = vector.shape_cast %387 : vector<1x1x4x80xf32> to vector<4x80xf32>
    %389 = vector.broadcast %386 : vector<4x1xf32> to vector<4x80xf32>
    %390 = arith.mulf %389, %388 : vector<4x80xf32>
    %391 = arith.addf %379, %390 : vector<4x80xf32>
    %392 = vector.extract_strided_slice %5 {offsets = [0, 7], sizes = [24, 1], strides = [1, 1]} : vector<24x9xf32> to vector<24x1xf32>
    %c1_302 = arith.constant 1 : index
    %c0_303 = arith.constant 0 : index
    %c10_304 = arith.constant 10 : index
    %393 = vector.load %arg15[%c1_302, %c0_303, %c10_304] : memref<4x24x100xf32, #tpu.memory_space<vmem>>, vector<1x24x80xf32>
    %394 = vector.shape_cast %393 : vector<1x24x80xf32> to vector<24x80xf32>
    %395 = vector.broadcast %392 : vector<24x1xf32> to vector<24x80xf32>
    %396 = arith.mulf %395, %394 : vector<24x80xf32>
    %397 = arith.addf %385, %396 : vector<24x80xf32>
    %398 = vector.extract_strided_slice %10 {offsets = [0, 7], sizes = [4, 1], strides = [1, 1]} : vector<4x9xf32> to vector<4x1xf32>
    %c0_305 = arith.constant 0 : index
    %c1_306 = arith.constant 1 : index
    %c0_307 = arith.constant 0 : index
    %c10_308 = arith.constant 10 : index
    %399 = vector.load %arg1[%c0_305, %c1_306, %c0_307, %c10_308] : memref<1x4x4x100xf32, #tpu.memory_space<vmem>>, vector<1x1x4x80xf32>
    %400 = vector.shape_cast %399 : vector<1x1x4x80xf32> to vector<4x80xf32>
    %401 = vector.broadcast %398 : vector<4x1xf32> to vector<4x80xf32>
    %402 = arith.mulf %401, %400 : vector<4x80xf32>
    %403 = arith.addf %391, %402 : vector<4x80xf32>
    %404 = vector.extract_strided_slice %5 {offsets = [0, 8], sizes = [24, 1], strides = [1, 1]} : vector<24x9xf32> to vector<24x1xf32>
    %c0_309 = arith.constant 0 : index
    %c0_310 = arith.constant 0 : index
    %c11_311 = arith.constant 11 : index
    %405 = vector.load %arg15[%c0_309, %c0_310, %c11_311] : memref<4x24x100xf32, #tpu.memory_space<vmem>>, vector<1x24x80xf32>
    %406 = vector.shape_cast %405 : vector<1x24x80xf32> to vector<24x80xf32>
    %407 = vector.broadcast %404 : vector<24x1xf32> to vector<24x80xf32>
    %408 = arith.mulf %407, %406 : vector<24x80xf32>
    %409 = arith.addf %397, %408 : vector<24x80xf32>
    %410 = vector.extract_strided_slice %10 {offsets = [0, 8], sizes = [4, 1], strides = [1, 1]} : vector<4x9xf32> to vector<4x1xf32>
    %c0_312 = arith.constant 0 : index
    %c0_313 = arith.constant 0 : index
    %c0_314 = arith.constant 0 : index
    %c11_315 = arith.constant 11 : index
    %411 = vector.load %arg1[%c0_312, %c0_313, %c0_314, %c11_315] : memref<1x4x4x100xf32, #tpu.memory_space<vmem>>, vector<1x1x4x80xf32>
    %412 = vector.shape_cast %411 : vector<1x1x4x80xf32> to vector<4x80xf32>
    %413 = vector.broadcast %410 : vector<4x1xf32> to vector<4x80xf32>
    %414 = arith.mulf %413, %412 : vector<4x80xf32>
    %415 = arith.addf %403, %414 : vector<4x80xf32>
    %416 = vector.broadcast %11 : vector<4x1xf32> to vector<4x80xf32>
    %417 = arith.addf %415, %416 : vector<4x80xf32>
    %418 = vector.broadcast %6 : vector<24x1xf32> to vector<24x80xf32>
    %419 = arith.addf %409, %418 : vector<24x80xf32>
    %cst_316 = arith.constant 0.000000e+00 : f32
    %420 = vector.shape_cast %2 : vector<1x80xi1> to vector<1x80xi1>
    %421 = vector.broadcast %420 : vector<1x80xi1> to vector<24x80xi1>
    %422 = vector.broadcast %cst_316 : f32 to vector<24x80xf32>
    %423 = arith.select %421, %419, %422 : vector<24x80xi1>, vector<24x80xf32>
    %c0_317 = arith.constant 0 : index
    %c11_318 = arith.constant 11 : index
    %424 = vector.load %arg16[%c0_317, %c11_318] : memref<24x110xf32, #tpu.memory_space<vmem>>, vector<24x80xf32>
    tpu.vector_store %arg16[%c0_317, %c11_318], %423 {strides = array<i32>} : memref<24x110xf32, #tpu.memory_space<vmem>>, vector<24x80xf32>,
    %cst_319 = arith.constant 0.000000e+00 : f32
    %425 = vector.broadcast %cst_319 : f32 to vector<24x80xf32>
    %426 = vector.extract_strided_slice %7 {offsets = [0, 0], sizes = [24, 1], strides = [1, 1]} : vector<24x9xf32> to vector<24x1xf32>
    %c0_320 = arith.constant 0 : index
    %c0_321 = arith.constant 0 : index
    %427 = vector.load %arg16[%c0_320, %c0_321] : memref<24x110xf32, #tpu.memory_space<vmem>>, vector<24x80xf32>
    %428 = vector.broadcast %426 : vector<24x1xf32> to vector<24x80xf32>
    %429 = arith.mulf %428, %427 : vector<24x80xf32>
    %430 = arith.addf %425, %429 : vector<24x80xf32>
    %431 = vector.extract_strided_slice %7 {offsets = [0, 1], sizes = [24, 1], strides = [1, 1]} : vector<24x9xf32> to vector<24x1xf32>
    %c0_322 = arith.constant 0 : index
    %c1_323 = arith.constant 1 : index
    %432 = vector.load %arg16[%c0_322, %c1_323] : memref<24x110xf32, #tpu.memory_space<vmem>>, vector<24x80xf32>
    %433 = vector.broadcast %431 : vector<24x1xf32> to vector<24x80xf32>
    %434 = arith.mulf %433, %432 : vector<24x80xf32>
    %435 = arith.addf %430, %434 : vector<24x80xf32>
    %436 = vector.extract_strided_slice %7 {offsets = [0, 2], sizes = [24, 1], strides = [1, 1]} : vector<24x9xf32> to vector<24x1xf32>
    %c0_324 = arith.constant 0 : index
    %c2_325 = arith.constant 2 : index
    %437 = vector.load %arg16[%c0_324, %c2_325] : memref<24x110xf32, #tpu.memory_space<vmem>>, vector<24x80xf32>
    %438 = vector.broadcast %436 : vector<24x1xf32> to vector<24x80xf32>
    %439 = arith.mulf %438, %437 : vector<24x80xf32>
    %440 = arith.addf %435, %439 : vector<24x80xf32>
    %441 = vector.extract_strided_slice %7 {offsets = [0, 3], sizes = [24, 1], strides = [1, 1]} : vector<24x9xf32> to vector<24x1xf32>
    %c0_326 = arith.constant 0 : index
    %c10_327 = arith.constant 10 : index
    %442 = vector.load %arg16[%c0_326, %c10_327] : memref<24x110xf32, #tpu.memory_space<vmem>>, vector<24x80xf32>
    %443 = vector.broadcast %441 : vector<24x1xf32> to vector<24x80xf32>
    %444 = arith.mulf %443, %442 : vector<24x80xf32>
    %445 = arith.addf %440, %444 : vector<24x80xf32>
    %446 = vector.extract_strided_slice %7 {offsets = [0, 4], sizes = [24, 1], strides = [1, 1]} : vector<24x9xf32> to vector<24x1xf32>
    %c0_328 = arith.constant 0 : index
    %c11_329 = arith.constant 11 : index
    %447 = vector.load %arg16[%c0_328, %c11_329] : memref<24x110xf32, #tpu.memory_space<vmem>>, vector<24x80xf32>
    %448 = vector.broadcast %446 : vector<24x1xf32> to vector<24x80xf32>
    %449 = arith.mulf %448, %447 : vector<24x80xf32>
    %450 = arith.addf %445, %449 : vector<24x80xf32>
    %451 = vector.extract_strided_slice %7 {offsets = [0, 5], sizes = [24, 1], strides = [1, 1]} : vector<24x9xf32> to vector<24x1xf32>
    %c0_330 = arith.constant 0 : index
    %c12 = arith.constant 12 : index
    %452 = vector.load %arg16[%c0_330, %c12] : memref<24x110xf32, #tpu.memory_space<vmem>>, vector<24x80xf32>
    %453 = vector.broadcast %451 : vector<24x1xf32> to vector<24x80xf32>
    %454 = arith.mulf %453, %452 : vector<24x80xf32>
    %455 = arith.addf %450, %454 : vector<24x80xf32>
    %456 = vector.extract_strided_slice %7 {offsets = [0, 6], sizes = [24, 1], strides = [1, 1]} : vector<24x9xf32> to vector<24x1xf32>
    %c0_331 = arith.constant 0 : index
    %c20 = arith.constant 20 : index
    %457 = vector.load %arg16[%c0_331, %c20] : memref<24x110xf32, #tpu.memory_space<vmem>>, vector<24x80xf32>
    %458 = vector.broadcast %456 : vector<24x1xf32> to vector<24x80xf32>
    %459 = arith.mulf %458, %457 : vector<24x80xf32>
    %460 = arith.addf %455, %459 : vector<24x80xf32>
    %461 = vector.extract_strided_slice %7 {offsets = [0, 7], sizes = [24, 1], strides = [1, 1]} : vector<24x9xf32> to vector<24x1xf32>
    %c0_332 = arith.constant 0 : index
    %c21 = arith.constant 21 : index
    %462 = vector.load %arg16[%c0_332, %c21] : memref<24x110xf32, #tpu.memory_space<vmem>>, vector<24x80xf32>
    %463 = vector.broadcast %461 : vector<24x1xf32> to vector<24x80xf32>
    %464 = arith.mulf %463, %462 : vector<24x80xf32>
    %465 = arith.addf %460, %464 : vector<24x80xf32>
    %466 = vector.extract_strided_slice %7 {offsets = [0, 8], sizes = [24, 1], strides = [1, 1]} : vector<24x9xf32> to vector<24x1xf32>
    %c0_333 = arith.constant 0 : index
    %c22 = arith.constant 22 : index
    %467 = vector.load %arg16[%c0_333, %c22] : memref<24x110xf32, #tpu.memory_space<vmem>>, vector<24x80xf32>
    %468 = vector.broadcast %466 : vector<24x1xf32> to vector<24x80xf32>
    %469 = arith.mulf %468, %467 : vector<24x80xf32>
    %470 = arith.addf %465, %469 : vector<24x80xf32>
    %471 = vector.broadcast %8 : vector<24x1xf32> to vector<24x80xf32>
    %472 = arith.addf %470, %471 : vector<24x80xf32>
    %cst_334 = arith.constant 0.000000e+00 : f32
    %473 = vector.broadcast %cst_334 : f32 to vector<24x80xf32>
    %474 = arith.maximumf %472, %473 : vector<24x80xf32>
    %cst_335 = arith.constant dense<0.000000e+00> : vector<8x80xf32>
    %475 = tpu.matmul %9, %474, %cst_335 {dimension_numbers = #tpu.dot_dimension_numbers<[1], [0], [0], [1], [0, 0, 1, 1], [], []>} : vector<8x24xf32>, vector<24x80xf32>, vector<8x80xf32> -> vector<8x80xf32>
    %cst_336 = arith.constant dense<0.000000e+00> : vector<8x80xf32>
    %476 = tpu.matmul %12, %417, %cst_336 {dimension_numbers = #tpu.dot_dimension_numbers<[1], [0], [0], [1], [0, 0, 1, 1], [], []>} : vector<8x4xf32>, vector<4x80xf32>, vector<8x80xf32> -> vector<8x80xf32>
    %477 = arith.addf %475, %476 : vector<8x80xf32>
    %478 = vector.broadcast %13 : vector<8x1xf32> to vector<8x80xf32>
    %479 = arith.addf %477, %478 : vector<8x80xf32>
    %cst_337 = arith.constant 0.000000e+00 : f32
    %480 = vector.broadcast %cst_337 : f32 to vector<8x80xf32>
    %481 = arith.maximumf %479, %480 : vector<8x80xf32>
    %c0_338 = arith.constant 0 : index
    %c0_339 = arith.constant 0 : index
    %c0_340 = arith.constant 0 : index
    %482 = vector.load %arg14[%c0_338, %c0_339, %c0_340] : memref<1x8x80xf32, #tpu.memory_space<vmem>>, vector<1x8x80xf32>
    %483 = vector.shape_cast %482 : vector<1x8x80xf32> to vector<8x80xf32>
    %484 = vector.shape_cast %481 : vector<8x80xf32> to vector<1x8x80xf32>
    tpu.vector_store %arg14[%c0_338, %c0_339, %c0_340], %484 {strides = array<i32>} : memref<1x8x80xf32, #tpu.memory_space<vmem>>, vector<1x8x80xf32>,
    return
  }
  func.func @transform_0(%arg0: i32) -> (i32, i32, i32, i32) {
    %c0_i32 = arith.constant 0 : i32
    %c0_i32_0 = arith.constant 0 : i32
    %c0_i32_1 = arith.constant 0 : i32
    %c0_i32_2 = arith.constant 0 : i32
    return %arg0, %c0_i32, %c0_i32_0, %c0_i32_1 : i32, i32, i32, i32
  }
  func.func @transform_1(%arg0: i32) -> (i32, i32) {
    %c0_i32 = arith.constant 0 : i32
    %c0_i32_0 = arith.constant 0 : i32
    %c0_i32_1 = arith.constant 0 : i32
    return %c0_i32, %c0_i32_0 : i32, i32
  }
  func.func @transform_2(%arg0: i32) -> (i32, i32, i32) {
    %c0_i32 = arith.constant 0 : i32
    %c0_i32_0 = arith.constant 0 : i32
    %c0_i32_1 = arith.constant 0 : i32
    %c0_i32_2 = arith.constant 0 : i32
    return %c0_i32, %c0_i32_0, %c0_i32_1 : i32, i32, i32
  }
  func.func @transform_3(%arg0: i32) -> (i32, i32) {
    %c0_i32 = arith.constant 0 : i32
    %c0_i32_0 = arith.constant 0 : i32
    %c0_i32_1 = arith.constant 0 : i32
    return %c0_i32, %c0_i32_0 : i32, i32
  }
  func.func @transform_4(%arg0: i32) -> (i32, i32) {
    %c0_i32 = arith.constant 0 : i32
    %c0_i32_0 = arith.constant 0 : i32
    %c0_i32_1 = arith.constant 0 : i32
    return %c0_i32, %c0_i32_0 : i32, i32
  }
  func.func @transform_5(%arg0: i32) -> (i32, i32) {
    %c0_i32 = arith.constant 0 : i32
    %c0_i32_0 = arith.constant 0 : i32
    %c0_i32_1 = arith.constant 0 : i32
    return %c0_i32, %c0_i32_0 : i32, i32
  }
  func.func @transform_6(%arg0: i32) -> (i32, i32) {
    %c0_i32 = arith.constant 0 : i32
    %c0_i32_0 = arith.constant 0 : i32
    %c0_i32_1 = arith.constant 0 : i32
    return %c0_i32, %c0_i32_0 : i32, i32
  }
  func.func @transform_7(%arg0: i32) -> (i32, i32) {
    %c0_i32 = arith.constant 0 : i32
    %c0_i32_0 = arith.constant 0 : i32
    %c0_i32_1 = arith.constant 0 : i32
    return %c0_i32, %c0_i32_0 : i32, i32
  }
  func.func @transform_8(%arg0: i32) -> (i32, i32) {
    %c0_i32 = arith.constant 0 : i32
    %c0_i32_0 = arith.constant 0 : i32
    %c0_i32_1 = arith.constant 0 : i32
    return %c0_i32, %c0_i32_0 : i32, i32
  }
  func.func @transform_9(%arg0: i32) -> (i32, i32) {
    %c0_i32 = arith.constant 0 : i32
    %c0_i32_0 = arith.constant 0 : i32
    %c0_i32_1 = arith.constant 0 : i32
    return %c0_i32, %c0_i32_0 : i32, i32
  }
  func.func @transform_10(%arg0: i32) -> (i32, i32) {
    %c0_i32 = arith.constant 0 : i32
    %c0_i32_0 = arith.constant 0 : i32
    %c0_i32_1 = arith.constant 0 : i32
    return %c0_i32, %c0_i32_0 : i32, i32
  }
  func.func @transform_11(%arg0: i32) -> (i32, i32) {
    %c0_i32 = arith.constant 0 : i32
    %c0_i32_0 = arith.constant 0 : i32
    %c0_i32_1 = arith.constant 0 : i32
    return %c0_i32, %c0_i32_0 : i32, i32
  }
  func.func @transform_12(%arg0: i32) -> (i32, i32) {
    %c0_i32 = arith.constant 0 : i32
    %c0_i32_0 = arith.constant 0 : i32
    %c0_i32_1 = arith.constant 0 : i32
    return %c0_i32, %c0_i32_0 : i32, i32
  }
  func.func @transform_13(%arg0: i32) -> (i32, i32, i32) {
    %c0_i32 = arith.constant 0 : i32
    %c0_i32_0 = arith.constant 0 : i32
    %c0_i32_1 = arith.constant 0 : i32
    return %arg0, %c0_i32, %c0_i32_0 : i32, i32, i32
  }
}

</mosaic_0001>

<llo_original>
// kernel: gelayer_down_pallas.1
$region0: #{gelayer_down_pallas.1}
  #allocation0 [shape = 'u32[]', space=smem, size = 0x4, offset = 0x4, fixed_abs, tag = 'smem constant byte address 0x4 - core index']
  #allocation1 [shape = 'u32[144,128]{1,0:T(1,128)}', space=vmem, size = 0x12000, scoped, tag = 'internal scratch']
  #allocation2 [shape = 'f32[4,24,100]{2,1,0:T(8,128)}', space=vmem, size = 0xc000, scoped, tag = 'scratch operand']
  #allocation3 [shape = 'f32[24,110]{1,0:T(8,128)}', space=vmem, size = 0x3000, scoped, tag = 'scratch operand']
  %s0 = inlined_call_operand.vmem [shape: f32[2,4,4,100], index: 0, kind: input, shape index: {}]
  %s1 = inlined_call_operand.vmem [shape: f32[1,80], index: 1, kind: input, shape index: {}]
  %s2 = inlined_call_operand.vmem [shape: f32[9,24,4], index: 2, kind: input, shape index: {}]
  %s3 = inlined_call_operand.vmem [shape: f32[24,1], index: 3, kind: input, shape index: {}]
  %s4 = inlined_call_operand.vmem [shape: f32[24,9], index: 4, kind: input, shape index: {}]
  %s5 = inlined_call_operand.vmem [shape: f32[24,1], index: 5, kind: input, shape index: {}]
  %s6 = inlined_call_operand.vmem [shape: f32[24,9], index: 6, kind: input, shape index: {}]
  %s7 = inlined_call_operand.vmem [shape: f32[24,1], index: 7, kind: input, shape index: {}]
  %s8 = inlined_call_operand.vmem [shape: f32[8,24], index: 8, kind: input, shape index: {}]
  %s9 = inlined_call_operand.vmem [shape: f32[4,9], index: 9, kind: input, shape index: {}]
  %s10 = inlined_call_operand.vmem [shape: f32[4,1], index: 10, kind: input, shape index: {}]
  %s11 = inlined_call_operand.vmem [shape: f32[8,4], index: 11, kind: input, shape index: {}]
  %s12 = inlined_call_operand.vmem [shape: f32[8,1], index: 12, kind: input, shape index: {}]
  %s13 = inlined_call_operand.vmem [shape: f32[2,8,80], index: 13, kind: output, shape index: {}]
  %s14 = sld [smem:[#allocation0]]
  $region85: #{gelayer_down_pallas.1} parent=0
    _
  %s16 = ssub.s32 1, %s14
  %s17 = scalar_select 0, %s16, %s14
  loop: start=0, step=1, limit=4
  $region2: #{gelayer_down_pallas.1} parent=0 // loop_pre_header
    _
  $region3: #{gelayer_down_pallas.1} parent=0 // loop_header
    %s19 = sphi 0, %s23
    %p20 = scmp.ge.s32.totalorder %s19, 4
    %s29 = sphi 0, %s31
    %s32 = sphi 0, %s29
    %s33 = sphi 0, %s32
    %s49 = sphi 0, %s33
    %s53 = sphi 0, %s53
    %s55 = sphi 0, %s53
    %s56 = sphi 0, %s55
    %s70 = sphi 0, %s56
    %s74 = sphi 0, %s74
    %s76 = sphi 0, %s74
    %s77 = sphi 0, %s76
    %s91 = sphi 0, %s77
    %s95 = sphi 0, %s95
    %s97 = sphi 0, %s95
    %s98 = sphi 0, %s97
    %s112 = sphi 0, %s98
    %s116 = sphi 0, %s116
    %s118 = sphi 0, %s116
    %s119 = sphi 0, %s118
    %s133 = sphi 0, %s119
    %s137 = sphi 0, %s137
    %s139 = sphi 0, %s137
    %s140 = sphi 0, %s139
    %s154 = sphi 0, %s140
    %s158 = sphi 0, %s158
    %s160 = sphi 0, %s158
    %s161 = sphi 0, %s160
    %s175 = sphi 0, %s161
    %s179 = sphi 0, %s179
    %s181 = sphi 0, %s179
    %s182 = sphi 0, %s181
    %s196 = sphi 0, %s182
    %s200 = sphi 0, %s200
    %s202 = sphi 0, %s200
    %s203 = sphi 0, %s202
    %s217 = sphi 0, %s203
    %s221 = sphi 0, %s221
    %s223 = sphi 0, %s221
    %s224 = sphi 0, %s223
    %s238 = sphi 0, %s224
    %s242 = sphi 0, %s242
    %s244 = sphi 0, %s242
    %s245 = sphi 0, %s244
    %s259 = sphi 0, %s245
    %s263 = sphi 0, %s263
    %s265 = sphi 0, %s263
    %s266 = sphi 0, %s265
    %s280 = sphi 0, %s266
    %s284 = sphi 0, %s284
    %s286 = sphi 0, %s284
    %s287 = sphi 0, %s286
    %s301 = sphi 0, %s287
    %s307 = sphi 0, %s309
    %s310 = sphi 0, %s307
    %s311 = sphi 0, %s310
    %s327 = sphi 0, %s311
  $region4: #{gelayer_down_pallas.1} parent=0 // loop_header_branch
    %22 = sbr.rel (%p20) target = $region8
  $region5: #{gelayer_down_pallas.1} parent=0 // loop_body
    %s24 = ssub.s32 %s19, 1
    %s25 = ssub.s32 %s19, 2
    %s26 = sadd.s32 %s19, 1
    %s27 = ssub.s32 %s19, %s26
    %p28 = scmp.eq.s32.totalorder %s27, 0
    %s30 = sadd.s32 %s29, 1
    %s31 = scalar_select %p28, %s29, %s30
    %p34 = pneg %p28
    %p35 = scmp.eq.s32.totalorder %s19, 1
    %p36 = por %p34, %p35
    %p37 = scmp.ne.s32.totalorder %s29, %s32
    %p38 = scmp.eq.s32.totalorder %s19, 0
    %p39 = por %p37, %p38
    %p40 = scmp.ne.s32.totalorder %s29, %s32
    %p41 = scmp.eq.s32.totalorder %s24, 1
    %p42 = por %p40, %p41
    %p43 = scmp.ne.s32.totalorder %s32, %s33
    %p44 = scmp.eq.s32.totalorder %s24, 0
    %p45 = por %p43, %p44
    %p46 = scmp.ne.s32.totalorder %s32, %s33
    %p47 = scmp.eq.s32.totalorder %s25, 1
    %p48 = por %p46, %p47
    %p50 = scmp.ne.s32.totalorder %s33, %s49
    %p51 = scmp.eq.s32.totalorder %s25, 0
    %p52 = por %p50, %p51
    %s54 = sadd.s32 %s53, 1
    %p57 = scmp.eq.s32.totalorder %s19, 1
    %p58 = scmp.ne.s32.totalorder %s53, %s55
    %p59 = scmp.eq.s32.totalorder %s19, 0
    %p60 = por %p58, %p59
    %p61 = scmp.ne.s32.totalorder %s53, %s55
    %p62 = scmp.eq.s32.totalorder %s24, 1
    %p63 = por %p61, %p62
    %p64 = scmp.ne.s32.totalorder %s55, %s56
    %p65 = scmp.eq.s32.totalorder %s24, 0
    %p66 = por %p64, %p65
    %p67 = scmp.ne.s32.totalorder %s55, %s56
    %p68 = scmp.eq.s32.totalorder %s25, 1
    %p69 = por %p67, %p68
    %p71 = scmp.ne.s32.totalorder %s56, %s70
    %p72 = scmp.eq.s32.totalorder %s25, 0
    %p73 = por %p71, %p72
    %s75 = sadd.s32 %s74, 1
    %p78 = scmp.eq.s32.totalorder %s19, 1
    %p79 = scmp.ne.s32.totalorder %s74, %s76
    %p80 = scmp.eq.s32.totalorder %s19, 0
    %p81 = por %p79, %p80
    %p82 = scmp.ne.s32.totalorder %s74, %s76
    %p83 = scmp.eq.s32.totalorder %s24, 1
    %p84 = por %p82, %p83
    %p85 = scmp.ne.s32.totalorder %s76, %s77
    %p86 = scmp.eq.s32.totalorder %s24, 0
    %p87 = por %p85, %p86
    %p88 = scmp.ne.s32.totalorder %s76, %s77
    %p89 = scmp.eq.s32.totalorder %s25, 1
    %p90 = por %p88, %p89
    %p92 = scmp.ne.s32.totalorder %s77, %s91
    %p93 = scmp.eq.s32.totalorder %s25, 0
    %p94 = por %p92, %p93
    %s96 = sadd.s32 %s95, 1
    %p99 = scmp.eq.s32.totalorder %s19, 1
    %p100 = scmp.ne.s32.totalorder %s95, %s97
    %p101 = scmp.eq.s32.totalorder %s19, 0
    %p102 = por %p100, %p101
    %p103 = scmp.ne.s32.totalorder %s95, %s97
    %p104 = scmp.eq.s32.totalorder %s24, 1
    %p105 = por %p103, %p104
    %p106 = scmp.ne.s32.totalorder %s97, %s98
    %p107 = scmp.eq.s32.totalorder %s24, 0
    %p108 = por %p106, %p107
    %p109 = scmp.ne.s32.totalorder %s97, %s98
    %p110 = scmp.eq.s32.totalorder %s25, 1
    %p111 = por %p109, %p110
    %p113 = scmp.ne.s32.totalorder %s98, %s112
    %p114 = scmp.eq.s32.totalorder %s25, 0
    %p115 = por %p113, %p114
    %s117 = sadd.s32 %s116, 1
    %p120 = scmp.eq.s32.totalorder %s19, 1
    %p121 = scmp.ne.s32.totalorder %s116, %s118
    %p122 = scmp.eq.s32.totalorder %s19, 0
    %p123 = por %p121, %p122
    %p124 = scmp.ne.s32.totalorder %s116, %s118
    %p125 = scmp.eq.s32.totalorder %s24, 1
    %p126 = por %p124, %p125
    %p127 = scmp.ne.s32.totalorder %s118, %s119
    %p128 = scmp.eq.s32.totalorder %s24, 0
    %p129 = por %p127, %p128
    %p130 = scmp.ne.s32.totalorder %s118, %s119
    %p131 = scmp.eq.s32.totalorder %s25, 1
    %p132 = por %p130, %p131
    %p134 = scmp.ne.s32.totalorder %s119, %s133
    %p135 = scmp.eq.s32.totalorder %s25, 0
    %p136 = por %p134, %p135
    %s138 = sadd.s32 %s137, 1
    %p141 = scmp.eq.s32.totalorder %s19, 1
    %p142 = scmp.ne.s32.totalorder %s137, %s139
    %p143 = scmp.eq.s32.totalorder %s19, 0
    %p144 = por %p142, %p143
    %p145 = scmp.ne.s32.totalorder %s137, %s139
    %p146 = scmp.eq.s32.totalorder %s24, 1
    %p147 = por %p145, %p146
    %p148 = scmp.ne.s32.totalorder %s139, %s140
    %p149 = scmp.eq.s32.totalorder %s24, 0
    %p150 = por %p148, %p149
    %p151 = scmp.ne.s32.totalorder %s139, %s140
    %p152 = scmp.eq.s32.totalorder %s25, 1
    %p153 = por %p151, %p152
    %p155 = scmp.ne.s32.totalorder %s140, %s154
    %p156 = scmp.eq.s32.totalorder %s25, 0
    %p157 = por %p155, %p156
    %s159 = sadd.s32 %s158, 1
    %p162 = scmp.eq.s32.totalorder %s19, 1
    %p163 = scmp.ne.s32.totalorder %s158, %s160
    %p164 = scmp.eq.s32.totalorder %s19, 0
    %p165 = por %p163, %p164
    %p166 = scmp.ne.s32.totalorder %s158, %s160
    %p167 = scmp.eq.s32.totalorder %s24, 1
    %p168 = por %p166, %p167
    %p169 = scmp.ne.s32.totalorder %s160, %s161
    %p170 = scmp.eq.s32.totalorder %s24, 0
    %p171 = por %p169, %p170
    %p172 = scmp.ne.s32.totalorder %s160, %s161
    %p173 = scmp.eq.s32.totalorder %s25, 1
    %p174 = por %p172, %p173
    %p176 = scmp.ne.s32.totalorder %s161, %s175
    %p177 = scmp.eq.s32.totalorder %s25, 0
    %p178 = por %p176, %p177
    %s180 = sadd.s32 %s179, 1
    %p183 = scmp.eq.s32.totalorder %s19, 1
    %p184 = scmp.ne.s32.totalorder %s179, %s181
    %p185 = scmp.eq.s32.totalorder %s19, 0
    %p186 = por %p184, %p185
    %p187 = scmp.ne.s32.totalorder %s179, %s181
    %p188 = scmp.eq.s32.totalorder %s24, 1
    %p189 = por %p187, %p188
    %p190 = scmp.ne.s32.totalorder %s181, %s182
    %p191 = scmp.eq.s32.totalorder %s24, 0
    %p192 = por %p190, %p191
    %p193 = scmp.ne.s32.totalorder %s181, %s182
    %p194 = scmp.eq.s32.totalorder %s25, 1
    %p195 = por %p193, %p194
    %p197 = scmp.ne.s32.totalorder %s182, %s196
    %p198 = scmp.eq.s32.totalorder %s25, 0
    %p199 = por %p197, %p198
    %s201 = sadd.s32 %s200, 1
    %p204 = scmp.eq.s32.totalorder %s19, 1
    %p205 = scmp.ne.s32.totalorder %s200, %s202
    %p206 = scmp.eq.s32.totalorder %s19, 0
    %p207 = por %p205, %p206
    %p208 = scmp.ne.s32.totalorder %s200, %s202
    %p209 = scmp.eq.s32.totalorder %s24, 1
    %p210 = por %p208, %p209
    %p211 = scmp.ne.s32.totalorder %s202, %s203
    %p212 = scmp.eq.s32.totalorder %s24, 0
    %p213 = por %p211, %p212
    %p214 = scmp.ne.s32.totalorder %s202, %s203
    %p215 = scmp.eq.s32.totalorder %s25, 1
    %p216 = por %p214, %p215
    %p218 = scmp.ne.s32.totalorder %s203, %s217
    %p219 = scmp.eq.s32.totalorder %s25, 0
    %p220 = por %p218, %p219
    %s222 = sadd.s32 %s221, 1
    %p225 = scmp.eq.s32.totalorder %s19, 1
    %p226 = scmp.ne.s32.totalorder %s221, %s223
    %p227 = scmp.eq.s32.totalorder %s19, 0
    %p228 = por %p226, %p227
    %p229 = scmp.ne.s32.totalorder %s221, %s223
    %p230 = scmp.eq.s32.totalorder %s24, 1
    %p231 = por %p229, %p230
    %p232 = scmp.ne.s32.totalorder %s223, %s224
    %p233 = scmp.eq.s32.totalorder %s24, 0
    %p234 = por %p232, %p233
    %p235 = scmp.ne.s32.totalorder %s223, %s224
    %p236 = scmp.eq.s32.totalorder %s25, 1
    %p237 = por %p235, %p236
    %p239 = scmp.ne.s32.totalorder %s224, %s238
    %p240 = scmp.eq.s32.totalorder %s25, 0
    %p241 = por %p239, %p240
    %s243 = sadd.s32 %s242, 1
    %p246 = scmp.eq.s32.totalorder %s19, 1
    %p247 = scmp.ne.s32.totalorder %s242, %s244
    %p248 = scmp.eq.s32.totalorder %s19, 0
    %p249 = por %p247, %p248
    %p250 = scmp.ne.s32.totalorder %s242, %s244
    %p251 = scmp.eq.s32.totalorder %s24, 1
    %p252 = por %p250, %p251
    %p253 = scmp.ne.s32.totalorder %s244, %s245
    %p254 = scmp.eq.s32.totalorder %s24, 0
    %p255 = por %p253, %p254
    %p256 = scmp.ne.s32.totalorder %s244, %s245
    %p257 = scmp.eq.s32.totalorder %s25, 1
    %p258 = por %p256, %p257
    %p260 = scmp.ne.s32.totalorder %s245, %s259
    %p261 = scmp.eq.s32.totalorder %s25, 0
    %p262 = por %p260, %p261
    %s264 = sadd.s32 %s263, 1
    %p267 = scmp.eq.s32.totalorder %s19, 1
    %p268 = scmp.ne.s32.totalorder %s263, %s265
    %p269 = scmp.eq.s32.totalorder %s19, 0
    %p270 = por %p268, %p269
    %p271 = scmp.ne.s32.totalorder %s263, %s265
    %p272 = scmp.eq.s32.totalorder %s24, 1
    %p273 = por %p271, %p272
    %p274 = scmp.ne.s32.totalorder %s265, %s266
    %p275 = scmp.eq.s32.totalorder %s24, 0
    %p276 = por %p274, %p275
    %p277 = scmp.ne.s32.totalorder %s265, %s266
    %p278 = scmp.eq.s32.totalorder %s25, 1
    %p279 = por %p277, %p278
    %p281 = scmp.ne.s32.totalorder %s266, %s280
    %p282 = scmp.eq.s32.totalorder %s25, 0
    %p283 = por %p281, %p282
    %s285 = sadd.s32 %s284, 1
    %p288 = scmp.eq.s32.totalorder %s19, 1
    %p289 = scmp.ne.s32.totalorder %s284, %s286
    %p290 = scmp.eq.s32.totalorder %s19, 0
    %p291 = por %p289, %p290
    %p292 = scmp.ne.s32.totalorder %s284, %s286
    %p293 = scmp.eq.s32.totalorder %s24, 1
    %p294 = por %p292, %p293
    %p295 = scmp.ne.s32.totalorder %s286, %s287
    %p296 = scmp.eq.s32.totalorder %s24, 0
    %p297 = por %p295, %p296
    %p298 = scmp.ne.s32.totalorder %s286, %s287
    %p299 = scmp.eq.s32.totalorder %s25, 1
    %p300 = por %p298, %p299
    %p302 = scmp.ne.s32.totalorder %s287, %s301
    %p303 = scmp.eq.s32.totalorder %s25, 0
    %p304 = por %p302, %p303
    %s305 = ssub.s32 %s19, %s26
    %p306 = scmp.eq.s32.totalorder %s305, 0
    %s308 = sadd.s32 %s307, 1
    %s309 = scalar_select %p306, %s307, %s308
    %p312 = pneg %p306
    %p313 = scmp.eq.s32.totalorder %s19, 1
    %p314 = por %p312, %p313
    %p315 = scmp.ne.s32.totalorder %s307, %s310
    %p316 = scmp.eq.s32.totalorder %s19, 0
    %p317 = por %p315, %p316
    %p318 = scmp.ne.s32.totalorder %s307, %s310
    %p319 = scmp.eq.s32.totalorder %s24, 1
    %p320 = por %p318, %p319
    %p321 = scmp.ne.s32.totalorder %s310, %s311
    %p322 = scmp.eq.s32.totalorder %s24, 0
    %p323 = por %p321, %p322
    %p324 = scmp.ne.s32.totalorder %s310, %s311
    %p325 = scmp.eq.s32.totalorder %s25, 1
    %p326 = por %p324, %p325
    %p328 = scmp.ne.s32.totalorder %s311, %s327
    %p329 = scmp.eq.s32.totalorder %s25, 0
    %p330 = por %p328, %p329
    %p331 = scmp.le.s32.totalorder 1, %s19
    %p332 = scmp.lt.s32.totalorder %s19, 3
    %p333 = pnand %p331, %p332
    %p334 = pneg %p333
    // Predicated region
    $region9: #{gelayer_down_pallas.1} parent=5 // pred_check
      _
    $region10: #{gelayer_down_pallas.1} parent=5 // pred_check_branch
      %336 = sbr.rel (%p333) target = $region12
    $region11: #{gelayer_down_pallas.1} parent=5 // pred_region
      %s337 = ssub.s32 %s19, 1
      // Predicated region
      $region13: #{gelayer_down_pallas.1} parent=11 // pred_check
        %p338 = pneg %p66
      $region14: #{gelayer_down_pallas.1} parent=11 // pred_check_branch
        %340 = sbr.rel (%p338) target = $region16
      $region15: #{gelayer_down_pallas.1} parent=11 // pred_region
        _
      $region16: #{gelayer_down_pallas.1} parent=11 // pred_fallthru
        _
      // Predicated region
      $region17: #{gelayer_down_pallas.1} parent=11 // pred_check
        %p341 = pneg %p87
      $region18: #{gelayer_down_pallas.1} parent=11 // pred_check_branch
        %343 = sbr.rel (%p341) target = $region20
      $region19: #{gelayer_down_pallas.1} parent=11 // pred_region
        _
      $region20: #{gelayer_down_pallas.1} parent=11 // pred_fallthru
        _
      // Predicated region
      $region21: #{gelayer_down_pallas.1} parent=11 // pred_check
        %p344 = pneg %p108
      $region22: #{gelayer_down_pallas.1} parent=11 // pred_check_branch
        %346 = sbr.rel (%p344) target = $region24
      $region23: #{gelayer_down_pallas.1} parent=11 // pred_region
        _
      $region24: #{gelayer_down_pallas.1} parent=11 // pred_fallthru
        _
      // Predicated region
      $region25: #{gelayer_down_pallas.1} parent=11 // pred_check
        %p347 = pneg %p129
      $region26: #{gelayer_down_pallas.1} parent=11 // pred_check_branch
        %349 = sbr.rel (%p347) target = $region28
      $region27: #{gelayer_down_pallas.1} parent=11 // pred_region
        _
      $region28: #{gelayer_down_pallas.1} parent=11 // pred_fallthru
        _
      // Predicated region
      $region29: #{gelayer_down_pallas.1} parent=11 // pred_check
        %p350 = pneg %p150
      $region30: #{gelayer_down_pallas.1} parent=11 // pred_check_branch
        %352 = sbr.rel (%p350) target = $region32
      $region31: #{gelayer_down_pallas.1} parent=11 // pred_region
        _
      $region32: #{gelayer_down_pallas.1} parent=11 // pred_fallthru
        _
      // Predicated region
      $region33: #{gelayer_down_pallas.1} parent=11 // pred_check
        %p353 = pneg %p171
      $region34: #{gelayer_down_pallas.1} parent=11 // pred_check_branch
        %355 = sbr.rel (%p353) target = $region36
      $region35: #{gelayer_down_pallas.1} parent=11 // pred_region
        _
      $region36: #{gelayer_down_pallas.1} parent=11 // pred_fallthru
        _
      // Predicated region
      $region37: #{gelayer_down_pallas.1} parent=11 // pred_check
        %p356 = pneg %p192
      $region38: #{gelayer_down_pallas.1} parent=11 // pred_check_branch
        %358 = sbr.rel (%p356) target = $region40
      $region39: #{gelayer_down_pallas.1} parent=11 // pred_region
        _
      $region40: #{gelayer_down_pallas.1} parent=11 // pred_fallthru
        _
      // Predicated region
      $region41: #{gelayer_down_pallas.1} parent=11 // pred_check
        %p359 = pneg %p213
      $region42: #{gelayer_down_pallas.1} parent=11 // pred_check_branch
        %361 = sbr.rel (%p359) target = $region44
      $region43: #{gelayer_down_pallas.1} parent=11 // pred_region
        _
      $region44: #{gelayer_down_pallas.1} parent=11 // pred_fallthru
        _
      // Predicated region
      $region45: #{gelayer_down_pallas.1} parent=11 // pred_check
        %p362 = pneg %p234
      $region46: #{gelayer_down_pallas.1} parent=11 // pred_check_branch
        %364 = sbr.rel (%p362) target = $region48
      $region47: #{gelayer_down_pallas.1} parent=11 // pred_region
        _
      $region48: #{gelayer_down_pallas.1} parent=11 // pred_fallthru
        _
      // Predicated region
      $region49: #{gelayer_down_pallas.1} parent=11 // pred_check
        %p365 = pneg %p255
      $region50: #{gelayer_down_pallas.1} parent=11 // pred_check_branch
        %367 = sbr.rel (%p365) target = $region52
      $region51: #{gelayer_down_pallas.1} parent=11 // pred_region
        _
      $region52: #{gelayer_down_pallas.1} parent=11 // pred_fallthru
        _
      // Predicated region
      $region53: #{gelayer_down_pallas.1} parent=11 // pred_check
        %p368 = pneg %p276
      $region54: #{gelayer_down_pallas.1} parent=11 // pred_check_branch
        %370 = sbr.rel (%p368) target = $region56
      $region55: #{gelayer_down_pallas.1} parent=11 // pred_region
        _
      $region56: #{gelayer_down_pallas.1} parent=11 // pred_fallthru
        _
      // Predicated region
      $region57: #{gelayer_down_pallas.1} parent=11 // pred_check
        %p371 = pneg %p297
      $region58: #{gelayer_down_pallas.1} parent=11 // pred_check_branch
        %373 = sbr.rel (%p371) target = $region60
      $region59: #{gelayer_down_pallas.1} parent=11 // pred_region
        _
      $region60: #{gelayer_down_pallas.1} parent=11 // pred_fallthru
        _
    $region12: #{gelayer_down_pallas.1} parent=5 // pred_fallthru
      _
    %p374 = scmp.lt.s32.totalorder %s19, 2
    // Predicated region
    $region61: #{gelayer_down_pallas.1} parent=5 // pred_check
      %p375 = pneg %p374
    $region62: #{gelayer_down_pallas.1} parent=5 // pred_check_branch
      %377 = sbr.rel (%p375) target = $region64
    $region63: #{gelayer_down_pallas.1} parent=5 // pred_region
      // Predicated region
      $region65: #{gelayer_down_pallas.1} parent=63 // pred_check
        %p378 = pneg %p39
      $region66: #{gelayer_down_pallas.1} parent=63 // pred_check_branch
        %380 = sbr.rel (%p378) target = $region68
      $region67: #{gelayer_down_pallas.1} parent=63 // pred_region
        %p381 = scmp.lt.s32.totalorder %s19, 1
        %s382 = scalar_select %p381, %s19, 1
        %s383 = smul.addr %s382, 4
        %s384 = smul.addr %s383, 4
        %s385 = scalar_lea.vmem %s0, %s384
      $region68: #{gelayer_down_pallas.1} parent=63 // pred_fallthru
        _
    $region64: #{gelayer_down_pallas.1} parent=5 // pred_fallthru
      _
    %p386 = scmp.le.s32.totalorder 1, %s19
    %p387 = scmp.lt.s32.totalorder %s19, 3
    %p388 = pnand %p386, %p387
    %p389 = pneg %p388
    // Predicated region
    $region69: #{gelayer_down_pallas.1} parent=5 // pred_check
      _
    $region70: #{gelayer_down_pallas.1} parent=5 // pred_check_branch
      %391 = sbr.rel (%p388) target = $region72
    $region71: #{gelayer_down_pallas.1} parent=5 // pred_region
      %s392 = ssub.s32 %s19, 1
      %p393 = scmp.lt.s32.totalorder %s24, 1
      %s394 = scalar_select %p393, %s24, 1
      %s395 = smul.addr %s394, 4
      %s396 = smul.addr %s395, 4
      %s397 = scalar_lea.vmem %s0, %s396
      %p398 = pneg %p45
      %p399 = pneg %p42
      %p400 = pneg %p66
      %p401 = pneg %p63
      %p402 = pneg %p87
      %p403 = pneg %p84
      %p404 = pneg %p108
      %p405 = pneg %p105
      %p406 = pneg %p129
      %p407 = pneg %p126
      %p408 = pneg %p150
      %p409 = pneg %p147
      %p410 = pneg %p171
      %p411 = pneg %p168
      %p412 = pneg %p192
      %p413 = pneg %p189
      %p414 = pneg %p213
      %p415 = pneg %p210
      %p416 = pneg %p234
      %p417 = pneg %p231
      %p418 = pneg %p255
      %p419 = pneg %p252
      %p420 = pneg %p276
      %p421 = pneg %p273
      %p422 = pneg %p297
      %p423 = pneg %p294
      %p424 = pneg %p323
      %p425 = pneg %p320
      %p426 = scmp.lt.s32.totalorder %s24, 1
      %s427 = scalar_select %p426, %s24, 1
      %s428 = smul.addr %s427, 8
      %s429 = scalar_lea.vmem %s13, %s428
      %p430 = scmp.lt.s32.totalorder %s24, 1
      %s431 = scalar_select %p430, %s24, 1
      %s432 = smul.addr %s431, 4
      %s433 = smul.addr %s432, 4
      %s434 = scalar_lea.vmem %s0, %s433
      %p435 = scmp.lt.s32.totalorder %s24, 1
      %s436 = scalar_select %p435, %s24, 1
      %s437 = smul.addr %s436, 8
      %s438 = scalar_lea.vmem %s13, %s437
      %v439 = vld [vmem:[%s1] sm:$0x1]
      %vm440 = vcmp.gt.f32.partialorder %v439, 0.5
      %v441 = vld [vmem:[%s2] sm:$0xff]
      %v442 = vld [vmem:[%s2 + $0x8] sm:$0xff]
      %v443 = vld [vmem:[%s2 + $0x10] sm:$0xff]
      %v444 = vld [vmem:[%s2 + $0x18] sm:$0xff]
      %v445 = vld [vmem:[%s2 + $0x20] sm:$0xff]
      %v446 = vld [vmem:[%s2 + $0x28] sm:$0xff]
      %v447 = vld [vmem:[%s2 + $0x30] sm:$0xff]
      %v448 = vld [vmem:[%s2 + $0x38] sm:$0xff]
      %v449 = vld [vmem:[%s2 + $0x40] sm:$0xff]
      %v450 = vld [vmem:[%s2 + $0x48] sm:$0xff]
      %v451 = vld [vmem:[%s2 + $0x50] sm:$0xff]
      %v452 = vld [vmem:[%s2 + $0x58] sm:$0xff]
      %v453 = vld [vmem:[%s2 + $0x60] sm:$0xff]
      %v454 = vld [vmem:[%s2 + $0x68] sm:$0xff]
      %v455 = vld [vmem:[%s2 + $0x70] sm:$0xff]
      %v456 = vld [vmem:[%s2 + $0x78] sm:$0xff]
      %v457 = vld [vmem:[%s2 + $0x80] sm:$0xff]
      %v458 = vld [vmem:[%s2 + $0x88] sm:$0xff]
      %v459 = vld [vmem:[%s2 + $0x90] sm:$0xff]
      %v460 = vld [vmem:[%s2 + $0x98] sm:$0xff]
      %v461 = vld [vmem:[%s2 + $0xa0] sm:$0xff]
      %v462 = vld [vmem:[%s2 + $0xa8] sm:$0xff]
      %v463 = vld [vmem:[%s2 + $0xb0] sm:$0xff]
      %v464 = vld [vmem:[%s2 + $0xb8] sm:$0xff]
      %v465 = vld [vmem:[%s2 + $0xc0] sm:$0xff]
      %v466 = vld [vmem:[%s2 + $0xc8] sm:$0xff]
      %v467 = vld [vmem:[%s2 + $0xd0] sm:$0xff]
      %v468 = vld [vmem:[%s3] sm:$0xff]
      %v469 = vld [vmem:[%s3 + $0x8] sm:$0xff]
      %v470 = vld [vmem:[%s3 + $0x10] sm:$0xff]
      %v471 = vld [vmem:[%s4] sm:$0xff]
      %v472 = vld [vmem:[%s4 + $0x8] sm:$0xff]
      %v473 = vld [vmem:[%s4 + $0x10] sm:$0xff]
      %v474 = vld [vmem:[%s5] sm:$0xff]
      %v475 = vld [vmem:[%s5 + $0x8] sm:$0xff]
      %v476 = vld [vmem:[%s5 + $0x10] sm:$0xff]
      %v477 = vld [vmem:[%s6] sm:$0xff]
      %v478 = vld [vmem:[%s6 + $0x8] sm:$0xff]
      %v479 = vld [vmem:[%s6 + $0x10] sm:$0xff]
      %v480 = vld [vmem:[%s7] sm:$0xff]
      %v481 = vld [vmem:[%s7 + $0x8] sm:$0xff]
      %v482 = vld [vmem:[%s7 + $0x10] sm:$0xff]
      %v483 = vld [vmem:[%s8] sm:$0xff]
      %v484 = vld [vmem:[%s9] sm:$0xf]
      %v485 = vld [vmem:[%s10] sm:$0xf]
      %v486 = vld [vmem:[%s11] sm:$0xff]
      %v487 = vld [vmem:[%s12] sm:$0xff]
      %vm488 = vcmask 89088
      %489 = vst.msk [vmem:[#allocation2] sm:$0xff] %vm488, 0.0
      %490 = vst.msk [vmem:[#allocation2 + $0x8] sm:$0xff] %vm488, 0.0
      %491 = vst.msk [vmem:[#allocation2 + $0x10] sm:$0xff] %vm488, 0.0
      %vm492 = vcmask 736896
      %493 = vst.msk [vmem:[#allocation2] sm:$0xff] %vm492, 0.0
      %494 = vst.msk [vmem:[#allocation2 + $0x8] sm:$0xff] %vm492, 0.0
      %495 = vst.msk [vmem:[#allocation2 + $0x10] sm:$0xff] %vm492, 0.0
      %s496 = scalar_lea.vmem [#allocation2], 24
      %497 = vst.msk [vmem:[%s496] sm:$0xff] %vm488, 0.0
      %498 = vst.msk [vmem:[%s496 + $0x8] sm:$0xff] %vm488, 0.0
      %499 = vst.msk [vmem:[%s496 + $0x10] sm:$0xff] %vm488, 0.0
      %500 = vst.msk [vmem:[%s496] sm:$0xff] %vm492, 0.0
      %501 = vst.msk [vmem:[%s496 + $0x8] sm:$0xff] %vm492, 0.0
      %502 = vst.msk [vmem:[%s496 + $0x10] sm:$0xff] %vm492, 0.0
      %s503 = scalar_lea.vmem [#allocation2], 48
      %504 = vst.msk [vmem:[%s503] sm:$0xff] %vm488, 0.0
      %505 = vst.msk [vmem:[%s503 + $0x8] sm:$0xff] %vm488, 0.0
      %506 = vst.msk [vmem:[%s503 + $0x10] sm:$0xff] %vm488, 0.0
      %507 = vst.msk [vmem:[%s503] sm:$0xff] %vm492, 0.0
      %508 = vst.msk [vmem:[%s503 + $0x8] sm:$0xff] %vm492, 0.0
      %509 = vst.msk [vmem:[%s503 + $0x10] sm:$0xff] %vm492, 0.0
      %s510 = scalar_lea.vmem [#allocation2], 72
      %511 = vst.msk [vmem:[%s510] sm:$0xff] %vm488, 0.0
      %512 = vst.msk [vmem:[%s510 + $0x8] sm:$0xff] %vm488, 0.0
      %513 = vst.msk [vmem:[%s510 + $0x10] sm:$0xff] %vm488, 0.0
      %514 = vst.msk [vmem:[%s510] sm:$0xff] %vm492, 0.0
      %515 = vst.msk [vmem:[%s510 + $0x8] sm:$0xff] %vm492, 0.0
      %516 = vst.msk [vmem:[%s510 + $0x10] sm:$0xff] %vm492, 0.0
      %517 = vst.msk [vmem:[#allocation3] sm:$0xff] %vm488, 0.0
      %518 = vst.msk [vmem:[#allocation3 + $0x8] sm:$0xff] %vm488, 0.0
      %519 = vst.msk [vmem:[#allocation3 + $0x10] sm:$0xff] %vm488, 0.0
      %vm520 = vcmask 818896
      %521 = vst.msk [vmem:[#allocation3] sm:$0xff] %vm520, 0.0
      %522 = vst.msk [vmem:[#allocation3 + $0x8] sm:$0xff] %vm520, 0.0
      %523 = vst.msk [vmem:[#allocation3 + $0x10] sm:$0xff] %vm520, 0.0
      %v524 = vld [vmem:[%s434] sm:$0xf]
      %s525 = scalar_lea.vmem %s434, 4
      %v526 = vld [vmem:[%s525] sm:$0xf]
      %vm527 = vcmask 31744
      %v529 = vsel %vm527, %v444, 0
      %v532 = vsel %vm527, %v445, 0
      %v535 = vsel %vm527, %v446, 0
      %vm537 = vcmask 1043456
      %v539 = vsel %vm537, %v526, 0
      %541 = vmatprep.subr.mxu0 0.0
      %542 = vmatpush1.msra.mxu0 %v539
      %543 = vmatprep.subr.mxu0 0.0
      %544 = vmatpush1.msra.mxu0 0.0
      %545 = vmatprep.subr.mxu0 0.0
      %546 = vmatpush1.msra.mxu0 0.0
      %547 = vmatprep.subr.mxu0 0.0
      %548 = vmatpush1.msra.mxu0 0.0
      %549 = vmatprep.subr.mxu0 0.0
      %550 = vmatpush1.msra.mxu0 0.0
      %551 = vmatprep.subr.mxu0 0.0
      %552 = vmatpush1.msra.mxu0 0.0
      %553 = vmatprep.subr.mxu0 0.0
      %554 = vmatpush1.msra.mxu0 0.0
      %555 = vmatprep.subr.mxu0 0.0
      %556 = vmatpush1.msra.mxu0 0.0
      %557 = vmatprep.subr.mxu0 0.0
      %558 = vmatpush1.msra.mxu0 0.0
      %559 = vmatprep.subr.mxu0 0.0
      %560 = vmatpush1.msra.mxu0 0.0
      %561 = vmatprep.subr.mxu0 0.0
      %562 = vmatpush1.msra.mxu0 0.0
      %563 = vmatprep.subr.mxu0 0.0
      %564 = vmatpush1.msra.mxu0 0.0
      %565 = vmatprep.subr.mxu0 0.0
      %566 = vmatpush1.msra.mxu0 0.0
      %567 = vmatprep.subr.mxu0 0.0
      %568 = vmatpush1.msra.mxu0 0.0
      %569 = vmatprep.subr.mxu0 0.0
      %570 = vmatpush1.msra.mxu0 0.0
      %571 = vmatprep.subr.mxu0 0.0
      %572 = vmatpush1.msra.mxu0 0.0
      %573 = vmatprep.subr.mxu0 0.0
      %574 = vmatpush1.msra.mxu0 0.0
      %575 = vmatprep.subr.mxu0 0.0
      %576 = vmatpush1.msra.mxu0 0.0
      %577 = vmatprep.subr.mxu0 0.0
      %578 = vmatpush1.msra.mxu0 0.0
      %579 = vmatprep.subr.mxu0 0.0
      %580 = vmatpush1.msra.mxu0 0.0
      %581 = vmatprep.subr.mxu0 0.0
      %582 = vmatpush1.msra.mxu0 0.0
      %583 = vmatprep.subr.mxu0 0.0
      %584 = vmatpush1.msra.mxu0 0.0
      %585 = vmatprep.subr.mxu0 0.0
      %586 = vmatpush1.msra.mxu0 0.0
      %587 = vmatprep.subr.mxu0 0.0
      %588 = vmatpush1.msra.mxu0 0.0
      %589 = vmatprep.subr.mxu0 0.0
      %590 = vmatpush1.msra.mxu0 0.0
      %591 = vmatprep.subr.mxu0 0.0
      %592 = vmatpush1.msra.mxu0 0.0
      %593 = vmatprep.subr.mxu0 0.0
      %594 = vmatpush1.msra.mxu0 0.0
      %595 = vmatprep.subr.mxu0 0.0
      %596 = vmatpush1.msra.mxu0 0.0
      %597 = vmatprep.subr.mxu0 0.0
      %598 = vmatpush1.msra.mxu0 0.0
      %599 = vmatprep.subr.mxu0 0.0
      %600 = vmatpush1.msra.mxu0 0.0
      %601 = vmatprep.subr.mxu0 0.0
      %602 = vmatpush1.msra.mxu0 0.0
      %603 = vmatprep.subr.mxu0 0.0
      %604 = vmatpush1.msra.mxu0 0.0
      %605 = vmatprep.mubr.f32.mxu0 0.0
      %606 = vmatmul.mubr.f32.gmra.mrb[0].mxu0 %v529
      %v607 = vpop.f32.mrb[0].mxu0
      %v608 = vadd.f32 0.0, %v607
      %v609 = vpop.f32.mrb[0].mxu0
      %610 = vmatprep.mubr.f32.mxu0 0.0
      %611 = vmatmul.mubr.f32.gmra.mrb[0].mxu0 %v532
      %v612 = vpop.f32.mrb[0].mxu0
      %v613 = vadd.f32 0.0, %v612
      %v614 = vpop.f32.mrb[0].mxu0
      %615 = vmatprep.mubr.f32.mxu0 0.0
      %616 = vmatmul.mubr.f32.gmra.mrb[0].mxu0 %v535
      %v617 = vpop.f32.mrb[0].mxu0
      %v618 = vadd.f32 0.0, %v617
      %v619 = vpop.f32.mrb[0].mxu0
      %620 = vdwg.mxu0
      %v622 = vsel %vm527, %v441, 0
      %v625 = vsel %vm527, %v442, 0
      %v628 = vsel %vm527, %v443, 0
      %v631 = vsel %vm537, %v524, 0
      %633 = vmatprep.subr.mxu0 0.0
      %634 = vmatpush1.msra.mxu0 %v631
      %635 = vmatprep.subr.mxu0 0.0
      %636 = vmatpush1.msra.mxu0 0.0
      %637 = vmatprep.subr.mxu0 0.0
      %638 = vmatpush1.msra.mxu0 0.0
      %639 = vmatprep.subr.mxu0 0.0
      %640 = vmatpush1.msra.mxu0 0.0
      %641 = vmatprep.subr.mxu0 0.0
      %642 = vmatpush1.msra.mxu0 0.0
      %643 = vmatprep.subr.mxu0 0.0
      %644 = vmatpush1.msra.mxu0 0.0
      %645 = vmatprep.subr.mxu0 0.0
      %646 = vmatpush1.msra.mxu0 0.0
      %647 = vmatprep.subr.mxu0 0.0
      %648 = vmatpush1.msra.mxu0 0.0
      %649 = vmatprep.subr.mxu0 0.0
      %650 = vmatpush1.msra.mxu0 0.0
      %651 = vmatprep.subr.mxu0 0.0
      %652 = vmatpush1.msra.mxu0 0.0
      %653 = vmatprep.subr.mxu0 0.0
      %654 = vmatpush1.msra.mxu0 0.0
      %655 = vmatprep.subr.mxu0 0.0
      %656 = vmatpush1.msra.mxu0 0.0
      %657 = vmatprep.subr.mxu0 0.0
      %658 = vmatpush1.msra.mxu0 0.0
      %659 = vmatprep.subr.mxu0 0.0
      %660 = vmatpush1.msra.mxu0 0.0
      %661 = vmatprep.subr.mxu0 0.0
      %662 = vmatpush1.msra.mxu0 0.0
      %663 = vmatprep.subr.mxu0 0.0
      %664 = vmatpush1.msra.mxu0 0.0
      %665 = vmatprep.subr.mxu0 0.0
      %666 = vmatpush1.msra.mxu0 0.0
      %667 = vmatprep.subr.mxu0 0.0
      %668 = vmatpush1.msra.mxu0 0.0
      %669 = vmatprep.subr.mxu0 0.0
      %670 = vmatpush1.msra.mxu0 0.0
      %671 = vmatprep.subr.mxu0 0.0
      %672 = vmatpush1.msra.mxu0 0.0
      %673 = vmatprep.subr.mxu0 0.0
      %674 = vmatpush1.msra.mxu0 0.0
      %675 = vmatprep.subr.mxu0 0.0
      %676 = vmatpush1.msra.mxu0 0.0
      %677 = vmatprep.subr.mxu0 0.0
      %678 = vmatpush1.msra.mxu0 0.0
      %679 = vmatprep.subr.mxu0 0.0
      %680 = vmatpush1.msra.mxu0 0.0
      %681 = vmatprep.subr.mxu0 0.0
      %682 = vmatpush1.msra.mxu0 0.0
      %683 = vmatprep.subr.mxu0 0.0
      %684 = vmatpush1.msra.mxu0 0.0
      %685 = vmatprep.subr.mxu0 0.0
      %686 = vmatpush1.msra.mxu0 0.0
      %687 = vmatprep.subr.mxu0 0.0
      %688 = vmatpush1.msra.mxu0 0.0
      %689 = vmatprep.subr.mxu0 0.0
      %690 = vmatpush1.msra.mxu0 0.0
      %691 = vmatprep.subr.mxu0 0.0
      %692 = vmatpush1.msra.mxu0 0.0
      %693 = vmatprep.subr.mxu0 0.0
      %694 = vmatpush1.msra.mxu0 0.0
      %695 = vmatprep.subr.mxu0 0.0
      %696 = vmatpush1.msra.mxu0 0.0
      %697 = vmatprep.mubr.f32.mxu0 0.0
      %698 = vmatmul.mubr.f32.gmra.mrb[0].mxu0 %v622
      %v699 = vpop.f32.mrb[0].mxu0
      %v700 = vadd.f32 %v608, %v699
      %v701 = vpop.f32.mrb[0].mxu0
      %702 = vmatprep.mubr.f32.mxu0 0.0
      %703 = vmatmul.mubr.f32.gmra.mrb[0].mxu0 %v625
      %v704 = vpop.f32.mrb[0].mxu0
      %v705 = vadd.f32 %v613, %v704
      %v706 = vpop.f32.mrb[0].mxu0
      %707 = vmatprep.mubr.f32.mxu0 0.0
      %708 = vmatmul.mubr.f32.gmra.mrb[0].mxu0 %v628
      %v709 = vpop.f32.mrb[0].mxu0
      %v710 = vadd.f32 %v618, %v709
      %v711 = vpop.f32.mrb[0].mxu0
      %712 = vdwg.mxu0
      %713 = vrot.lane.b32.xlu0 %v524, 127
      %v714 = vpop.permute.xlu0 %713
      %v716 = vsel %vm527, %v447, 0
      %v719 = vsel %vm527, %v448, 0
      %v722 = vsel %vm527, %v449, 0
      %v724 = vsel %vm537, %v714, 0
      %726 = vmatprep.subr.mxu0 0.0
      %727 = vmatpush1.msra.mxu0 %v724
      %728 = vmatprep.subr.mxu0 0.0
      %729 = vmatpush1.msra.mxu0 0.0
      %730 = vmatprep.subr.mxu0 0.0
      %731 = vmatpush1.msra.mxu0 0.0
      %732 = vmatprep.subr.mxu0 0.0
      %733 = vmatpush1.msra.mxu0 0.0
      %734 = vmatprep.subr.mxu0 0.0
      %735 = vmatpush1.msra.mxu0 0.0
      %736 = vmatprep.subr.mxu0 0.0
      %737 = vmatpush1.msra.mxu0 0.0
      %738 = vmatprep.subr.mxu0 0.0
      %739 = vmatpush1.msra.mxu0 0.0
      %740 = vmatprep.subr.mxu0 0.0
      %741 = vmatpush1.msra.mxu0 0.0
      %742 = vmatprep.subr.mxu0 0.0
      %743 = vmatpush1.msra.mxu0 0.0
      %744 = vmatprep.subr.mxu0 0.0
      %745 = vmatpush1.msra.mxu0 0.0
      %746 = vmatprep.subr.mxu0 0.0
      %747 = vmatpush1.msra.mxu0 0.0
      %748 = vmatprep.subr.mxu0 0.0
      %749 = vmatpush1.msra.mxu0 0.0
      %750 = vmatprep.subr.mxu0 0.0
      %751 = vmatpush1.msra.mxu0 0.0
      %752 = vmatprep.subr.mxu0 0.0
      %753 = vmatpush1.msra.mxu0 0.0
      %754 = vmatprep.subr.mxu0 0.0
      %755 = vmatpush1.msra.mxu0 0.0
      %756 = vmatprep.subr.mxu0 0.0
      %757 = vmatpush1.msra.mxu0 0.0
      %758 = vmatprep.subr.mxu0 0.0
      %759 = vmatpush1.msra.mxu0 0.0
      %760 = vmatprep.subr.mxu0 0.0
      %761 = vmatpush1.msra.mxu0 0.0
      %762 = vmatprep.subr.mxu0 0.0
      %763 = vmatpush1.msra.mxu0 0.0
      %764 = vmatprep.subr.mxu0 0.0
      %765 = vmatpush1.msra.mxu0 0.0
      %766 = vmatprep.subr.mxu0 0.0
      %767 = vmatpush1.msra.mxu0 0.0
      %768 = vmatprep.subr.mxu0 0.0
      %769 = vmatpush1.msra.mxu0 0.0
      %770 = vmatprep.subr.mxu0 0.0
      %771 = vmatpush1.msra.mxu0 0.0
      %772 = vmatprep.subr.mxu0 0.0
      %773 = vmatpush1.msra.mxu0 0.0
      %774 = vmatprep.subr.mxu0 0.0
      %775 = vmatpush1.msra.mxu0 0.0
      %776 = vmatprep.subr.mxu0 0.0
      %777 = vmatpush1.msra.mxu0 0.0
      %778 = vmatprep.subr.mxu0 0.0
      %779 = vmatpush1.msra.mxu0 0.0
      %780 = vmatprep.subr.mxu0 0.0
      %781 = vmatpush1.msra.mxu0 0.0
      %782 = vmatprep.subr.mxu0 0.0
      %783 = vmatpush1.msra.mxu0 0.0
      %784 = vmatprep.subr.mxu0 0.0
      %785 = vmatpush1.msra.mxu0 0.0
      %786 = vmatprep.subr.mxu0 0.0
      %787 = vmatpush1.msra.mxu0 0.0
      %788 = vmatprep.subr.mxu0 0.0
      %789 = vmatpush1.msra.mxu0 0.0
      %790 = vmatprep.mubr.f32.mxu0 0.0
      %791 = vmatmul.mubr.f32.gmra.mrb[0].mxu0 %v716
      %v792 = vpop.f32.mrb[0].mxu0
      %v793 = vadd.f32 0.0, %v792
      %v794 = vpop.f32.mrb[0].mxu0
      %795 = vmatprep.mubr.f32.mxu0 0.0
      %796 = vmatmul.mubr.f32.gmra.mrb[0].mxu0 %v719
      %v797 = vpop.f32.mrb[0].mxu0
      %v798 = vadd.f32 0.0, %v797
      %v799 = vpop.f32.mrb[0].mxu0
      %800 = vmatprep.mubr.f32.mxu0 0.0
      %801 = vmatmul.mubr.f32.gmra.mrb[0].mxu0 %v722
      %v802 = vpop.f32.mrb[0].mxu0
      %v803 = vadd.f32 0.0, %v802
      %v804 = vpop.f32.mrb[0].mxu0
      %805 = vdwg.mxu0
      %v806 = vadd.f32 %v700, %v793
      %v807 = vadd.f32 %v705, %v798
      %v808 = vadd.f32 %v710, %v803
      %s809 = scalar_lea.vmem %s434, 8
      %v810 = vld [vmem:[%s809] sm:$0xf]
      %v812 = vsel %vm527, %v450, 0
      %v815 = vsel %vm527, %v451, 0
      %v818 = vsel %vm527, %v452, 0
      %v821 = vsel %vm537, %v810, 0
      %823 = vmatprep.subr.mxu0 0.0
      %824 = vmatpush1.msra.mxu0 %v821
      %825 = vmatprep.subr.mxu0 0.0
      %826 = vmatpush1.msra.mxu0 0.0
      %827 = vmatprep.subr.mxu0 0.0
      %828 = vmatpush1.msra.mxu0 0.0
      %829 = vmatprep.subr.mxu0 0.0
      %830 = vmatpush1.msra.mxu0 0.0
      %831 = vmatprep.subr.mxu0 0.0
      %832 = vmatpush1.msra.mxu0 0.0
      %833 = vmatprep.subr.mxu0 0.0
      %834 = vmatpush1.msra.mxu0 0.0
      %835 = vmatprep.subr.mxu0 0.0
      %836 = vmatpush1.msra.mxu0 0.0
      %837 = vmatprep.subr.mxu0 0.0
      %838 = vmatpush1.msra.mxu0 0.0
      %839 = vmatprep.subr.mxu0 0.0
      %840 = vmatpush1.msra.mxu0 0.0
      %841 = vmatprep.subr.mxu0 0.0
      %842 = vmatpush1.msra.mxu0 0.0
      %843 = vmatprep.subr.mxu0 0.0
      %844 = vmatpush1.msra.mxu0 0.0
      %845 = vmatprep.subr.mxu0 0.0
      %846 = vmatpush1.msra.mxu0 0.0
      %847 = vmatprep.subr.mxu0 0.0
      %848 = vmatpush1.msra.mxu0 0.0
      %849 = vmatprep.subr.mxu0 0.0
      %850 = vmatpush1.msra.mxu0 0.0
      %851 = vmatprep.subr.mxu0 0.0
      %852 = vmatpush1.msra.mxu0 0.0
      %853 = vmatprep.subr.mxu0 0.0
      %854 = vmatpush1.msra.mxu0 0.0
      %855 = vmatprep.subr.mxu0 0.0
      %856 = vmatpush1.msra.mxu0 0.0
      %857 = vmatprep.subr.mxu0 0.0
      %858 = vmatpush1.msra.mxu0 0.0
      %859 = vmatprep.subr.mxu0 0.0
      %860 = vmatpush1.msra.mxu0 0.0
      %861 = vmatprep.subr.mxu0 0.0
      %862 = vmatpush1.msra.mxu0 0.0
      %863 = vmatprep.subr.mxu0 0.0
      %864 = vmatpush1.msra.mxu0 0.0
      %865 = vmatprep.subr.mxu0 0.0
      %866 = vmatpush1.msra.mxu0 0.0
      %867 = vmatprep.subr.mxu0 0.0
      %868 = vmatpush1.msra.mxu0 0.0
      %869 = vmatprep.subr.mxu0 0.0
      %870 = vmatpush1.msra.mxu0 0.0
      %871 = vmatprep.subr.mxu0 0.0
      %872 = vmatpush1.msra.mxu0 0.0
      %873 = vmatprep.subr.mxu0 0.0
      %874 = vmatpush1.msra.mxu0 0.0
      %875 = vmatprep.subr.mxu0 0.0
      %876 = vmatpush1.msra.mxu0 0.0
      %877 = vmatprep.subr.mxu0 0.0
      %878 = vmatpush1.msra.mxu0 0.0
      %879 = vmatprep.subr.mxu0 0.0
      %880 = vmatpush1.msra.mxu0 0.0
      %881 = vmatprep.subr.mxu0 0.0
      %882 = vmatpush1.msra.mxu0 0.0
      %883 = vmatprep.subr.mxu0 0.0
      %884 = vmatpush1.msra.mxu0 0.0
      %885 = vmatprep.subr.mxu0 0.0
      %886 = vmatpush1.msra.mxu0 0.0
      %887 = vmatprep.mubr.f32.mxu0 0.0
      %888 = vmatmul.mubr.f32.gmra.mrb[0].mxu0 %v812
      %v889 = vpop.f32.mrb[0].mxu0
      %v890 = vadd.f32 0.0, %v889
      %v891 = vpop.f32.mrb[0].mxu0
      %892 = vmatprep.mubr.f32.mxu0 0.0
      %893 = vmatmul.mubr.f32.gmra.mrb[0].mxu0 %v815
      %v894 = vpop.f32.mrb[0].mxu0
      %v895 = vadd.f32 0.0, %v894
      %v896 = vpop.f32.mrb[0].mxu0
      %897 = vmatprep.mubr.f32.mxu0 0.0
      %898 = vmatmul.mubr.f32.gmra.mrb[0].mxu0 %v818
      %v899 = vpop.f32.mrb[0].mxu0
      %v900 = vadd.f32 0.0, %v899
      %v901 = vpop.f32.mrb[0].mxu0
      %902 = vdwg.mxu0
      %v903 = vadd.f32 %v806, %v890
      %v904 = vadd.f32 %v807, %v895
      %v905 = vadd.f32 %v808, %v900
      %s906 = scalar_lea.vmem %s434, 12
      %v907 = vld [vmem:[%s906] sm:$0xf]
      %v909 = vsel %vm527, %v453, 0
      %v912 = vsel %vm527, %v454, 0
      %v915 = vsel %vm527, %v455, 0
      %v918 = vsel %vm537, %v907, 0
      %920 = vmatprep.subr.mxu0 0.0
      %921 = vmatpush1.msra.mxu0 %v918
      %922 = vmatprep.subr.mxu0 0.0
      %923 = vmatpush1.msra.mxu0 0.0
      %924 = vmatprep.subr.mxu0 0.0
      %925 = vmatpush1.msra.mxu0 0.0
      %926 = vmatprep.subr.mxu0 0.0
      %927 = vmatpush1.msra.mxu0 0.0
      %928 = vmatprep.subr.mxu0 0.0
      %929 = vmatpush1.msra.mxu0 0.0
      %930 = vmatprep.subr.mxu0 0.0
      %931 = vmatpush1.msra.mxu0 0.0
      %932 = vmatprep.subr.mxu0 0.0
      %933 = vmatpush1.msra.mxu0 0.0
      %934 = vmatprep.subr.mxu0 0.0
      %935 = vmatpush1.msra.mxu0 0.0
      %936 = vmatprep.subr.mxu0 0.0
      %937 = vmatpush1.msra.mxu0 0.0
      %938 = vmatprep.subr.mxu0 0.0
      %939 = vmatpush1.msra.mxu0 0.0
      %940 = vmatprep.subr.mxu0 0.0
      %941 = vmatpush1.msra.mxu0 0.0
      %942 = vmatprep.subr.mxu0 0.0
      %943 = vmatpush1.msra.mxu0 0.0
      %944 = vmatprep.subr.mxu0 0.0
      %945 = vmatpush1.msra.mxu0 0.0
      %946 = vmatprep.subr.mxu0 0.0
      %947 = vmatpush1.msra.mxu0 0.0
      %948 = vmatprep.subr.mxu0 0.0
      %949 = vmatpush1.msra.mxu0 0.0
      %950 = vmatprep.subr.mxu0 0.0
      %951 = vmatpush1.msra.mxu0 0.0
      %952 = vmatprep.subr.mxu0 0.0
      %953 = vmatpush1.msra.mxu0 0.0
      %954 = vmatprep.subr.mxu0 0.0
      %955 = vmatpush1.msra.mxu0 0.0
      %956 = vmatprep.subr.mxu0 0.0
      %957 = vmatpush1.msra.mxu0 0.0
      %958 = vmatprep.subr.mxu0 0.0
      %959 = vmatpush1.msra.mxu0 0.0
      %960 = vmatprep.subr.mxu0 0.0
      %961 = vmatpush1.msra.mxu0 0.0
      %962 = vmatprep.subr.mxu0 0.0
      %963 = vmatpush1.msra.mxu0 0.0
      %964 = vmatprep.subr.mxu0 0.0
      %965 = vmatpush1.msra.mxu0 0.0
      %966 = vmatprep.subr.mxu0 0.0
      %967 = vmatpush1.msra.mxu0 0.0
      %968 = vmatprep.subr.mxu0 0.0
      %969 = vmatpush1.msra.mxu0 0.0
      %970 = vmatprep.subr.mxu0 0.0
      %971 = vmatpush1.msra.mxu0 0.0
      %972 = vmatprep.subr.mxu0 0.0
      %973 = vmatpush1.msra.mxu0 0.0
      %974 = vmatprep.subr.mxu0 0.0
      %975 = vmatpush1.msra.mxu0 0.0
      %976 = vmatprep.subr.mxu0 0.0
      %977 = vmatpush1.msra.mxu0 0.0
      %978 = vmatprep.subr.mxu0 0.0
      %979 = vmatpush1.msra.mxu0 0.0
      %980 = vmatprep.subr.mxu0 0.0
      %981 = vmatpush1.msra.mxu0 0.0
      %982 = vmatprep.subr.mxu0 0.0
      %983 = vmatpush1.msra.mxu0 0.0
      %984 = vmatprep.mubr.f32.mxu0 0.0
      %985 = vmatmul.mubr.f32.gmra.mrb[0].mxu0 %v909
      %v986 = vpop.f32.mrb[0].mxu0
      %v987 = vadd.f32 0.0, %v986
      %v988 = vpop.f32.mrb[0].mxu0
      %989 = vmatprep.mubr.f32.mxu0 0.0
      %990 = vmatmul.mubr.f32.gmra.mrb[0].mxu0 %v912
      %v991 = vpop.f32.mrb[0].mxu0
      %v992 = vadd.f32 0.0, %v991
      %v993 = vpop.f32.mrb[0].mxu0
      %994 = vmatprep.mubr.f32.mxu0 0.0
      %995 = vmatmul.mubr.f32.gmra.mrb[0].mxu0 %v915
      %v996 = vpop.f32.mrb[0].mxu0
      %v997 = vadd.f32 0.0, %v996
      %v998 = vpop.f32.mrb[0].mxu0
      %999 = vdwg.mxu0
      %v1000 = vadd.f32 %v903, %v987
      %v1001 = vadd.f32 %v904, %v992
      %v1002 = vadd.f32 %v905, %v997
      %1003 = vrot.lane.b32.xlu0 %v810, 127
      %v1004 = vpop.permute.xlu0 %1003
      %v1006 = vsel %vm527, %v456, 0
      %v1009 = vsel %vm527, %v457, 0
      %v1012 = vsel %vm527, %v458, 0
      %v1014 = vsel %vm537, %v1004, 0
      %1016 = vmatprep.subr.mxu0 0.0
      %1017 = vmatpush1.msra.mxu0 %v1014
      %1018 = vmatprep.subr.mxu0 0.0
      %1019 = vmatpush1.msra.mxu0 0.0
      %1020 = vmatprep.subr.mxu0 0.0
      %1021 = vmatpush1.msra.mxu0 0.0
      %1022 = vmatprep.subr.mxu0 0.0
      %1023 = vmatpush1.msra.mxu0 0.0
      %1024 = vmatprep.subr.mxu0 0.0
      %1025 = vmatpush1.msra.mxu0 0.0
      %1026 = vmatprep.subr.mxu0 0.0
      %1027 = vmatpush1.msra.mxu0 0.0
      %1028 = vmatprep.subr.mxu0 0.0
      %1029 = vmatpush1.msra.mxu0 0.0
      %1030 = vmatprep.subr.mxu0 0.0
      %1031 = vmatpush1.msra.mxu0 0.0
      %1032 = vmatprep.subr.mxu0 0.0
      %1033 = vmatpush1.msra.mxu0 0.0
      %1034 = vmatprep.subr.mxu0 0.0
      %1035 = vmatpush1.msra.mxu0 0.0
      %1036 = vmatprep.subr.mxu0 0.0
      %1037 = vmatpush1.msra.mxu0 0.0
      %1038 = vmatprep.subr.mxu0 0.0
      %1039 = vmatpush1.msra.mxu0 0.0
      %1040 = vmatprep.subr.mxu0 0.0
      %1041 = vmatpush1.msra.mxu0 0.0
      %1042 = vmatprep.subr.mxu0 0.0
      %1043 = vmatpush1.msra.mxu0 0.0
      %1044 = vmatprep.subr.mxu0 0.0
      %1045 = vmatpush1.msra.mxu0 0.0
      %1046 = vmatprep.subr.mxu0 0.0
      %1047 = vmatpush1.msra.mxu0 0.0
      %1048 = vmatprep.subr.mxu0 0.0
      %1049 = vmatpush1.msra.mxu0 0.0
      %1050 = vmatprep.subr.mxu0 0.0
      %1051 = vmatpush1.msra.mxu0 0.0
      %1052 = vmatprep.subr.mxu0 0.0
      %1053 = vmatpush1.msra.mxu0 0.0
      %1054 = vmatprep.subr.mxu0 0.0
      %1055 = vmatpush1.msra.mxu0 0.0
      %1056 = vmatprep.subr.mxu0 0.0
      %1057 = vmatpush1.msra.mxu0 0.0
      %1058 = vmatprep.subr.mxu0 0.0
      %1059 = vmatpush1.msra.mxu0 0.0
      %1060 = vmatprep.subr.mxu0 0.0
      %1061 = vmatpush1.msra.mxu0 0.0
      %1062 = vmatprep.subr.mxu0 0.0
      %1063 = vmatpush1.msra.mxu0 0.0
      %1064 = vmatprep.subr.mxu0 0.0
      %1065 = vmatpush1.msra.mxu0 0.0
      %1066 = vmatprep.subr.mxu0 0.0
      %1067 = vmatpush1.msra.mxu0 0.0
      %1068 = vmatprep.subr.mxu0 0.0
      %1069 = vmatpush1.msra.mxu0 0.0
      %1070 = vmatprep.subr.mxu0 0.0
      %1071 = vmatpush1.msra.mxu0 0.0
      %1072 = vmatprep.subr.mxu0 0.0
      %1073 = vmatpush1.msra.mxu0 0.0
      %1074 = vmatprep.subr.mxu0 0.0
      %1075 = vmatpush1.msra.mxu0 0.0
      %1076 = vmatprep.subr.mxu0 0.0
      %1077 = vmatpush1.msra.mxu0 0.0
      %1078 = vmatprep.subr.mxu0 0.0
      %1079 = vmatpush1.msra.mxu0 0.0
      %1080 = vmatprep.mubr.f32.mxu0 0.0
      %1081 = vmatmul.mubr.f32.gmra.mrb[0].mxu0 %v1006
      %v1082 = vpop.f32.mrb[0].mxu0
      %v1083 = vadd.f32 0.0, %v1082
      %v1084 = vpop.f32.mrb[0].mxu0
      %1085 = vmatprep.mubr.f32.mxu0 0.0
      %1086 = vmatmul.mubr.f32.gmra.mrb[0].mxu0 %v1009
      %v1087 = vpop.f32.mrb[0].mxu0
      %v1088 = vadd.f32 0.0, %v1087
      %v1089 = vpop.f32.mrb[0].mxu0
      %1090 = vmatprep.mubr.f32.mxu0 0.0
      %1091 = vmatmul.mubr.f32.gmra.mrb[0].mxu0 %v1012
      %v1092 = vpop.f32.mrb[0].mxu0
      %v1093 = vadd.f32 0.0, %v1092
      %v1094 = vpop.f32.mrb[0].mxu0
      %1095 = vdwg.mxu0
      %v1096 = vadd.f32 %v1000, %v1083
      %v1097 = vadd.f32 %v1001, %v1088
      %v1098 = vadd.f32 %v1002, %v1093
      %1099 = vrot.lane.b32.xlu0 %v524, 118
      %v1100 = vpop.permute.xlu0 %1099
      %v1102 = vsel %vm527, %v459, 0
      %v1105 = vsel %vm527, %v460, 0
      %v1108 = vsel %vm527, %v461, 0
      %v1110 = vsel %vm537, %v1100, 0
      %1112 = vmatprep.subr.mxu0 0.0
      %1113 = vmatpush1.msra.mxu0 %v1110
      %1114 = vmatprep.subr.mxu0 0.0
      %1115 = vmatpush1.msra.mxu0 0.0
      %1116 = vmatprep.subr.mxu0 0.0
      %1117 = vmatpush1.msra.mxu0 0.0
      %1118 = vmatprep.subr.mxu0 0.0
      %1119 = vmatpush1.msra.mxu0 0.0
      %1120 = vmatprep.subr.mxu0 0.0
      %1121 = vmatpush1.msra.mxu0 0.0
      %1122 = vmatprep.subr.mxu0 0.0
      %1123 = vmatpush1.msra.mxu0 0.0
      %1124 = vmatprep.subr.mxu0 0.0
      %1125 = vmatpush1.msra.mxu0 0.0
      %1126 = vmatprep.subr.mxu0 0.0
      %1127 = vmatpush1.msra.mxu0 0.0
      %1128 = vmatprep.subr.mxu0 0.0
      %1129 = vmatpush1.msra.mxu0 0.0
      %1130 = vmatprep.subr.mxu0 0.0
      %1131 = vmatpush1.msra.mxu0 0.0
      %1132 = vmatprep.subr.mxu0 0.0
      %1133 = vmatpush1.msra.mxu0 0.0
      %1134 = vmatprep.subr.mxu0 0.0
      %1135 = vmatpush1.msra.mxu0 0.0
      %1136 = vmatprep.subr.mxu0 0.0
      %1137 = vmatpush1.msra.mxu0 0.0
      %1138 = vmatprep.subr.mxu0 0.0
      %1139 = vmatpush1.msra.mxu0 0.0
      %1140 = vmatprep.subr.mxu0 0.0
      %1141 = vmatpush1.msra.mxu0 0.0
      %1142 = vmatprep.subr.mxu0 0.0
      %1143 = vmatpush1.msra.mxu0 0.0
      %1144 = vmatprep.subr.mxu0 0.0
      %1145 = vmatpush1.msra.mxu0 0.0
      %1146 = vmatprep.subr.mxu0 0.0
      %1147 = vmatpush1.msra.mxu0 0.0
      %1148 = vmatprep.subr.mxu0 0.0
      %1149 = vmatpush1.msra.mxu0 0.0
      %1150 = vmatprep.subr.mxu0 0.0
      %1151 = vmatpush1.msra.mxu0 0.0
      %1152 = vmatprep.subr.mxu0 0.0
      %1153 = vmatpush1.msra.mxu0 0.0
      %1154 = vmatprep.subr.mxu0 0.0
      %1155 = vmatpush1.msra.mxu0 0.0
      %1156 = vmatprep.subr.mxu0 0.0
      %1157 = vmatpush1.msra.mxu0 0.0
      %1158 = vmatprep.subr.mxu0 0.0
      %1159 = vmatpush1.msra.mxu0 0.0
      %1160 = vmatprep.subr.mxu0 0.0
      %1161 = vmatpush1.msra.mxu0 0.0
      %1162 = vmatprep.subr.mxu0 0.0
      %1163 = vmatpush1.msra.mxu0 0.0
      %1164 = vmatprep.subr.mxu0 0.0
      %1165 = vmatpush1.msra.mxu0 0.0
      %1166 = vmatprep.subr.mxu0 0.0
      %1167 = vmatpush1.msra.mxu0 0.0
      %1168 = vmatprep.subr.mxu0 0.0
      %1169 = vmatpush1.msra.mxu0 0.0
      %1170 = vmatprep.subr.mxu0 0.0
      %1171 = vmatpush1.msra.mxu0 0.0
      %1172 = vmatprep.subr.mxu0 0.0
      %1173 = vmatpush1.msra.mxu0 0.0
      %1174 = vmatprep.subr.mxu0 0.0
      %1175 = vmatpush1.msra.mxu0 0.0
      %1176 = vmatprep.mubr.f32.mxu0 0.0
      %1177 = vmatmul.mubr.f32.gmra.mrb[0].mxu0 %v1102
      %v1178 = vpop.f32.mrb[0].mxu0
      %v1179 = vadd.f32 0.0, %v1178
      %v1180 = vpop.f32.mrb[0].mxu0
      %1181 = vmatprep.mubr.f32.mxu0 0.0
      %1182 = vmatmul.mubr.f32.gmra.mrb[0].mxu0 %v1105
      %v1183 = vpop.f32.mrb[0].mxu0
      %v1184 = vadd.f32 0.0, %v1183
      %v1185 = vpop.f32.mrb[0].mxu0
      %1186 = vmatprep.mubr.f32.mxu0 0.0
      %1187 = vmatmul.mubr.f32.gmra.mrb[0].mxu0 %v1108
      %v1188 = vpop.f32.mrb[0].mxu0
      %v1189 = vadd.f32 0.0, %v1188
      %v1190 = vpop.f32.mrb[0].mxu0
      %1191 = vdwg.mxu0
      %v1192 = vadd.f32 %v1096, %v1179
      %v1193 = vadd.f32 %v1097, %v1184
      %v1194 = vadd.f32 %v1098, %v1189
      %1195 = vrot.lane.b32.xlu0 %v526, 118
      %v1196 = vpop.permute.xlu0 %1195
      %v1198 = vsel %vm527, %v462, 0
      %v1201 = vsel %vm527, %v463, 0
      %v1204 = vsel %vm527, %v464, 0
      %v1206 = vsel %vm537, %v1196, 0
      %1208 = vmatprep.subr.mxu0 0.0
      %1209 = vmatpush1.msra.mxu0 %v1206
      %1210 = vmatprep.subr.mxu0 0.0
      %1211 = vmatpush1.msra.mxu0 0.0
      %1212 = vmatprep.subr.mxu0 0.0
      %1213 = vmatpush1.msra.mxu0 0.0
      %1214 = vmatprep.subr.mxu0 0.0
      %1215 = vmatpush1.msra.mxu0 0.0
      %1216 = vmatprep.subr.mxu0 0.0
      %1217 = vmatpush1.msra.mxu0 0.0
      %1218 = vmatprep.subr.mxu0 0.0
      %1219 = vmatpush1.msra.mxu0 0.0
      %1220 = vmatprep.subr.mxu0 0.0
      %1221 = vmatpush1.msra.mxu0 0.0
      %1222 = vmatprep.subr.mxu0 0.0
      %1223 = vmatpush1.msra.mxu0 0.0
      %1224 = vmatprep.subr.mxu0 0.0
      %1225 = vmatpush1.msra.mxu0 0.0
      %1226 = vmatprep.subr.mxu0 0.0
      %1227 = vmatpush1.msra.mxu0 0.0
      %1228 = vmatprep.subr.mxu0 0.0
      %1229 = vmatpush1.msra.mxu0 0.0
      %1230 = vmatprep.subr.mxu0 0.0
      %1231 = vmatpush1.msra.mxu0 0.0
      %1232 = vmatprep.subr.mxu0 0.0
      %1233 = vmatpush1.msra.mxu0 0.0
      %1234 = vmatprep.subr.mxu0 0.0
      %1235 = vmatpush1.msra.mxu0 0.0
      %1236 = vmatprep.subr.mxu0 0.0
      %1237 = vmatpush1.msra.mxu0 0.0
      %1238 = vmatprep.subr.mxu0 0.0
      %1239 = vmatpush1.msra.mxu0 0.0
      %1240 = vmatprep.subr.mxu0 0.0
      %1241 = vmatpush1.msra.mxu0 0.0
      %1242 = vmatprep.subr.mxu0 0.0
      %1243 = vmatpush1.msra.mxu0 0.0
      %1244 = vmatprep.subr.mxu0 0.0
      %1245 = vmatpush1.msra.mxu0 0.0
      %1246 = vmatprep.subr.mxu0 0.0
      %1247 = vmatpush1.msra.mxu0 0.0
      %1248 = vmatprep.subr.mxu0 0.0
      %1249 = vmatpush1.msra.mxu0 0.0
      %1250 = vmatprep.subr.mxu0 0.0
      %1251 = vmatpush1.msra.mxu0 0.0
      %1252 = vmatprep.subr.mxu0 0.0
      %1253 = vmatpush1.msra.mxu0 0.0
      %1254 = vmatprep.subr.mxu0 0.0
      %1255 = vmatpush1.msra.mxu0 0.0
      %1256 = vmatprep.subr.mxu0 0.0
      %1257 = vmatpush1.msra.mxu0 0.0
      %1258 = vmatprep.subr.mxu0 0.0
      %1259 = vmatpush1.msra.mxu0 0.0
      %1260 = vmatprep.subr.mxu0 0.0
      %1261 = vmatpush1.msra.mxu0 0.0
      %1262 = vmatprep.subr.mxu0 0.0
      %1263 = vmatpush1.msra.mxu0 0.0
      %1264 = vmatprep.subr.mxu0 0.0
      %1265 = vmatpush1.msra.mxu0 0.0
      %1266 = vmatprep.subr.mxu0 0.0
      %1267 = vmatpush1.msra.mxu0 0.0
      %1268 = vmatprep.subr.mxu0 0.0
      %1269 = vmatpush1.msra.mxu0 0.0
      %1270 = vmatprep.subr.mxu0 0.0
      %1271 = vmatpush1.msra.mxu0 0.0
      %1272 = vmatprep.mubr.f32.mxu0 0.0
      %1273 = vmatmul.mubr.f32.gmra.mrb[0].mxu0 %v1198
      %v1274 = vpop.f32.mrb[0].mxu0
      %v1275 = vadd.f32 0.0, %v1274
      %v1276 = vpop.f32.mrb[0].mxu0
      %1277 = vmatprep.mubr.f32.mxu0 0.0
      %1278 = vmatmul.mubr.f32.gmra.mrb[0].mxu0 %v1201
      %v1279 = vpop.f32.mrb[0].mxu0
      %v1280 = vadd.f32 0.0, %v1279
      %v1281 = vpop.f32.mrb[0].mxu0
      %1282 = vmatprep.mubr.f32.mxu0 0.0
      %1283 = vmatmul.mubr.f32.gmra.mrb[0].mxu0 %v1204
      %v1284 = vpop.f32.mrb[0].mxu0
      %v1285 = vadd.f32 0.0, %v1284
      %v1286 = vpop.f32.mrb[0].mxu0
      %1287 = vdwg.mxu0
      %v1288 = vadd.f32 %v1192, %v1275
      %v1289 = vadd.f32 %v1193, %v1280
      %v1290 = vadd.f32 %v1194, %v1285
      %1291 = vrot.lane.b32.xlu0 %v524, 117
      %v1292 = vpop.permute.xlu0 %1291
      %v1294 = vsel %vm527, %v465, 0
      %v1297 = vsel %vm527, %v466, 0
      %v1300 = vsel %vm527, %v467, 0
      %v1302 = vsel %vm537, %v1292, 0
      %1304 = vmatprep.subr.mxu0 0.0
      %1305 = vmatpush1.msra.mxu0 %v1302
      %1306 = vmatprep.subr.mxu0 0.0
      %1307 = vmatpush1.msra.mxu0 0.0
      %1308 = vmatprep.subr.mxu0 0.0
      %1309 = vmatpush1.msra.mxu0 0.0
      %1310 = vmatprep.subr.mxu0 0.0
      %1311 = vmatpush1.msra.mxu0 0.0
      %1312 = vmatprep.subr.mxu0 0.0
      %1313 = vmatpush1.msra.mxu0 0.0
      %1314 = vmatprep.subr.mxu0 0.0
      %1315 = vmatpush1.msra.mxu0 0.0
      %1316 = vmatprep.subr.mxu0 0.0
      %1317 = vmatpush1.msra.mxu0 0.0
      %1318 = vmatprep.subr.mxu0 0.0
      %1319 = vmatpush1.msra.mxu0 0.0
      %1320 = vmatprep.subr.mxu0 0.0
      %1321 = vmatpush1.msra.mxu0 0.0
      %1322 = vmatprep.subr.mxu0 0.0
      %1323 = vmatpush1.msra.mxu0 0.0
      %1324 = vmatprep.subr.mxu0 0.0
      %1325 = vmatpush1.msra.mxu0 0.0
      %1326 = vmatprep.subr.mxu0 0.0
      %1327 = vmatpush1.msra.mxu0 0.0
      %1328 = vmatprep.subr.mxu0 0.0
      %1329 = vmatpush1.msra.mxu0 0.0
      %1330 = vmatprep.subr.mxu0 0.0
      %1331 = vmatpush1.msra.mxu0 0.0
      %1332 = vmatprep.subr.mxu0 0.0
      %1333 = vmatpush1.msra.mxu0 0.0
      %1334 = vmatprep.subr.mxu0 0.0
      %1335 = vmatpush1.msra.mxu0 0.0
      %1336 = vmatprep.subr.mxu0 0.0
      %1337 = vmatpush1.msra.mxu0 0.0
      %1338 = vmatprep.subr.mxu0 0.0
      %1339 = vmatpush1.msra.mxu0 0.0
      %1340 = vmatprep.subr.mxu0 0.0
      %1341 = vmatpush1.msra.mxu0 0.0
      %1342 = vmatprep.subr.mxu0 0.0
      %1343 = vmatpush1.msra.mxu0 0.0
      %1344 = vmatprep.subr.mxu0 0.0
      %1345 = vmatpush1.msra.mxu0 0.0
      %1346 = vmatprep.subr.mxu0 0.0
      %1347 = vmatpush1.msra.mxu0 0.0
      %1348 = vmatprep.subr.mxu0 0.0
      %1349 = vmatpush1.msra.mxu0 0.0
      %1350 = vmatprep.subr.mxu0 0.0
      %1351 = vmatpush1.msra.mxu0 0.0
      %1352 = vmatprep.subr.mxu0 0.0
      %1353 = vmatpush1.msra.mxu0 0.0
      %1354 = vmatprep.subr.mxu0 0.0
      %1355 = vmatpush1.msra.mxu0 0.0
      %1356 = vmatprep.subr.mxu0 0.0
      %1357 = vmatpush1.msra.mxu0 0.0
      %1358 = vmatprep.subr.mxu0 0.0
      %1359 = vmatpush1.msra.mxu0 0.0
      %1360 = vmatprep.subr.mxu0 0.0
      %1361 = vmatpush1.msra.mxu0 0.0
      %1362 = vmatprep.subr.mxu0 0.0
      %1363 = vmatpush1.msra.mxu0 0.0
      %1364 = vmatprep.subr.mxu0 0.0
      %1365 = vmatpush1.msra.mxu0 0.0
      %1366 = vmatprep.subr.mxu0 0.0
      %1367 = vmatpush1.msra.mxu0 0.0
      %1368 = vmatprep.mubr.f32.mxu0 0.0
      %1369 = vmatmul.mubr.f32.gmra.mrb[0].mxu0 %v1294
      %v1370 = vpop.f32.mrb[0].mxu0
      %v1371 = vadd.f32 0.0, %v1370
      %v1372 = vpop.f32.mrb[0].mxu0
      %1373 = vmatprep.mubr.f32.mxu0 0.0
      %1374 = vmatmul.mubr.f32.gmra.mrb[0].mxu0 %v1297
      %v1375 = vpop.f32.mrb[0].mxu0
      %v1376 = vadd.f32 0.0, %v1375
      %v1377 = vpop.f32.mrb[0].mxu0
      %1378 = vmatprep.mubr.f32.mxu0 0.0
      %1379 = vmatmul.mubr.f32.gmra.mrb[0].mxu0 %v1300
      %v1380 = vpop.f32.mrb[0].mxu0
      %v1381 = vadd.f32 0.0, %v1380
      %v1382 = vpop.f32.mrb[0].mxu0
      %1383 = vdwg.mxu0
      %v1384 = vadd.f32 %v1288, %v1371
      %v1385 = vadd.f32 %v1289, %v1376
      %v1386 = vadd.f32 %v1290, %v1381
      %1388 = vset.pattern.permute.xlu0 0
      %1389 = vperm.xlu0 %1388, %v468
      %v1390 = vpop.permute.xlu0 %1389
      %1393 = vset.pattern.permute.xlu0 0
      %1394 = vperm.xlu0 %1393, %v469
      %v1395 = vpop.permute.xlu0 %1394
      %1398 = vset.pattern.permute.xlu0 0
      %1399 = vperm.xlu0 %1398, %v470
      %v1400 = vpop.permute.xlu0 %1399
      %v1402 = vadd.f32 %v1384, %v1390
      %v1403 = vadd.f32 %v1385, %v1395
      %v1404 = vadd.f32 %v1386, %v1400
      %v1405 = vmax.f32 %v1402, 0.0
      %v1406 = vmax.f32 %v1403, 0.0
      %v1407 = vmax.f32 %v1404, 0.0
      %v1408 = vsel %vm440, 1, 0
      %v1409 = vlaneseq
      %v1410 = vshrl.u32 %v1409, 7
      %v1411 = vsub.s32 0, %v1410
      %v1412 = vrot.slane %v1408, %v1411
      %vm1413 = vcmp.eq.s32.totalorder %v1412, 1
      %v1414 = vsel %vm1413, %v1405, 0.0
      %v1415 = vsel %vm1413, %v1406, 0.0
      %v1416 = vsel %vm1413, %v1407, 0.0
      %vm1417 = vcmask 654336
      %1418 = vst.msk [vmem:[%s510] sm:$0xff] %vm1417, %v1414
      %1419 = vst.msk [vmem:[%s510 + $0x8] sm:$0xff] %vm1417, %v1415
      %1420 = vst.msk [vmem:[%s510 + $0x10] sm:$0xff] %vm1417, %v1416
      %v1421 = vld [vmem:[%s525] sm:$0xf]
      %v1422 = vld [vmem:[%s434] sm:$0xf]
      %1424 = vrot.lane.b32.xlu0 %v1422, 127
      %v1425 = vpop.permute.xlu0 %1424
      %v1426 = vsel %vm537, %v1425, 0
      %1428 = vmatprep.subr.mxu0 0.0
      %1429 = vmatpush1.msra.mxu0 %v1426
      %1430 = vmatprep.subr.mxu0 0.0
      %1431 = vmatpush1.msra.mxu0 0.0
      %1432 = vmatprep.subr.mxu0 0.0
      %1433 = vmatpush1.msra.mxu0 0.0
      %1434 = vmatprep.subr.mxu0 0.0
      %1435 = vmatpush1.msra.mxu0 0.0
      %1436 = vmatprep.subr.mxu0 0.0
      %1437 = vmatpush1.msra.mxu0 0.0
      %1438 = vmatprep.subr.mxu0 0.0
      %1439 = vmatpush1.msra.mxu0 0.0
      %1440 = vmatprep.subr.mxu0 0.0
      %1441 = vmatpush1.msra.mxu0 0.0
      %1442 = vmatprep.subr.mxu0 0.0
      %1443 = vmatpush1.msra.mxu0 0.0
      %1444 = vmatprep.subr.mxu0 0.0
      %1445 = vmatpush1.msra.mxu0 0.0
      %1446 = vmatprep.subr.mxu0 0.0
      %1447 = vmatpush1.msra.mxu0 0.0
      %1448 = vmatprep.subr.mxu0 0.0
      %1449 = vmatpush1.msra.mxu0 0.0
      %1450 = vmatprep.subr.mxu0 0.0
      %1451 = vmatpush1.msra.mxu0 0.0
      %1452 = vmatprep.subr.mxu0 0.0
      %1453 = vmatpush1.msra.mxu0 0.0
      %1454 = vmatprep.subr.mxu0 0.0
      %1455 = vmatpush1.msra.mxu0 0.0
      %1456 = vmatprep.subr.mxu0 0.0
      %1457 = vmatpush1.msra.mxu0 0.0
      %1458 = vmatprep.subr.mxu0 0.0
      %1459 = vmatpush1.msra.mxu0 0.0
      %1460 = vmatprep.subr.mxu0 0.0
      %1461 = vmatpush1.msra.mxu0 0.0
      %1462 = vmatprep.subr.mxu0 0.0
      %1463 = vmatpush1.msra.mxu0 0.0
      %1464 = vmatprep.subr.mxu0 0.0
      %1465 = vmatpush1.msra.mxu0 0.0
      %1466 = vmatprep.subr.mxu0 0.0
      %1467 = vmatpush1.msra.mxu0 0.0
      %1468 = vmatprep.subr.mxu0 0.0
      %1469 = vmatpush1.msra.mxu0 0.0
      %1470 = vmatprep.subr.mxu0 0.0
      %1471 = vmatpush1.msra.mxu0 0.0
      %1472 = vmatprep.subr.mxu0 0.0
      %1473 = vmatpush1.msra.mxu0 0.0
      %1474 = vmatprep.subr.mxu0 0.0
      %1475 = vmatpush1.msra.mxu0 0.0
      %1476 = vmatprep.subr.mxu0 0.0
      %1477 = vmatpush1.msra.mxu0 0.0
      %1478 = vmatprep.subr.mxu0 0.0
      %1479 = vmatpush1.msra.mxu0 0.0
      %1480 = vmatprep.subr.mxu0 0.0
      %1481 = vmatpush1.msra.mxu0 0.0
      %1482 = vmatprep.subr.mxu0 0.0
      %1483 = vmatpush1.msra.mxu0 0.0
      %1484 = vmatprep.subr.mxu0 0.0
      %1485 = vmatpush1.msra.mxu0 0.0
      %1486 = vmatprep.subr.mxu0 0.0
      %1487 = vmatpush1.msra.mxu0 0.0
      %1488 = vmatprep.subr.mxu0 0.0
      %1489 = vmatpush1.msra.mxu0 0.0
      %1490 = vmatprep.subr.mxu0 0.0
      %1491 = vmatpush1.msra.mxu0 0.0
      %1492 = vmatprep.mubr.f32.mxu0 0.0
      %1493 = vmatmul.mubr.f32.gmra.mrb[0].mxu0 %v529
      %v1494 = vpop.f32.mrb[0].mxu0
      %v1495 = vadd.f32 0.0, %v1494
      %v1496 = vpop.f32.mrb[0].mxu0
      %1497 = vmatprep.mubr.f32.mxu0 0.0
      %1498 = vmatmul.mubr.f32.gmra.mrb[0].mxu0 %v532
      %v1499 = vpop.f32.mrb[0].mxu0
      %v1500 = vadd.f32 0.0, %v1499
      %v1501 = vpop.f32.mrb[0].mxu0
      %1502 = vmatprep.mubr.f32.mxu0 0.0
      %1503 = vmatmul.mubr.f32.gmra.mrb[0].mxu0 %v535
      %v1504 = vpop.f32.mrb[0].mxu0
      %v1505 = vadd.f32 0.0, %v1504
      %v1506 = vpop.f32.mrb[0].mxu0
      %1507 = vdwg.mxu0
      %v1509 = vsel %vm537, %v1421, 0
      %1511 = vmatprep.subr.mxu0 0.0
      %1512 = vmatpush1.msra.mxu0 %v1509
      %1513 = vmatprep.subr.mxu0 0.0
      %1514 = vmatpush1.msra.mxu0 0.0
      %1515 = vmatprep.subr.mxu0 0.0
      %1516 = vmatpush1.msra.mxu0 0.0
      %1517 = vmatprep.subr.mxu0 0.0
      %1518 = vmatpush1.msra.mxu0 0.0
      %1519 = vmatprep.subr.mxu0 0.0
      %1520 = vmatpush1.msra.mxu0 0.0
      %1521 = vmatprep.subr.mxu0 0.0
      %1522 = vmatpush1.msra.mxu0 0.0
      %1523 = vmatprep.subr.mxu0 0.0
      %1524 = vmatpush1.msra.mxu0 0.0
      %1525 = vmatprep.subr.mxu0 0.0
      %1526 = vmatpush1.msra.mxu0 0.0
      %1527 = vmatprep.subr.mxu0 0.0
      %1528 = vmatpush1.msra.mxu0 0.0
      %1529 = vmatprep.subr.mxu0 0.0
      %1530 = vmatpush1.msra.mxu0 0.0
      %1531 = vmatprep.subr.mxu0 0.0
      %1532 = vmatpush1.msra.mxu0 0.0
      %1533 = vmatprep.subr.mxu0 0.0
      %1534 = vmatpush1.msra.mxu0 0.0
      %1535 = vmatprep.subr.mxu0 0.0
      %1536 = vmatpush1.msra.mxu0 0.0
      %1537 = vmatprep.subr.mxu0 0.0
      %1538 = vmatpush1.msra.mxu0 0.0
      %1539 = vmatprep.subr.mxu0 0.0
      %1540 = vmatpush1.msra.mxu0 0.0
      %1541 = vmatprep.subr.mxu0 0.0
      %1542 = vmatpush1.msra.mxu0 0.0
      %1543 = vmatprep.subr.mxu0 0.0
      %1544 = vmatpush1.msra.mxu0 0.0
      %1545 = vmatprep.subr.mxu0 0.0
      %1546 = vmatpush1.msra.mxu0 0.0
      %1547 = vmatprep.subr.mxu0 0.0
      %1548 = vmatpush1.msra.mxu0 0.0
      %1549 = vmatprep.subr.mxu0 0.0
      %1550 = vmatpush1.msra.mxu0 0.0
      %1551 = vmatprep.subr.mxu0 0.0
      %1552 = vmatpush1.msra.mxu0 0.0
      %1553 = vmatprep.subr.mxu0 0.0
      %1554 = vmatpush1.msra.mxu0 0.0
      %1555 = vmatprep.subr.mxu0 0.0
      %1556 = vmatpush1.msra.mxu0 0.0
      %1557 = vmatprep.subr.mxu0 0.0
      %1558 = vmatpush1.msra.mxu0 0.0
      %1559 = vmatprep.subr.mxu0 0.0
      %1560 = vmatpush1.msra.mxu0 0.0
      %1561 = vmatprep.subr.mxu0 0.0
      %1562 = vmatpush1.msra.mxu0 0.0
      %1563 = vmatprep.subr.mxu0 0.0
      %1564 = vmatpush1.msra.mxu0 0.0
      %1565 = vmatprep.subr.mxu0 0.0
      %1566 = vmatpush1.msra.mxu0 0.0
      %1567 = vmatprep.subr.mxu0 0.0
      %1568 = vmatpush1.msra.mxu0 0.0
      %1569 = vmatprep.subr.mxu0 0.0
      %1570 = vmatpush1.msra.mxu0 0.0
      %1571 = vmatprep.subr.mxu0 0.0
      %1572 = vmatpush1.msra.mxu0 0.0
      %1573 = vmatprep.subr.mxu0 0.0
      %1574 = vmatpush1.msra.mxu0 0.0
      %1575 = vmatprep.mubr.f32.mxu0 0.0
      %1576 = vmatmul.mubr.f32.gmra.mrb[0].mxu0 %v622
      %v1577 = vpop.f32.mrb[0].mxu0
      %v1578 = vadd.f32 %v1495, %v1577
      %v1579 = vpop.f32.mrb[0].mxu0
      %1580 = vmatprep.mubr.f32.mxu0 0.0
      %1581 = vmatmul.mubr.f32.gmra.mrb[0].mxu0 %v625
      %v1582 = vpop.f32.mrb[0].mxu0
      %v1583 = vadd.f32 %v1500, %v1582
      %v1584 = vpop.f32.mrb[0].mxu0
      %1585 = vmatprep.mubr.f32.mxu0 0.0
      %1586 = vmatmul.mubr.f32.gmra.mrb[0].mxu0 %v628
      %v1587 = vpop.f32.mrb[0].mxu0
      %v1588 = vadd.f32 %v1505, %v1587
      %v1589 = vpop.f32.mrb[0].mxu0
      %1590 = vdwg.mxu0
      %1591 = vrot.lane.b32.xlu0 %v1421, 127
      %v1592 = vpop.permute.xlu0 %1591
      %v1593 = vsel %vm537, %v1592, 0
      %1595 = vmatprep.subr.mxu0 0.0
      %1596 = vmatpush1.msra.mxu0 %v1593
      %1597 = vmatprep.subr.mxu0 0.0
      %1598 = vmatpush1.msra.mxu0 0.0
      %1599 = vmatprep.subr.mxu0 0.0
      %1600 = vmatpush1.msra.mxu0 0.0
      %1601 = vmatprep.subr.mxu0 0.0
      %1602 = vmatpush1.msra.mxu0 0.0
      %1603 = vmatprep.subr.mxu0 0.0
      %1604 = vmatpush1.msra.mxu0 0.0
      %1605 = vmatprep.subr.mxu0 0.0
      %1606 = vmatpush1.msra.mxu0 0.0
      %1607 = vmatprep.subr.mxu0 0.0
      %1608 = vmatpush1.msra.mxu0 0.0
      %1609 = vmatprep.subr.mxu0 0.0
      %1610 = vmatpush1.msra.mxu0 0.0
      %1611 = vmatprep.subr.mxu0 0.0
      %1612 = vmatpush1.msra.mxu0 0.0
      %1613 = vmatprep.subr.mxu0 0.0
      %1614 = vmatpush1.msra.mxu0 0.0
      %1615 = vmatprep.subr.mxu0 0.0
      %1616 = vmatpush1.msra.mxu0 0.0
      %1617 = vmatprep.subr.mxu0 0.0
      %1618 = vmatpush1.msra.mxu0 0.0
      %1619 = vmatprep.subr.mxu0 0.0
      %1620 = vmatpush1.msra.mxu0 0.0
      %1621 = vmatprep.subr.mxu0 0.0
      %1622 = vmatpush1.msra.mxu0 0.0
      %1623 = vmatprep.subr.mxu0 0.0
      %1624 = vmatpush1.msra.mxu0 0.0
      %1625 = vmatprep.subr.mxu0 0.0
      %1626 = vmatpush1.msra.mxu0 0.0
      %1627 = vmatprep.subr.mxu0 0.0
      %1628 = vmatpush1.msra.mxu0 0.0
      %1629 = vmatprep.subr.mxu0 0.0
      %1630 = vmatpush1.msra.mxu0 0.0
      %1631 = vmatprep.subr.mxu0 0.0
      %1632 = vmatpush1.msra.mxu0 0.0
      %1633 = vmatprep.subr.mxu0 0.0
      %1634 = vmatpush1.msra.mxu0 0.0
      %1635 = vmatprep.subr.mxu0 0.0
      %1636 = vmatpush1.msra.mxu0 0.0
      %1637 = vmatprep.subr.mxu0 0.0
      %1638 = vmatpush1.msra.mxu0 0.0
      %1639 = vmatprep.subr.mxu0 0.0
      %1640 = vmatpush1.msra.mxu0 0.0
      %1641 = vmatprep.subr.mxu0 0.0
      %1642 = vmatpush1.msra.mxu0 0.0
      %1643 = vmatprep.subr.mxu0 0.0
      %1644 = vmatpush1.msra.mxu0 0.0
      %1645 = vmatprep.subr.mxu0 0.0
      %1646 = vmatpush1.msra.mxu0 0.0
      %1647 = vmatprep.subr.mxu0 0.0
      %1648 = vmatpush1.msra.mxu0 0.0
      %1649 = vmatprep.subr.mxu0 0.0
      %1650 = vmatpush1.msra.mxu0 0.0
      %1651 = vmatprep.subr.mxu0 0.0
      %1652 = vmatpush1.msra.mxu0 0.0
      %1653 = vmatprep.subr.mxu0 0.0
      %1654 = vmatpush1.msra.mxu0 0.0
      %1655 = vmatprep.subr.mxu0 0.0
      %1656 = vmatpush1.msra.mxu0 0.0
      %1657 = vmatprep.subr.mxu0 0.0
      %1658 = vmatpush1.msra.mxu0 0.0
      %1659 = vmatprep.mubr.f32.mxu0 0.0
      %1660 = vmatmul.mubr.f32.gmra.mrb[0].mxu0 %v716
      %v1661 = vpop.f32.mrb[0].mxu0
      %v1662 = vadd.f32 0.0, %v1661
      %v1663 = vpop.f32.mrb[0].mxu0
      %1664 = vmatprep.mubr.f32.mxu0 0.0
      %1665 = vmatmul.mubr.f32.gmra.mrb[0].mxu0 %v719
      %v1666 = vpop.f32.mrb[0].mxu0
      %v1667 = vadd.f32 0.0, %v1666
      %v1668 = vpop.f32.mrb[0].mxu0
      %1669 = vmatprep.mubr.f32.mxu0 0.0
      %1670 = vmatmul.mubr.f32.gmra.mrb[0].mxu0 %v722
      %v1671 = vpop.f32.mrb[0].mxu0
      %v1672 = vadd.f32 0.0, %v1671
      %v1673 = vpop.f32.mrb[0].mxu0
      %1674 = vdwg.mxu0
      %v1675 = vadd.f32 %v1578, %v1662
      %v1676 = vadd.f32 %v1583, %v1667
      %v1677 = vadd.f32 %v1588, %v1672
      %v1678 = vld [vmem:[%s906] sm:$0xf]
      %v1680 = vsel %vm537, %v1678, 0
      %1682 = vmatprep.subr.mxu0 0.0
      %1683 = vmatpush1.msra.mxu0 %v1680
      %1684 = vmatprep.subr.mxu0 0.0
      %1685 = vmatpush1.msra.mxu0 0.0
      %1686 = vmatprep.subr.mxu0 0.0
      %1687 = vmatpush1.msra.mxu0 0.0
      %1688 = vmatprep.subr.mxu0 0.0
      %1689 = vmatpush1.msra.mxu0 0.0
      %1690 = vmatprep.subr.mxu0 0.0
      %1691 = vmatpush1.msra.mxu0 0.0
      %1692 = vmatprep.subr.mxu0 0.0
      %1693 = vmatpush1.msra.mxu0 0.0
      %1694 = vmatprep.subr.mxu0 0.0
      %1695 = vmatpush1.msra.mxu0 0.0
      %1696 = vmatprep.subr.mxu0 0.0
      %1697 = vmatpush1.msra.mxu0 0.0
      %1698 = vmatprep.subr.mxu0 0.0
      %1699 = vmatpush1.msra.mxu0 0.0
      %1700 = vmatprep.subr.mxu0 0.0
      %1701 = vmatpush1.msra.mxu0 0.0
      %1702 = vmatprep.subr.mxu0 0.0
      %1703 = vmatpush1.msra.mxu0 0.0
      %1704 = vmatprep.subr.mxu0 0.0
      %1705 = vmatpush1.msra.mxu0 0.0
      %1706 = vmatprep.subr.mxu0 0.0
      %1707 = vmatpush1.msra.mxu0 0.0
      %1708 = vmatprep.subr.mxu0 0.0
      %1709 = vmatpush1.msra.mxu0 0.0
      %1710 = vmatprep.subr.mxu0 0.0
      %1711 = vmatpush1.msra.mxu0 0.0
      %1712 = vmatprep.subr.mxu0 0.0
      %1713 = vmatpush1.msra.mxu0 0.0
      %1714 = vmatprep.subr.mxu0 0.0
      %1715 = vmatpush1.msra.mxu0 0.0
      %1716 = vmatprep.subr.mxu0 0.0
      %1717 = vmatpush1.msra.mxu0 0.0
      %1718 = vmatprep.subr.mxu0 0.0
      %1719 = vmatpush1.msra.mxu0 0.0
      %1720 = vmatprep.subr.mxu0 0.0
      %1721 = vmatpush1.msra.mxu0 0.0
      %1722 = vmatprep.subr.mxu0 0.0
      %1723 = vmatpush1.msra.mxu0 0.0
      %1724 = vmatprep.subr.mxu0 0.0
      %1725 = vmatpush1.msra.mxu0 0.0
      %1726 = vmatprep.subr.mxu0 0.0
      %1727 = vmatpush1.msra.mxu0 0.0
      %1728 = vmatprep.subr.mxu0 0.0
      %1729 = vmatpush1.msra.mxu0 0.0
      %1730 = vmatprep.subr.mxu0 0.0
      %1731 = vmatpush1.msra.mxu0 0.0
      %1732 = vmatprep.subr.mxu0 0.0
      %1733 = vmatpush1.msra.mxu0 0.0
      %1734 = vmatprep.subr.mxu0 0.0
      %1735 = vmatpush1.msra.mxu0 0.0
      %1736 = vmatprep.subr.mxu0 0.0
      %1737 = vmatpush1.msra.mxu0 0.0
      %1738 = vmatprep.subr.mxu0 0.0
      %1739 = vmatpush1.msra.mxu0 0.0
      %1740 = vmatprep.subr.mxu0 0.0
      %1741 = vmatpush1.msra.mxu0 0.0
      %1742 = vmatprep.subr.mxu0 0.0
      %1743 = vmatpush1.msra.mxu0 0.0
      %1744 = vmatprep.subr.mxu0 0.0
      %1745 = vmatpush1.msra.mxu0 0.0
      %1746 = vmatprep.mubr.f32.mxu0 0.0
      %1747 = vmatmul.mubr.f32.gmra.mrb[0].mxu0 %v812
      %v1748 = vpop.f32.mrb[0].mxu0
      %v1749 = vadd.f32 0.0, %v1748
      %v1750 = vpop.f32.mrb[0].mxu0
      %1751 = vmatprep.mubr.f32.mxu0 0.0
      %1752 = vmatmul.mubr.f32.gmra.mrb[0].mxu0 %v815
      %v1753 = vpop.f32.mrb[0].mxu0
      %v1754 = vadd.f32 0.0, %v1753
      %v1755 = vpop.f32.mrb[0].mxu0
      %1756 = vmatprep.mubr.f32.mxu0 0.0
      %1757 = vmatmul.mubr.f32.gmra.mrb[0].mxu0 %v818
      %v1758 = vpop.f32.mrb[0].mxu0
      %v1759 = vadd.f32 0.0, %v1758
      %v1760 = vpop.f32.mrb[0].mxu0
      %1761 = vdwg.mxu0
      %v1762 = vadd.f32 %v1675, %v1749
      %v1763 = vadd.f32 %v1676, %v1754
      %v1764 = vadd.f32 %v1677, %v1759
      %v1765 = vld [vmem:[%s809] sm:$0xf]
      %1767 = vrot.lane.b32.xlu0 %v1765, 127
      %v1768 = vpop.permute.xlu0 %1767
      %v1769 = vsel %vm537, %v1768, 0
      %1771 = vmatprep.subr.mxu0 0.0
      %1772 = vmatpush1.msra.mxu0 %v1769
      %1773 = vmatprep.subr.mxu0 0.0
      %1774 = vmatpush1.msra.mxu0 0.0
      %1775 = vmatprep.subr.mxu0 0.0
      %1776 = vmatpush1.msra.mxu0 0.0
      %1777 = vmatprep.subr.mxu0 0.0
      %1778 = vmatpush1.msra.mxu0 0.0
      %1779 = vmatprep.subr.mxu0 0.0
      %1780 = vmatpush1.msra.mxu0 0.0
      %1781 = vmatprep.subr.mxu0 0.0
      %1782 = vmatpush1.msra.mxu0 0.0
      %1783 = vmatprep.subr.mxu0 0.0
      %1784 = vmatpush1.msra.mxu0 0.0
      %1785 = vmatprep.subr.mxu0 0.0
      %1786 = vmatpush1.msra.mxu0 0.0
      %1787 = vmatprep.subr.mxu0 0.0
      %1788 = vmatpush1.msra.mxu0 0.0
      %1789 = vmatprep.subr.mxu0 0.0
      %1790 = vmatpush1.msra.mxu0 0.0
      %1791 = vmatprep.subr.mxu0 0.0
      %1792 = vmatpush1.msra.mxu0 0.0
      %1793 = vmatprep.subr.mxu0 0.0
      %1794 = vmatpush1.msra.mxu0 0.0
      %1795 = vmatprep.subr.mxu0 0.0
      %1796 = vmatpush1.msra.mxu0 0.0
      %1797 = vmatprep.subr.mxu0 0.0
      %1798 = vmatpush1.msra.mxu0 0.0
      %1799 = vmatprep.subr.mxu0 0.0
      %1800 = vmatpush1.msra.mxu0 0.0
      %1801 = vmatprep.subr.mxu0 0.0
      %1802 = vmatpush1.msra.mxu0 0.0
      %1803 = vmatprep.subr.mxu0 0.0
      %1804 = vmatpush1.msra.mxu0 0.0
      %1805 = vmatprep.subr.mxu0 0.0
      %1806 = vmatpush1.msra.mxu0 0.0
      %1807 = vmatprep.subr.mxu0 0.0
      %1808 = vmatpush1.msra.mxu0 0.0
      %1809 = vmatprep.subr.mxu0 0.0
      %1810 = vmatpush1.msra.mxu0 0.0
      %1811 = vmatprep.subr.mxu0 0.0
      %1812 = vmatpush1.msra.mxu0 0.0
      %1813 = vmatprep.subr.mxu0 0.0
      %1814 = vmatpush1.msra.mxu0 0.0
      %1815 = vmatprep.subr.mxu0 0.0
      %1816 = vmatpush1.msra.mxu0 0.0
      %1817 = vmatprep.subr.mxu0 0.0
      %1818 = vmatpush1.msra.mxu0 0.0
      %1819 = vmatprep.subr.mxu0 0.0
      %1820 = vmatpush1.msra.mxu0 0.0
      %1821 = vmatprep.subr.mxu0 0.0
      %1822 = vmatpush1.msra.mxu0 0.0
      %1823 = vmatprep.subr.mxu0 0.0
      %1824 = vmatpush1.msra.mxu0 0.0
      %1825 = vmatprep.subr.mxu0 0.0
      %1826 = vmatpush1.msra.mxu0 0.0
      %1827 = vmatprep.subr.mxu0 0.0
      %1828 = vmatpush1.msra.mxu0 0.0
      %1829 = vmatprep.subr.mxu0 0.0
      %1830 = vmatpush1.msra.mxu0 0.0
      %1831 = vmatprep.subr.mxu0 0.0
      %1832 = vmatpush1.msra.mxu0 0.0
      %1833 = vmatprep.subr.mxu0 0.0
      %1834 = vmatpush1.msra.mxu0 0.0
      %1835 = vmatprep.mubr.f32.mxu0 0.0
      %1836 = vmatmul.mubr.f32.gmra.mrb[0].mxu0 %v909
      %v1837 = vpop.f32.mrb[0].mxu0
      %v1838 = vadd.f32 0.0, %v1837
      %v1839 = vpop.f32.mrb[0].mxu0
      %1840 = vmatprep.mubr.f32.mxu0 0.0
      %1841 = vmatmul.mubr.f32.gmra.mrb[0].mxu0 %v912
      %v1842 = vpop.f32.mrb[0].mxu0
      %v1843 = vadd.f32 0.0, %v1842
      %v1844 = vpop.f32.mrb[0].mxu0
      %1845 = vmatprep.mubr.f32.mxu0 0.0
      %1846 = vmatmul.mubr.f32.gmra.mrb[0].mxu0 %v915
      %v1847 = vpop.f32.mrb[0].mxu0
      %v1848 = vadd.f32 0.0, %v1847
      %v1849 = vpop.f32.mrb[0].mxu0
      %1850 = vdwg.mxu0
      %v1851 = vadd.f32 %v1762, %v1838
      %v1852 = vadd.f32 %v1763, %v1843
      %v1853 = vadd.f32 %v1764, %v1848
      %1854 = vrot.lane.b32.xlu0 %v1678, 127
      %v1855 = vpop.permute.xlu0 %1854
      %v1856 = vsel %vm537, %v1855, 0
      %1858 = vmatprep.subr.mxu0 0.0
      %1859 = vmatpush1.msra.mxu0 %v1856
      %1860 = vmatprep.subr.mxu0 0.0
      %1861 = vmatpush1.msra.mxu0 0.0
      %1862 = vmatprep.subr.mxu0 0.0
      %1863 = vmatpush1.msra.mxu0 0.0
      %1864 = vmatprep.subr.mxu0 0.0
      %1865 = vmatpush1.msra.mxu0 0.0
      %1866 = vmatprep.subr.mxu0 0.0
      %1867 = vmatpush1.msra.mxu0 0.0
      %1868 = vmatprep.subr.mxu0 0.0
      %1869 = vmatpush1.msra.mxu0 0.0
      %1870 = vmatprep.subr.mxu0 0.0
      %1871 = vmatpush1.msra.mxu0 0.0
      %1872 = vmatprep.subr.mxu0 0.0
      %1873 = vmatpush1.msra.mxu0 0.0
      %1874 = vmatprep.subr.mxu0 0.0
      %1875 = vmatpush1.msra.mxu0 0.0
      %1876 = vmatprep.subr.mxu0 0.0
      %1877 = vmatpush1.msra.mxu0 0.0
      %1878 = vmatprep.subr.mxu0 0.0
      %1879 = vmatpush1.msra.mxu0 0.0
      %1880 = vmatprep.subr.mxu0 0.0
      %1881 = vmatpush1.msra.mxu0 0.0
      %1882 = vmatprep.subr.mxu0 0.0
      %1883 = vmatpush1.msra.mxu0 0.0
      %1884 = vmatprep.subr.mxu0 0.0
      %1885 = vmatpush1.msra.mxu0 0.0
      %1886 = vmatprep.subr.mxu0 0.0
      %1887 = vmatpush1.msra.mxu0 0.0
      %1888 = vmatprep.subr.mxu0 0.0
      %1889 = vmatpush1.msra.mxu0 0.0
      %1890 = vmatprep.subr.mxu0 0.0
      %1891 = vmatpush1.msra.mxu0 0.0
      %1892 = vmatprep.subr.mxu0 0.0
      %1893 = vmatpush1.msra.mxu0 0.0
      %1894 = vmatprep.subr.mxu0 0.0
      %1895 = vmatpush1.msra.mxu0 0.0
      %1896 = vmatprep.subr.mxu0 0.0
      %1897 = vmatpush1.msra.mxu0 0.0
      %1898 = vmatprep.subr.mxu0 0.0
      %1899 = vmatpush1.msra.mxu0 0.0
      %1900 = vmatprep.subr.mxu0 0.0
      %1901 = vmatpush1.msra.mxu0 0.0
      %1902 = vmatprep.subr.mxu0 0.0
      %1903 = vmatpush1.msra.mxu0 0.0
      %1904 = vmatprep.subr.mxu0 0.0
      %1905 = vmatpush1.msra.mxu0 0.0
      %1906 = vmatprep.subr.mxu0 0.0
      %1907 = vmatpush1.msra.mxu0 0.0
      %1908 = vmatprep.subr.mxu0 0.0
      %1909 = vmatpush1.msra.mxu0 0.0
      %1910 = vmatprep.subr.mxu0 0.0
      %1911 = vmatpush1.msra.mxu0 0.0
      %1912 = vmatprep.subr.mxu0 0.0
      %1913 = vmatpush1.msra.mxu0 0.0
      %1914 = vmatprep.subr.mxu0 0.0
      %1915 = vmatpush1.msra.mxu0 0.0
      %1916 = vmatprep.subr.mxu0 0.0
      %1917 = vmatpush1.msra.mxu0 0.0
      %1918 = vmatprep.subr.mxu0 0.0
      %1919 = vmatpush1.msra.mxu0 0.0
      %1920 = vmatprep.subr.mxu0 0.0
      %1921 = vmatpush1.msra.mxu0 0.0
      %1922 = vmatprep.mubr.f32.mxu0 0.0
      %1923 = vmatmul.mubr.f32.gmra.mrb[0].mxu0 %v1006
      %v1924 = vpop.f32.mrb[0].mxu0
      %v1925 = vadd.f32 0.0, %v1924
      %v1926 = vpop.f32.mrb[0].mxu0
      %1927 = vmatprep.mubr.f32.mxu0 0.0
      %1928 = vmatmul.mubr.f32.gmra.mrb[0].mxu0 %v1009
      %v1929 = vpop.f32.mrb[0].mxu0
      %v1930 = vadd.f32 0.0, %v1929
      %v1931 = vpop.f32.mrb[0].mxu0
      %1932 = vmatprep.mubr.f32.mxu0 0.0
      %1933 = vmatmul.mubr.f32.gmra.mrb[0].mxu0 %v1012
      %v1934 = vpop.f32.mrb[0].mxu0
      %v1935 = vadd.f32 0.0, %v1934
      %v1936 = vpop.f32.mrb[0].mxu0
      %1937 = vdwg.mxu0
      %v1938 = vadd.f32 %v1851, %v1925
      %v1939 = vadd.f32 %v1852, %v1930
      %v1940 = vadd.f32 %v1853, %v1935
      %1941 = vrot.lane.b32.xlu0 %v1421, 118
      %v1942 = vpop.permute.xlu0 %1941
      %v1943 = vsel %vm537, %v1942, 0
      %1945 = vmatprep.subr.mxu0 0.0
      %1946 = vmatpush1.msra.mxu0 %v1943
      %1947 = vmatprep.subr.mxu0 0.0
      %1948 = vmatpush1.msra.mxu0 0.0
      %1949 = vmatprep.subr.mxu0 0.0
      %1950 = vmatpush1.msra.mxu0 0.0
      %1951 = vmatprep.subr.mxu0 0.0
      %1952 = vmatpush1.msra.mxu0 0.0
      %1953 = vmatprep.subr.mxu0 0.0
      %1954 = vmatpush1.msra.mxu0 0.0
      %1955 = vmatprep.subr.mxu0 0.0
      %1956 = vmatpush1.msra.mxu0 0.0
      %1957 = vmatprep.subr.mxu0 0.0
      %1958 = vmatpush1.msra.mxu0 0.0
      %1959 = vmatprep.subr.mxu0 0.0
      %1960 = vmatpush1.msra.mxu0 0.0
      %1961 = vmatprep.subr.mxu0 0.0
      %1962 = vmatpush1.msra.mxu0 0.0
      %1963 = vmatprep.subr.mxu0 0.0
      %1964 = vmatpush1.msra.mxu0 0.0
      %1965 = vmatprep.subr.mxu0 0.0
      %1966 = vmatpush1.msra.mxu0 0.0
      %1967 = vmatprep.subr.mxu0 0.0
      %1968 = vmatpush1.msra.mxu0 0.0
      %1969 = vmatprep.subr.mxu0 0.0
      %1970 = vmatpush1.msra.mxu0 0.0
      %1971 = vmatprep.subr.mxu0 0.0
      %1972 = vmatpush1.msra.mxu0 0.0
      %1973 = vmatprep.subr.mxu0 0.0
      %1974 = vmatpush1.msra.mxu0 0.0
      %1975 = vmatprep.subr.mxu0 0.0
      %1976 = vmatpush1.msra.mxu0 0.0
      %1977 = vmatprep.subr.mxu0 0.0
      %1978 = vmatpush1.msra.mxu0 0.0
      %1979 = vmatprep.subr.mxu0 0.0
      %1980 = vmatpush1.msra.mxu0 0.0
      %1981 = vmatprep.subr.mxu0 0.0
      %1982 = vmatpush1.msra.mxu0 0.0
      %1983 = vmatprep.subr.mxu0 0.0
      %1984 = vmatpush1.msra.mxu0 0.0
      %1985 = vmatprep.subr.mxu0 0.0
      %1986 = vmatpush1.msra.mxu0 0.0
      %1987 = vmatprep.subr.mxu0 0.0
      %1988 = vmatpush1.msra.mxu0 0.0
      %1989 = vmatprep.subr.mxu0 0.0
      %1990 = vmatpush1.msra.mxu0 0.0
      %1991 = vmatprep.subr.mxu0 0.0
      %1992 = vmatpush1.msra.mxu0 0.0
      %1993 = vmatprep.subr.mxu0 0.0
      %1994 = vmatpush1.msra.mxu0 0.0
      %1995 = vmatprep.subr.mxu0 0.0
      %1996 = vmatpush1.msra.mxu0 0.0
      %1997 = vmatprep.subr.mxu0 0.0
      %1998 = vmatpush1.msra.mxu0 0.0
      %1999 = vmatprep.subr.mxu0 0.0
      %2000 = vmatpush1.msra.mxu0 0.0
      %2001 = vmatprep.subr.mxu0 0.0
      %2002 = vmatpush1.msra.mxu0 0.0
      %2003 = vmatprep.subr.mxu0 0.0
      %2004 = vmatpush1.msra.mxu0 0.0
      %2005 = vmatprep.subr.mxu0 0.0
      %2006 = vmatpush1.msra.mxu0 0.0
      %2007 = vmatprep.subr.mxu0 0.0
      %2008 = vmatpush1.msra.mxu0 0.0
      %2009 = vmatprep.mubr.f32.mxu0 0.0
      %2010 = vmatmul.mubr.f32.gmra.mrb[0].mxu0 %v1102
      %v2011 = vpop.f32.mrb[0].mxu0
      %v2012 = vadd.f32 0.0, %v2011
      %v2013 = vpop.f32.mrb[0].mxu0
      %2014 = vmatprep.mubr.f32.mxu0 0.0
      %2015 = vmatmul.mubr.f32.gmra.mrb[0].mxu0 %v1105
      %v2016 = vpop.f32.mrb[0].mxu0
      %v2017 = vadd.f32 0.0, %v2016
      %v2018 = vpop.f32.mrb[0].mxu0
      %2019 = vmatprep.mubr.f32.mxu0 0.0
      %2020 = vmatmul.mubr.f32.gmra.mrb[0].mxu0 %v1108
      %v2021 = vpop.f32.mrb[0].mxu0
      %v2022 = vadd.f32 0.0, %v2021
      %v2023 = vpop.f32.mrb[0].mxu0
      %2024 = vdwg.mxu0
      %v2025 = vadd.f32 %v1938, %v2012
      %v2026 = vadd.f32 %v1939, %v2017
      %v2027 = vadd.f32 %v1940, %v2022
      %2028 = vrot.lane.b32.xlu0 %v1422, 117
      %v2029 = vpop.permute.xlu0 %2028
      %v2030 = vsel %vm537, %v2029, 0
      %2032 = vmatprep.subr.mxu0 0.0
      %2033 = vmatpush1.msra.mxu0 %v2030
      %2034 = vmatprep.subr.mxu0 0.0
      %2035 = vmatpush1.msra.mxu0 0.0
      %2036 = vmatprep.subr.mxu0 0.0
      %2037 = vmatpush1.msra.mxu0 0.0
      %2038 = vmatprep.subr.mxu0 0.0
      %2039 = vmatpush1.msra.mxu0 0.0
      %2040 = vmatprep.subr.mxu0 0.0
      %2041 = vmatpush1.msra.mxu0 0.0
      %2042 = vmatprep.subr.mxu0 0.0
      %2043 = vmatpush1.msra.mxu0 0.0
      %2044 = vmatprep.subr.mxu0 0.0
      %2045 = vmatpush1.msra.mxu0 0.0
      %2046 = vmatprep.subr.mxu0 0.0
      %2047 = vmatpush1.msra.mxu0 0.0
      %2048 = vmatprep.subr.mxu0 0.0
      %2049 = vmatpush1.msra.mxu0 0.0
      %2050 = vmatprep.subr.mxu0 0.0
      %2051 = vmatpush1.msra.mxu0 0.0
      %2052 = vmatprep.subr.mxu0 0.0
      %2053 = vmatpush1.msra.mxu0 0.0
      %2054 = vmatprep.subr.mxu0 0.0
      %2055 = vmatpush1.msra.mxu0 0.0
      %2056 = vmatprep.subr.mxu0 0.0
      %2057 = vmatpush1.msra.mxu0 0.0
      %2058 = vmatprep.subr.mxu0 0.0
      %2059 = vmatpush1.msra.mxu0 0.0
      %2060 = vmatprep.subr.mxu0 0.0
      %2061 = vmatpush1.msra.mxu0 0.0
      %2062 = vmatprep.subr.mxu0 0.0
      %2063 = vmatpush1.msra.mxu0 0.0
      %2064 = vmatprep.subr.mxu0 0.0
      %2065 = vmatpush1.msra.mxu0 0.0
      %2066 = vmatprep.subr.mxu0 0.0
      %2067 = vmatpush1.msra.mxu0 0.0
      %2068 = vmatprep.subr.mxu0 0.0
      %2069 = vmatpush1.msra.mxu0 0.0
      %2070 = vmatprep.subr.mxu0 0.0
      %2071 = vmatpush1.msra.mxu0 0.0
      %2072 = vmatprep.subr.mxu0 0.0
      %2073 = vmatpush1.msra.mxu0 0.0
      %2074 = vmatprep.subr.mxu0 0.0
      %2075 = vmatpush1.msra.mxu0 0.0
      %2076 = vmatprep.subr.mxu0 0.0
      %2077 = vmatpush1.msra.mxu0 0.0
      %2078 = vmatprep.subr.mxu0 0.0
      %2079 = vmatpush1.msra.mxu0 0.0
      %2080 = vmatprep.subr.mxu0 0.0
      %2081 = vmatpush1.msra.mxu0 0.0
      %2082 = vmatprep.subr.mxu0 0.0
      %2083 = vmatpush1.msra.mxu0 0.0
      %2084 = vmatprep.subr.mxu0 0.0
      %2085 = vmatpush1.msra.mxu0 0.0
      %2086 = vmatprep.subr.mxu0 0.0
      %2087 = vmatpush1.msra.mxu0 0.0
      %2088 = vmatprep.subr.mxu0 0.0
      %2089 = vmatpush1.msra.mxu0 0.0
      %2090 = vmatprep.subr.mxu0 0.0
      %2091 = vmatpush1.msra.mxu0 0.0
      %2092 = vmatprep.subr.mxu0 0.0
      %2093 = vmatpush1.msra.mxu0 0.0
      %2094 = vmatprep.subr.mxu0 0.0
      %2095 = vmatpush1.msra.mxu0 0.0
      %2096 = vmatprep.mubr.f32.mxu0 0.0
      %2097 = vmatmul.mubr.f32.gmra.mrb[0].mxu0 %v1198
      %v2098 = vpop.f32.mrb[0].mxu0
      %v2099 = vadd.f32 0.0, %v2098
      %v2100 = vpop.f32.mrb[0].mxu0
      %2101 = vmatprep.mubr.f32.mxu0 0.0
      %2102 = vmatmul.mubr.f32.gmra.mrb[0].mxu0 %v1201
      %v2103 = vpop.f32.mrb[0].mxu0
      %v2104 = vadd.f32 0.0, %v2103
      %v2105 = vpop.f32.mrb[0].mxu0
      %2106 = vmatprep.mubr.f32.mxu0 0.0
      %2107 = vmatmul.mubr.f32.gmra.mrb[0].mxu0 %v1204
      %v2108 = vpop.f32.mrb[0].mxu0
      %v2109 = vadd.f32 0.0, %v2108
      %v2110 = vpop.f32.mrb[0].mxu0
      %2111 = vdwg.mxu0
      %v2112 = vadd.f32 %v2025, %v2099
      %v2113 = vadd.f32 %v2026, %v2104
      %v2114 = vadd.f32 %v2027, %v2109
      %2115 = vrot.lane.b32.xlu0 %v1421, 117
      %v2116 = vpop.permute.xlu0 %2115
      %v2117 = vsel %vm537, %v2116, 0
      %2119 = vmatprep.subr.mxu0 0.0
      %2120 = vmatpush1.msra.mxu0 %v2117
      %2121 = vmatprep.subr.mxu0 0.0
      %2122 = vmatpush1.msra.mxu0 0.0
      %2123 = vmatprep.subr.mxu0 0.0
      %2124 = vmatpush1.msra.mxu0 0.0
      %2125 = vmatprep.subr.mxu0 0.0
      %2126 = vmatpush1.msra.mxu0 0.0
      %2127 = vmatprep.subr.mxu0 0.0
      %2128 = vmatpush1.msra.mxu0 0.0
      %2129 = vmatprep.subr.mxu0 0.0
      %2130 = vmatpush1.msra.mxu0 0.0
      %2131 = vmatprep.subr.mxu0 0.0
      %2132 = vmatpush1.msra.mxu0 0.0
      %2133 = vmatprep.subr.mxu0 0.0
      %2134 = vmatpush1.msra.mxu0 0.0
      %2135 = vmatprep.subr.mxu0 0.0
      %2136 = vmatpush1.msra.mxu0 0.0
      %2137 = vmatprep.subr.mxu0 0.0
      %2138 = vmatpush1.msra.mxu0 0.0
      %2139 = vmatprep.subr.mxu0 0.0
      %2140 = vmatpush1.msra.mxu0 0.0
      %2141 = vmatprep.subr.mxu0 0.0
      %2142 = vmatpush1.msra.mxu0 0.0
      %2143 = vmatprep.subr.mxu0 0.0
      %2144 = vmatpush1.msra.mxu0 0.0
      %2145 = vmatprep.subr.mxu0 0.0
      %2146 = vmatpush1.msra.mxu0 0.0
      %2147 = vmatprep.subr.mxu0 0.0
      %2148 = vmatpush1.msra.mxu0 0.0
      %2149 = vmatprep.subr.mxu0 0.0
      %2150 = vmatpush1.msra.mxu0 0.0
      %2151 = vmatprep.subr.mxu0 0.0
      %2152 = vmatpush1.msra.mxu0 0.0
      %2153 = vmatprep.subr.mxu0 0.0
      %2154 = vmatpush1.msra.mxu0 0.0
      %2155 = vmatprep.subr.mxu0 0.0
      %2156 = vmatpush1.msra.mxu0 0.0
      %2157 = vmatprep.subr.mxu0 0.0
      %2158 = vmatpush1.msra.mxu0 0.0
      %2159 = vmatprep.subr.mxu0 0.0
      %2160 = vmatpush1.msra.mxu0 0.0
      %2161 = vmatprep.subr.mxu0 0.0
      %2162 = vmatpush1.msra.mxu0 0.0
      %2163 = vmatprep.subr.mxu0 0.0
      %2164 = vmatpush1.msra.mxu0 0.0
      %2165 = vmatprep.subr.mxu0 0.0
      %2166 = vmatpush1.msra.mxu0 0.0
      %2167 = vmatprep.subr.mxu0 0.0
      %2168 = vmatpush1.msra.mxu0 0.0
      %2169 = vmatprep.subr.mxu0 0.0
      %2170 = vmatpush1.msra.mxu0 0.0
      %2171 = vmatprep.subr.mxu0 0.0
      %2172 = vmatpush1.msra.mxu0 0.0
      %2173 = vmatprep.subr.mxu0 0.0
      %2174 = vmatpush1.msra.mxu0 0.0
      %2175 = vmatprep.subr.mxu0 0.0
      %2176 = vmatpush1.msra.mxu0 0.0
      %2177 = vmatprep.subr.mxu0 0.0
      %2178 = vmatpush1.msra.mxu0 0.0
      %2179 = vmatprep.subr.mxu0 0.0
      %2180 = vmatpush1.msra.mxu0 0.0
      %2181 = vmatprep.subr.mxu0 0.0
      %2182 = vmatpush1.msra.mxu0 0.0
      %2183 = vmatprep.mubr.f32.mxu0 0.0
      %2184 = vmatmul.mubr.f32.gmra.mrb[0].mxu0 %v1294
      %v2185 = vpop.f32.mrb[0].mxu0
      %v2186 = vadd.f32 0.0, %v2185
      %v2187 = vpop.f32.mrb[0].mxu0
      %2188 = vmatprep.mubr.f32.mxu0 0.0
      %2189 = vmatmul.mubr.f32.gmra.mrb[0].mxu0 %v1297
      %v2190 = vpop.f32.mrb[0].mxu0
      %v2191 = vadd.f32 0.0, %v2190
      %v2192 = vpop.f32.mrb[0].mxu0
      %2193 = vmatprep.mubr.f32.mxu0 0.0
      %2194 = vmatmul.mubr.f32.gmra.mrb[0].mxu0 %v1300
      %v2195 = vpop.f32.mrb[0].mxu0
      %v2196 = vadd.f32 0.0, %v2195
      %v2197 = vpop.f32.mrb[0].mxu0
      %2198 = vdwg.mxu0
      %v2199 = vadd.f32 %v2112, %v2186
      %v2200 = vadd.f32 %v2113, %v2191
      %v2201 = vadd.f32 %v2114, %v2196
      %v2202 = vadd.f32 %v2199, %v1390
      %v2203 = vadd.f32 %v2200, %v1395
      %v2204 = vadd.f32 %v2201, %v1400
      %v2205 = vmax.f32 %v2202, 0.0
      %v2206 = vmax.f32 %v2203, 0.0
      %v2207 = vmax.f32 %v2204, 0.0
      %v2208 = vsel %vm1413, %v2205, 0.0
      %v2209 = vsel %vm1413, %v2206, 0.0
      %v2210 = vsel %vm1413, %v2207, 0.0
      %2214 = vrot.lane.b32.xlu0 %v2208, 1
      %v2215 = vpop.permute.xlu0 %2214
      %2216 = vrot.lane.b32.xlu0 %v2209, 1
      %v2217 = vpop.permute.xlu0 %2216
      %2218 = vrot.lane.b32.xlu0 %v2210, 1
      %v2219 = vpop.permute.xlu0 %2218
      %vm2223 = vcmask 662536
      %2224 = vst.msk [vmem:[%s503] sm:$0xff] %vm2223, %v2215
      %2225 = vst.msk [vmem:[%s503 + $0x8] sm:$0xff] %vm2223, %v2217
      %2226 = vst.msk [vmem:[%s503 + $0x10] sm:$0xff] %vm2223, %v2219
      %v2227 = vld [vmem:[%s809] sm:$0xf]
      %v2228 = vld [vmem:[%s906] sm:$0xf]
      %v2230 = vsel %vm537, %v2228, 0
      %2232 = vmatprep.subr.mxu0 0.0
      %2233 = vmatpush1.msra.mxu0 %v2230
      %2234 = vmatprep.subr.mxu0 0.0
      %2235 = vmatpush1.msra.mxu0 0.0
      %2236 = vmatprep.subr.mxu0 0.0
      %2237 = vmatpush1.msra.mxu0 0.0
      %2238 = vmatprep.subr.mxu0 0.0
      %2239 = vmatpush1.msra.mxu0 0.0
      %2240 = vmatprep.subr.mxu0 0.0
      %2241 = vmatpush1.msra.mxu0 0.0
      %2242 = vmatprep.subr.mxu0 0.0
      %2243 = vmatpush1.msra.mxu0 0.0
      %2244 = vmatprep.subr.mxu0 0.0
      %2245 = vmatpush1.msra.mxu0 0.0
      %2246 = vmatprep.subr.mxu0 0.0
      %2247 = vmatpush1.msra.mxu0 0.0
      %2248 = vmatprep.subr.mxu0 0.0
      %2249 = vmatpush1.msra.mxu0 0.0
      %2250 = vmatprep.subr.mxu0 0.0
      %2251 = vmatpush1.msra.mxu0 0.0
      %2252 = vmatprep.subr.mxu0 0.0
      %2253 = vmatpush1.msra.mxu0 0.0
      %2254 = vmatprep.subr.mxu0 0.0
      %2255 = vmatpush1.msra.mxu0 0.0
      %2256 = vmatprep.subr.mxu0 0.0
      %2257 = vmatpush1.msra.mxu0 0.0
      %2258 = vmatprep.subr.mxu0 0.0
      %2259 = vmatpush1.msra.mxu0 0.0
      %2260 = vmatprep.subr.mxu0 0.0
      %2261 = vmatpush1.msra.mxu0 0.0
      %2262 = vmatprep.subr.mxu0 0.0
      %2263 = vmatpush1.msra.mxu0 0.0
      %2264 = vmatprep.subr.mxu0 0.0
      %2265 = vmatpush1.msra.mxu0 0.0
      %2266 = vmatprep.subr.mxu0 0.0
      %2267 = vmatpush1.msra.mxu0 0.0
      %2268 = vmatprep.subr.mxu0 0.0
      %2269 = vmatpush1.msra.mxu0 0.0
      %2270 = vmatprep.subr.mxu0 0.0
      %2271 = vmatpush1.msra.mxu0 0.0
      %2272 = vmatprep.subr.mxu0 0.0
      %2273 = vmatpush1.msra.mxu0 0.0
      %2274 = vmatprep.subr.mxu0 0.0
      %2275 = vmatpush1.msra.mxu0 0.0
      %2276 = vmatprep.subr.mxu0 0.0
      %2277 = vmatpush1.msra.mxu0 0.0
      %2278 = vmatprep.subr.mxu0 0.0
      %2279 = vmatpush1.msra.mxu0 0.0
      %2280 = vmatprep.subr.mxu0 0.0
      %2281 = vmatpush1.msra.mxu0 0.0
      %2282 = vmatprep.subr.mxu0 0.0
      %2283 = vmatpush1.msra.mxu0 0.0
      %2284 = vmatprep.subr.mxu0 0.0
      %2285 = vmatpush1.msra.mxu0 0.0
      %2286 = vmatprep.subr.mxu0 0.0
      %2287 = vmatpush1.msra.mxu0 0.0
      %2288 = vmatprep.subr.mxu0 0.0
      %2289 = vmatpush1.msra.mxu0 0.0
      %2290 = vmatprep.subr.mxu0 0.0
      %2291 = vmatpush1.msra.mxu0 0.0
      %2292 = vmatprep.subr.mxu0 0.0
      %2293 = vmatpush1.msra.mxu0 0.0
      %2294 = vmatprep.subr.mxu0 0.0
      %2295 = vmatpush1.msra.mxu0 0.0
      %2296 = vmatprep.mubr.f32.mxu0 0.0
      %2297 = vmatmul.mubr.f32.gmra.mrb[0].mxu0 %v529
      %v2298 = vpop.f32.mrb[0].mxu0
      %v2299 = vadd.f32 0.0, %v2298
      %v2300 = vpop.f32.mrb[0].mxu0
      %2301 = vmatprep.mubr.f32.mxu0 0.0
      %2302 = vmatmul.mubr.f32.gmra.mrb[0].mxu0 %v532
      %v2303 = vpop.f32.mrb[0].mxu0
      %v2304 = vadd.f32 0.0, %v2303
      %v2305 = vpop.f32.mrb[0].mxu0
      %2306 = vmatprep.mubr.f32.mxu0 0.0
      %2307 = vmatmul.mubr.f32.gmra.mrb[0].mxu0 %v535
      %v2308 = vpop.f32.mrb[0].mxu0
      %v2309 = vadd.f32 0.0, %v2308
      %v2310 = vpop.f32.mrb[0].mxu0
      %2311 = vdwg.mxu0
      %v2313 = vsel %vm537, %v2227, 0
      %2315 = vmatprep.subr.mxu0 0.0
      %2316 = vmatpush1.msra.mxu0 %v2313
      %2317 = vmatprep.subr.mxu0 0.0
      %2318 = vmatpush1.msra.mxu0 0.0
      %2319 = vmatprep.subr.mxu0 0.0
      %2320 = vmatpush1.msra.mxu0 0.0
      %2321 = vmatprep.subr.mxu0 0.0
      %2322 = vmatpush1.msra.mxu0 0.0
      %2323 = vmatprep.subr.mxu0 0.0
      %2324 = vmatpush1.msra.mxu0 0.0
      %2325 = vmatprep.subr.mxu0 0.0
      %2326 = vmatpush1.msra.mxu0 0.0
      %2327 = vmatprep.subr.mxu0 0.0
      %2328 = vmatpush1.msra.mxu0 0.0
      %2329 = vmatprep.subr.mxu0 0.0
      %2330 = vmatpush1.msra.mxu0 0.0
      %2331 = vmatprep.subr.mxu0 0.0
      %2332 = vmatpush1.msra.mxu0 0.0
      %2333 = vmatprep.subr.mxu0 0.0
      %2334 = vmatpush1.msra.mxu0 0.0
      %2335 = vmatprep.subr.mxu0 0.0
      %2336 = vmatpush1.msra.mxu0 0.0
      %2337 = vmatprep.subr.mxu0 0.0
      %2338 = vmatpush1.msra.mxu0 0.0
      %2339 = vmatprep.subr.mxu0 0.0
      %2340 = vmatpush1.msra.mxu0 0.0
      %2341 = vmatprep.subr.mxu0 0.0
      %2342 = vmatpush1.msra.mxu0 0.0
      %2343 = vmatprep.subr.mxu0 0.0
      %2344 = vmatpush1.msra.mxu0 0.0
      %2345 = vmatprep.subr.mxu0 0.0
      %2346 = vmatpush1.msra.mxu0 0.0
      %2347 = vmatprep.subr.mxu0 0.0
      %2348 = vmatpush1.msra.mxu0 0.0
      %2349 = vmatprep.subr.mxu0 0.0
      %2350 = vmatpush1.msra.mxu0 0.0
      %2351 = vmatprep.subr.mxu0 0.0
      %2352 = vmatpush1.msra.mxu0 0.0
      %2353 = vmatprep.subr.mxu0 0.0
      %2354 = vmatpush1.msra.mxu0 0.0
      %2355 = vmatprep.subr.mxu0 0.0
      %2356 = vmatpush1.msra.mxu0 0.0
      %2357 = vmatprep.subr.mxu0 0.0
      %2358 = vmatpush1.msra.mxu0 0.0
      %2359 = vmatprep.subr.mxu0 0.0
      %2360 = vmatpush1.msra.mxu0 0.0
      %2361 = vmatprep.subr.mxu0 0.0
      %2362 = vmatpush1.msra.mxu0 0.0
      %2363 = vmatprep.subr.mxu0 0.0
      %2364 = vmatpush1.msra.mxu0 0.0
      %2365 = vmatprep.subr.mxu0 0.0
      %2366 = vmatpush1.msra.mxu0 0.0
      %2367 = vmatprep.subr.mxu0 0.0
      %2368 = vmatpush1.msra.mxu0 0.0
      %2369 = vmatprep.subr.mxu0 0.0
      %2370 = vmatpush1.msra.mxu0 0.0
      %2371 = vmatprep.subr.mxu0 0.0
      %2372 = vmatpush1.msra.mxu0 0.0
      %2373 = vmatprep.subr.mxu0 0.0
      %2374 = vmatpush1.msra.mxu0 0.0
      %2375 = vmatprep.subr.mxu0 0.0
      %2376 = vmatpush1.msra.mxu0 0.0
      %2377 = vmatprep.subr.mxu0 0.0
      %2378 = vmatpush1.msra.mxu0 0.0
      %2379 = vmatprep.mubr.f32.mxu0 0.0
      %2380 = vmatmul.mubr.f32.gmra.mrb[0].mxu0 %v622
      %v2381 = vpop.f32.mrb[0].mxu0
      %v2382 = vadd.f32 %v2299, %v2381
      %v2383 = vpop.f32.mrb[0].mxu0
      %2384 = vmatprep.mubr.f32.mxu0 0.0
      %2385 = vmatmul.mubr.f32.gmra.mrb[0].mxu0 %v625
      %v2386 = vpop.f32.mrb[0].mxu0
      %v2387 = vadd.f32 %v2304, %v2386
      %v2388 = vpop.f32.mrb[0].mxu0
      %2389 = vmatprep.mubr.f32.mxu0 0.0
      %2390 = vmatmul.mubr.f32.gmra.mrb[0].mxu0 %v628
      %v2391 = vpop.f32.mrb[0].mxu0
      %v2392 = vadd.f32 %v2309, %v2391
      %v2393 = vpop.f32.mrb[0].mxu0
      %2394 = vdwg.mxu0
      %2395 = vrot.lane.b32.xlu0 %v2227, 127
      %v2396 = vpop.permute.xlu0 %2395
      %v2397 = vsel %vm537, %v2396, 0
      %2399 = vmatprep.subr.mxu0 0.0
      %2400 = vmatpush1.msra.mxu0 %v2397
      %2401 = vmatprep.subr.mxu0 0.0
      %2402 = vmatpush1.msra.mxu0 0.0
      %2403 = vmatprep.subr.mxu0 0.0
      %2404 = vmatpush1.msra.mxu0 0.0
      %2405 = vmatprep.subr.mxu0 0.0
      %2406 = vmatpush1.msra.mxu0 0.0
      %2407 = vmatprep.subr.mxu0 0.0
      %2408 = vmatpush1.msra.mxu0 0.0
      %2409 = vmatprep.subr.mxu0 0.0
      %2410 = vmatpush1.msra.mxu0 0.0
      %2411 = vmatprep.subr.mxu0 0.0
      %2412 = vmatpush1.msra.mxu0 0.0
      %2413 = vmatprep.subr.mxu0 0.0
      %2414 = vmatpush1.msra.mxu0 0.0
      %2415 = vmatprep.subr.mxu0 0.0
      %2416 = vmatpush1.msra.mxu0 0.0
      %2417 = vmatprep.subr.mxu0 0.0
      %2418 = vmatpush1.msra.mxu0 0.0
      %2419 = vmatprep.subr.mxu0 0.0
      %2420 = vmatpush1.msra.mxu0 0.0
      %2421 = vmatprep.subr.mxu0 0.0
      %2422 = vmatpush1.msra.mxu0 0.0
      %2423 = vmatprep.subr.mxu0 0.0
      %2424 = vmatpush1.msra.mxu0 0.0
      %2425 = vmatprep.subr.mxu0 0.0
      %2426 = vmatpush1.msra.mxu0 0.0
      %2427 = vmatprep.subr.mxu0 0.0
      %2428 = vmatpush1.msra.mxu0 0.0
      %2429 = vmatprep.subr.mxu0 0.0
      %2430 = vmatpush1.msra.mxu0 0.0
      %2431 = vmatprep.subr.mxu0 0.0
      %2432 = vmatpush1.msra.mxu0 0.0
      %2433 = vmatprep.subr.mxu0 0.0
      %2434 = vmatpush1.msra.mxu0 0.0
      %2435 = vmatprep.subr.mxu0 0.0
      %2436 = vmatpush1.msra.mxu0 0.0
      %2437 = vmatprep.subr.mxu0 0.0
      %2438 = vmatpush1.msra.mxu0 0.0
      %2439 = vmatprep.subr.mxu0 0.0
      %2440 = vmatpush1.msra.mxu0 0.0
      %2441 = vmatprep.subr.mxu0 0.0
      %2442 = vmatpush1.msra.mxu0 0.0
      %2443 = vmatprep.subr.mxu0 0.0
      %2444 = vmatpush1.msra.mxu0 0.0
      %2445 = vmatprep.subr.mxu0 0.0
      %2446 = vmatpush1.msra.mxu0 0.0
      %2447 = vmatprep.subr.mxu0 0.0
      %2448 = vmatpush1.msra.mxu0 0.0
      %2449 = vmatprep.subr.mxu0 0.0
      %2450 = vmatpush1.msra.mxu0 0.0
      %2451 = vmatprep.subr.mxu0 0.0
      %2452 = vmatpush1.msra.mxu0 0.0
      %2453 = vmatprep.subr.mxu0 0.0
      %2454 = vmatpush1.msra.mxu0 0.0
      %2455 = vmatprep.subr.mxu0 0.0
      %2456 = vmatpush1.msra.mxu0 0.0
      %2457 = vmatprep.subr.mxu0 0.0
      %2458 = vmatpush1.msra.mxu0 0.0
      %2459 = vmatprep.subr.mxu0 0.0
      %2460 = vmatpush1.msra.mxu0 0.0
      %2461 = vmatprep.subr.mxu0 0.0
      %2462 = vmatpush1.msra.mxu0 0.0
      %2463 = vmatprep.mubr.f32.mxu0 0.0
      %2464 = vmatmul.mubr.f32.gmra.mrb[0].mxu0 %v716
      %v2465 = vpop.f32.mrb[0].mxu0
      %v2466 = vadd.f32 0.0, %v2465
      %v2467 = vpop.f32.mrb[0].mxu0
      %2468 = vmatprep.mubr.f32.mxu0 0.0
      %2469 = vmatmul.mubr.f32.gmra.mrb[0].mxu0 %v719
      %v2470 = vpop.f32.mrb[0].mxu0
      %v2471 = vadd.f32 0.0, %v2470
      %v2472 = vpop.f32.mrb[0].mxu0
      %2473 = vmatprep.mubr.f32.mxu0 0.0
      %2474 = vmatmul.mubr.f32.gmra.mrb[0].mxu0 %v722
      %v2475 = vpop.f32.mrb[0].mxu0
      %v2476 = vadd.f32 0.0, %v2475
      %v2477 = vpop.f32.mrb[0].mxu0
      %2478 = vdwg.mxu0
      %v2479 = vadd.f32 %v2382, %v2466
      %v2480 = vadd.f32 %v2387, %v2471
      %v2481 = vadd.f32 %v2392, %v2476
      %v2482 = vld [vmem:[%s434] sm:$0xf]
      %2484 = vrot.lane.b32.xlu0 %v2482, 118
      %v2485 = vpop.permute.xlu0 %2484
      %v2486 = vsel %vm537, %v2485, 0
      %2488 = vmatprep.subr.mxu0 0.0
      %2489 = vmatpush1.msra.mxu0 %v2486
      %2490 = vmatprep.subr.mxu0 0.0
      %2491 = vmatpush1.msra.mxu0 0.0
      %2492 = vmatprep.subr.mxu0 0.0
      %2493 = vmatpush1.msra.mxu0 0.0
      %2494 = vmatprep.subr.mxu0 0.0
      %2495 = vmatpush1.msra.mxu0 0.0
      %2496 = vmatprep.subr.mxu0 0.0
      %2497 = vmatpush1.msra.mxu0 0.0
      %2498 = vmatprep.subr.mxu0 0.0
      %2499 = vmatpush1.msra.mxu0 0.0
      %2500 = vmatprep.subr.mxu0 0.0
      %2501 = vmatpush1.msra.mxu0 0.0
      %2502 = vmatprep.subr.mxu0 0.0
      %2503 = vmatpush1.msra.mxu0 0.0
      %2504 = vmatprep.subr.mxu0 0.0
      %2505 = vmatpush1.msra.mxu0 0.0
      %2506 = vmatprep.subr.mxu0 0.0
      %2507 = vmatpush1.msra.mxu0 0.0
      %2508 = vmatprep.subr.mxu0 0.0
      %2509 = vmatpush1.msra.mxu0 0.0
      %2510 = vmatprep.subr.mxu0 0.0
      %2511 = vmatpush1.msra.mxu0 0.0
      %2512 = vmatprep.subr.mxu0 0.0
      %2513 = vmatpush1.msra.mxu0 0.0
      %2514 = vmatprep.subr.mxu0 0.0
      %2515 = vmatpush1.msra.mxu0 0.0
      %2516 = vmatprep.subr.mxu0 0.0
      %2517 = vmatpush1.msra.mxu0 0.0
      %2518 = vmatprep.subr.mxu0 0.0
      %2519 = vmatpush1.msra.mxu0 0.0
      %2520 = vmatprep.subr.mxu0 0.0
      %2521 = vmatpush1.msra.mxu0 0.0
      %2522 = vmatprep.subr.mxu0 0.0
      %2523 = vmatpush1.msra.mxu0 0.0
      %2524 = vmatprep.subr.mxu0 0.0
      %2525 = vmatpush1.msra.mxu0 0.0
      %2526 = vmatprep.subr.mxu0 0.0
      %2527 = vmatpush1.msra.mxu0 0.0
      %2528 = vmatprep.subr.mxu0 0.0
      %2529 = vmatpush1.msra.mxu0 0.0
      %2530 = vmatprep.subr.mxu0 0.0
      %2531 = vmatpush1.msra.mxu0 0.0
      %2532 = vmatprep.subr.mxu0 0.0
      %2533 = vmatpush1.msra.mxu0 0.0
      %2534 = vmatprep.subr.mxu0 0.0
      %2535 = vmatpush1.msra.mxu0 0.0
      %2536 = vmatprep.subr.mxu0 0.0
      %2537 = vmatpush1.msra.mxu0 0.0
      %2538 = vmatprep.subr.mxu0 0.0
      %2539 = vmatpush1.msra.mxu0 0.0
      %2540 = vmatprep.subr.mxu0 0.0
      %2541 = vmatpush1.msra.mxu0 0.0
      %2542 = vmatprep.subr.mxu0 0.0
      %2543 = vmatpush1.msra.mxu0 0.0
      %2544 = vmatprep.subr.mxu0 0.0
      %2545 = vmatpush1.msra.mxu0 0.0
      %2546 = vmatprep.subr.mxu0 0.0
      %2547 = vmatpush1.msra.mxu0 0.0
      %2548 = vmatprep.subr.mxu0 0.0
      %2549 = vmatpush1.msra.mxu0 0.0
      %2550 = vmatprep.subr.mxu0 0.0
      %2551 = vmatpush1.msra.mxu0 0.0
      %2552 = vmatprep.mubr.f32.mxu0 0.0
      %2553 = vmatmul.mubr.f32.gmra.mrb[0].mxu0 %v812
      %v2554 = vpop.f32.mrb[0].mxu0
      %v2555 = vadd.f32 0.0, %v2554
      %v2556 = vpop.f32.mrb[0].mxu0
      %2557 = vmatprep.mubr.f32.mxu0 0.0
      %2558 = vmatmul.mubr.f32.gmra.mrb[0].mxu0 %v815
      %v2559 = vpop.f32.mrb[0].mxu0
      %v2560 = vadd.f32 0.0, %v2559
      %v2561 = vpop.f32.mrb[0].mxu0
      %2562 = vmatprep.mubr.f32.mxu0 0.0
      %2563 = vmatmul.mubr.f32.gmra.mrb[0].mxu0 %v818
      %v2564 = vpop.f32.mrb[0].mxu0
      %v2565 = vadd.f32 0.0, %v2564
      %v2566 = vpop.f32.mrb[0].mxu0
      %2567 = vdwg.mxu0
      %v2568 = vadd.f32 %v2479, %v2555
      %v2569 = vadd.f32 %v2480, %v2560
      %v2570 = vadd.f32 %v2481, %v2565
      %v2571 = vld [vmem:[%s525] sm:$0xf]
      %2573 = vrot.lane.b32.xlu0 %v2571, 118
      %v2574 = vpop.permute.xlu0 %2573
      %v2575 = vsel %vm537, %v2574, 0
      %2577 = vmatprep.subr.mxu0 0.0
      %2578 = vmatpush1.msra.mxu0 %v2575
      %2579 = vmatprep.subr.mxu0 0.0
      %2580 = vmatpush1.msra.mxu0 0.0
      %2581 = vmatprep.subr.mxu0 0.0
      %2582 = vmatpush1.msra.mxu0 0.0
      %2583 = vmatprep.subr.mxu0 0.0
      %2584 = vmatpush1.msra.mxu0 0.0
      %2585 = vmatprep.subr.mxu0 0.0
      %2586 = vmatpush1.msra.mxu0 0.0
      %2587 = vmatprep.subr.mxu0 0.0
      %2588 = vmatpush1.msra.mxu0 0.0
      %2589 = vmatprep.subr.mxu0 0.0
      %2590 = vmatpush1.msra.mxu0 0.0
      %2591 = vmatprep.subr.mxu0 0.0
      %2592 = vmatpush1.msra.mxu0 0.0
      %2593 = vmatprep.subr.mxu0 0.0
      %2594 = vmatpush1.msra.mxu0 0.0
      %2595 = vmatprep.subr.mxu0 0.0
      %2596 = vmatpush1.msra.mxu0 0.0
      %2597 = vmatprep.subr.mxu0 0.0
      %2598 = vmatpush1.msra.mxu0 0.0
      %2599 = vmatprep.subr.mxu0 0.0
      %2600 = vmatpush1.msra.mxu0 0.0
      %2601 = vmatprep.subr.mxu0 0.0
      %2602 = vmatpush1.msra.mxu0 0.0
      %2603 = vmatprep.subr.mxu0 0.0
      %2604 = vmatpush1.msra.mxu0 0.0
      %2605 = vmatprep.subr.mxu0 0.0
      %2606 = vmatpush1.msra.mxu0 0.0
      %2607 = vmatprep.subr.mxu0 0.0
      %2608 = vmatpush1.msra.mxu0 0.0
      %2609 = vmatprep.subr.mxu0 0.0
      %2610 = vmatpush1.msra.mxu0 0.0
      %2611 = vmatprep.subr.mxu0 0.0
      %2612 = vmatpush1.msra.mxu0 0.0
      %2613 = vmatprep.subr.mxu0 0.0
      %2614 = vmatpush1.msra.mxu0 0.0
      %2615 = vmatprep.subr.mxu0 0.0
      %2616 = vmatpush1.msra.mxu0 0.0
      %2617 = vmatprep.subr.mxu0 0.0
      %2618 = vmatpush1.msra.mxu0 0.0
      %2619 = vmatprep.subr.mxu0 0.0
      %2620 = vmatpush1.msra.mxu0 0.0
      %2621 = vmatprep.subr.mxu0 0.0
      %2622 = vmatpush1.msra.mxu0 0.0
      %2623 = vmatprep.subr.mxu0 0.0
      %2624 = vmatpush1.msra.mxu0 0.0
      %2625 = vmatprep.subr.mxu0 0.0
      %2626 = vmatpush1.msra.mxu0 0.0
      %2627 = vmatprep.subr.mxu0 0.0
      %2628 = vmatpush1.msra.mxu0 0.0
      %2629 = vmatprep.subr.mxu0 0.0
      %2630 = vmatpush1.msra.mxu0 0.0
      %2631 = vmatprep.subr.mxu0 0.0
      %2632 = vmatpush1.msra.mxu0 0.0
      %2633 = vmatprep.subr.mxu0 0.0
      %2634 = vmatpush1.msra.mxu0 0.0
      %2635 = vmatprep.subr.mxu0 0.0
      %2636 = vmatpush1.msra.mxu0 0.0
      %2637 = vmatprep.subr.mxu0 0.0
      %2638 = vmatpush1.msra.mxu0 0.0
      %2639 = vmatprep.subr.mxu0 0.0
      %2640 = vmatpush1.msra.mxu0 0.0
      %2641 = vmatprep.mubr.f32.mxu0 0.0
      %2642 = vmatmul.mubr.f32.gmra.mrb[0].mxu0 %v909
      %v2643 = vpop.f32.mrb[0].mxu0
      %v2644 = vadd.f32 0.0, %v2643
      %v2645 = vpop.f32.mrb[0].mxu0
      %2646 = vmatprep.mubr.f32.mxu0 0.0
      %2647 = vmatmul.mubr.f32.gmra.mrb[0].mxu0 %v912
      %v2648 = vpop.f32.mrb[0].mxu0
      %v2649 = vadd.f32 0.0, %v2648
      %v2650 = vpop.f32.mrb[0].mxu0
      %2651 = vmatprep.mubr.f32.mxu0 0.0
      %2652 = vmatmul.mubr.f32.gmra.mrb[0].mxu0 %v915
      %v2653 = vpop.f32.mrb[0].mxu0
      %v2654 = vadd.f32 0.0, %v2653
      %v2655 = vpop.f32.mrb[0].mxu0
      %2656 = vdwg.mxu0
      %v2657 = vadd.f32 %v2568, %v2644
      %v2658 = vadd.f32 %v2569, %v2649
      %v2659 = vadd.f32 %v2570, %v2654
      %2660 = vrot.lane.b32.xlu0 %v2482, 117
      %v2661 = vpop.permute.xlu0 %2660
      %v2662 = vsel %vm537, %v2661, 0
      %2664 = vmatprep.subr.mxu0 0.0
      %2665 = vmatpush1.msra.mxu0 %v2662
      %2666 = vmatprep.subr.mxu0 0.0
      %2667 = vmatpush1.msra.mxu0 0.0
      %2668 = vmatprep.subr.mxu0 0.0
      %2669 = vmatpush1.msra.mxu0 0.0
      %2670 = vmatprep.subr.mxu0 0.0
      %2671 = vmatpush1.msra.mxu0 0.0
      %2672 = vmatprep.subr.mxu0 0.0
      %2673 = vmatpush1.msra.mxu0 0.0
      %2674 = vmatprep.subr.mxu0 0.0
      %2675 = vmatpush1.msra.mxu0 0.0
      %2676 = vmatprep.subr.mxu0 0.0
      %2677 = vmatpush1.msra.mxu0 0.0
      %2678 = vmatprep.subr.mxu0 0.0
      %2679 = vmatpush1.msra.mxu0 0.0
      %2680 = vmatprep.subr.mxu0 0.0
      %2681 = vmatpush1.msra.mxu0 0.0
      %2682 = vmatprep.subr.mxu0 0.0
      %2683 = vmatpush1.msra.mxu0 0.0
      %2684 = vmatprep.subr.mxu0 0.0
      %2685 = vmatpush1.msra.mxu0 0.0
      %2686 = vmatprep.subr.mxu0 0.0
      %2687 = vmatpush1.msra.mxu0 0.0
      %2688 = vmatprep.subr.mxu0 0.0
      %2689 = vmatpush1.msra.mxu0 0.0
      %2690 = vmatprep.subr.mxu0 0.0
      %2691 = vmatpush1.msra.mxu0 0.0
      %2692 = vmatprep.subr.mxu0 0.0
      %2693 = vmatpush1.msra.mxu0 0.0
      %2694 = vmatprep.subr.mxu0 0.0
      %2695 = vmatpush1.msra.mxu0 0.0
      %2696 = vmatprep.subr.mxu0 0.0
      %2697 = vmatpush1.msra.mxu0 0.0
      %2698 = vmatprep.subr.mxu0 0.0
      %2699 = vmatpush1.msra.mxu0 0.0
      %2700 = vmatprep.subr.mxu0 0.0
      %2701 = vmatpush1.msra.mxu0 0.0
      %2702 = vmatprep.subr.mxu0 0.0
      %2703 = vmatpush1.msra.mxu0 0.0
      %2704 = vmatprep.subr.mxu0 0.0
      %2705 = vmatpush1.msra.mxu0 0.0
      %2706 = vmatprep.subr.mxu0 0.0
      %2707 = vmatpush1.msra.mxu0 0.0
      %2708 = vmatprep.subr.mxu0 0.0
      %2709 = vmatpush1.msra.mxu0 0.0
      %2710 = vmatprep.subr.mxu0 0.0
      %2711 = vmatpush1.msra.mxu0 0.0
      %2712 = vmatprep.subr.mxu0 0.0
      %2713 = vmatpush1.msra.mxu0 0.0
      %2714 = vmatprep.subr.mxu0 0.0
      %2715 = vmatpush1.msra.mxu0 0.0
      %2716 = vmatprep.subr.mxu0 0.0
      %2717 = vmatpush1.msra.mxu0 0.0
      %2718 = vmatprep.subr.mxu0 0.0
      %2719 = vmatpush1.msra.mxu0 0.0
      %2720 = vmatprep.subr.mxu0 0.0
      %2721 = vmatpush1.msra.mxu0 0.0
      %2722 = vmatprep.subr.mxu0 0.0
      %2723 = vmatpush1.msra.mxu0 0.0
      %2724 = vmatprep.subr.mxu0 0.0
      %2725 = vmatpush1.msra.mxu0 0.0
      %2726 = vmatprep.subr.mxu0 0.0
      %2727 = vmatpush1.msra.mxu0 0.0
      %2728 = vmatprep.mubr.f32.mxu0 0.0
      %2729 = vmatmul.mubr.f32.gmra.mrb[0].mxu0 %v1006
      %v2730 = vpop.f32.mrb[0].mxu0
      %v2731 = vadd.f32 0.0, %v2730
      %v2732 = vpop.f32.mrb[0].mxu0
      %2733 = vmatprep.mubr.f32.mxu0 0.0
      %2734 = vmatmul.mubr.f32.gmra.mrb[0].mxu0 %v1009
      %v2735 = vpop.f32.mrb[0].mxu0
      %v2736 = vadd.f32 0.0, %v2735
      %v2737 = vpop.f32.mrb[0].mxu0
      %2738 = vmatprep.mubr.f32.mxu0 0.0
      %2739 = vmatmul.mubr.f32.gmra.mrb[0].mxu0 %v1012
      %v2740 = vpop.f32.mrb[0].mxu0
      %v2741 = vadd.f32 0.0, %v2740
      %v2742 = vpop.f32.mrb[0].mxu0
      %2743 = vdwg.mxu0
      %v2744 = vadd.f32 %v2657, %v2731
      %v2745 = vadd.f32 %v2658, %v2736
      %v2746 = vadd.f32 %v2659, %v2741
      %2747 = vrot.lane.b32.xlu0 %v2227, 118
      %v2748 = vpop.permute.xlu0 %2747
      %v2749 = vsel %vm537, %v2748, 0
      %2751 = vmatprep.subr.mxu0 0.0
      %2752 = vmatpush1.msra.mxu0 %v2749
      %2753 = vmatprep.subr.mxu0 0.0
      %2754 = vmatpush1.msra.mxu0 0.0
      %2755 = vmatprep.subr.mxu0 0.0
      %2756 = vmatpush1.msra.mxu0 0.0
      %2757 = vmatprep.subr.mxu0 0.0
      %2758 = vmatpush1.msra.mxu0 0.0
      %2759 = vmatprep.subr.mxu0 0.0
      %2760 = vmatpush1.msra.mxu0 0.0
      %2761 = vmatprep.subr.mxu0 0.0
      %2762 = vmatpush1.msra.mxu0 0.0
      %2763 = vmatprep.subr.mxu0 0.0
      %2764 = vmatpush1.msra.mxu0 0.0
      %2765 = vmatprep.subr.mxu0 0.0
      %2766 = vmatpush1.msra.mxu0 0.0
      %2767 = vmatprep.subr.mxu0 0.0
      %2768 = vmatpush1.msra.mxu0 0.0
      %2769 = vmatprep.subr.mxu0 0.0
      %2770 = vmatpush1.msra.mxu0 0.0
      %2771 = vmatprep.subr.mxu0 0.0
      %2772 = vmatpush1.msra.mxu0 0.0
      %2773 = vmatprep.subr.mxu0 0.0
      %2774 = vmatpush1.msra.mxu0 0.0
      %2775 = vmatprep.subr.mxu0 0.0
      %2776 = vmatpush1.msra.mxu0 0.0
      %2777 = vmatprep.subr.mxu0 0.0
      %2778 = vmatpush1.msra.mxu0 0.0
      %2779 = vmatprep.subr.mxu0 0.0
      %2780 = vmatpush1.msra.mxu0 0.0
      %2781 = vmatprep.subr.mxu0 0.0
      %2782 = vmatpush1.msra.mxu0 0.0
      %2783 = vmatprep.subr.mxu0 0.0
      %2784 = vmatpush1.msra.mxu0 0.0
      %2785 = vmatprep.subr.mxu0 0.0
      %2786 = vmatpush1.msra.mxu0 0.0
      %2787 = vmatprep.subr.mxu0 0.0
      %2788 = vmatpush1.msra.mxu0 0.0
      %2789 = vmatprep.subr.mxu0 0.0
      %2790 = vmatpush1.msra.mxu0 0.0
      %2791 = vmatprep.subr.mxu0 0.0
      %2792 = vmatpush1.msra.mxu0 0.0
      %2793 = vmatprep.subr.mxu0 0.0
      %2794 = vmatpush1.msra.mxu0 0.0
      %2795 = vmatprep.subr.mxu0 0.0
      %2796 = vmatpush1.msra.mxu0 0.0
      %2797 = vmatprep.subr.mxu0 0.0
      %2798 = vmatpush1.msra.mxu0 0.0
      %2799 = vmatprep.subr.mxu0 0.0
      %2800 = vmatpush1.msra.mxu0 0.0
      %2801 = vmatprep.subr.mxu0 0.0
      %2802 = vmatpush1.msra.mxu0 0.0
      %2803 = vmatprep.subr.mxu0 0.0
      %2804 = vmatpush1.msra.mxu0 0.0
      %2805 = vmatprep.subr.mxu0 0.0
      %2806 = vmatpush1.msra.mxu0 0.0
      %2807 = vmatprep.subr.mxu0 0.0
      %2808 = vmatpush1.msra.mxu0 0.0
      %2809 = vmatprep.subr.mxu0 0.0
      %2810 = vmatpush1.msra.mxu0 0.0
      %2811 = vmatprep.subr.mxu0 0.0
      %2812 = vmatpush1.msra.mxu0 0.0
      %2813 = vmatprep.subr.mxu0 0.0
      %2814 = vmatpush1.msra.mxu0 0.0
      %2815 = vmatprep.mubr.f32.mxu0 0.0
      %2816 = vmatmul.mubr.f32.gmra.mrb[0].mxu0 %v1102
      %v2817 = vpop.f32.mrb[0].mxu0
      %v2818 = vadd.f32 0.0, %v2817
      %v2819 = vpop.f32.mrb[0].mxu0
      %2820 = vmatprep.mubr.f32.mxu0 0.0
      %2821 = vmatmul.mubr.f32.gmra.mrb[0].mxu0 %v1105
      %v2822 = vpop.f32.mrb[0].mxu0
      %v2823 = vadd.f32 0.0, %v2822
      %v2824 = vpop.f32.mrb[0].mxu0
      %2825 = vmatprep.mubr.f32.mxu0 0.0
      %2826 = vmatmul.mubr.f32.gmra.mrb[0].mxu0 %v1108
      %v2827 = vpop.f32.mrb[0].mxu0
      %v2828 = vadd.f32 0.0, %v2827
      %v2829 = vpop.f32.mrb[0].mxu0
      %2830 = vdwg.mxu0
      %v2831 = vadd.f32 %v2744, %v2818
      %v2832 = vadd.f32 %v2745, %v2823
      %v2833 = vadd.f32 %v2746, %v2828
      %2834 = vrot.lane.b32.xlu0 %v2228, 118
      %v2835 = vpop.permute.xlu0 %2834
      %v2836 = vsel %vm537, %v2835, 0
      %2838 = vmatprep.subr.mxu0 0.0
      %2839 = vmatpush1.msra.mxu0 %v2836
      %2840 = vmatprep.subr.mxu0 0.0
      %2841 = vmatpush1.msra.mxu0 0.0
      %2842 = vmatprep.subr.mxu0 0.0
      %2843 = vmatpush1.msra.mxu0 0.0
      %2844 = vmatprep.subr.mxu0 0.0
      %2845 = vmatpush1.msra.mxu0 0.0
      %2846 = vmatprep.subr.mxu0 0.0
      %2847 = vmatpush1.msra.mxu0 0.0
      %2848 = vmatprep.subr.mxu0 0.0
      %2849 = vmatpush1.msra.mxu0 0.0
      %2850 = vmatprep.subr.mxu0 0.0
      %2851 = vmatpush1.msra.mxu0 0.0
      %2852 = vmatprep.subr.mxu0 0.0
      %2853 = vmatpush1.msra.mxu0 0.0
      %2854 = vmatprep.subr.mxu0 0.0
      %2855 = vmatpush1.msra.mxu0 0.0
      %2856 = vmatprep.subr.mxu0 0.0
      %2857 = vmatpush1.msra.mxu0 0.0
      %2858 = vmatprep.subr.mxu0 0.0
      %2859 = vmatpush1.msra.mxu0 0.0
      %2860 = vmatprep.subr.mxu0 0.0
      %2861 = vmatpush1.msra.mxu0 0.0
      %2862 = vmatprep.subr.mxu0 0.0
      %2863 = vmatpush1.msra.mxu0 0.0
      %2864 = vmatprep.subr.mxu0 0.0
      %2865 = vmatpush1.msra.mxu0 0.0
      %2866 = vmatprep.subr.mxu0 0.0
      %2867 = vmatpush1.msra.mxu0 0.0
      %2868 = vmatprep.subr.mxu0 0.0
      %2869 = vmatpush1.msra.mxu0 0.0
      %2870 = vmatprep.subr.mxu0 0.0
      %2871 = vmatpush1.msra.mxu0 0.0
      %2872 = vmatprep.subr.mxu0 0.0
      %2873 = vmatpush1.msra.mxu0 0.0
      %2874 = vmatprep.subr.mxu0 0.0
      %2875 = vmatpush1.msra.mxu0 0.0
      %2876 = vmatprep.subr.mxu0 0.0
      %2877 = vmatpush1.msra.mxu0 0.0
      %2878 = vmatprep.subr.mxu0 0.0
      %2879 = vmatpush1.msra.mxu0 0.0
      %2880 = vmatprep.subr.mxu0 0.0
      %2881 = vmatpush1.msra.mxu0 0.0
      %2882 = vmatprep.subr.mxu0 0.0
      %2883 = vmatpush1.msra.mxu0 0.0
      %2884 = vmatprep.subr.mxu0 0.0
      %2885 = vmatpush1.msra.mxu0 0.0
      %2886 = vmatprep.subr.mxu0 0.0
      %2887 = vmatpush1.msra.mxu0 0.0
      %2888 = vmatprep.subr.mxu0 0.0
      %2889 = vmatpush1.msra.mxu0 0.0
      %2890 = vmatprep.subr.mxu0 0.0
      %2891 = vmatpush1.msra.mxu0 0.0
      %2892 = vmatprep.subr.mxu0 0.0
      %2893 = vmatpush1.msra.mxu0 0.0
      %2894 = vmatprep.subr.mxu0 0.0
      %2895 = vmatpush1.msra.mxu0 0.0
      %2896 = vmatprep.subr.mxu0 0.0
      %2897 = vmatpush1.msra.mxu0 0.0
      %2898 = vmatprep.subr.mxu0 0.0
      %2899 = vmatpush1.msra.mxu0 0.0
      %2900 = vmatprep.subr.mxu0 0.0
      %2901 = vmatpush1.msra.mxu0 0.0
      %2902 = vmatprep.mubr.f32.mxu0 0.0
      %2903 = vmatmul.mubr.f32.gmra.mrb[0].mxu0 %v1198
      %v2904 = vpop.f32.mrb[0].mxu0
      %v2905 = vadd.f32 0.0, %v2904
      %v2906 = vpop.f32.mrb[0].mxu0
      %2907 = vmatprep.mubr.f32.mxu0 0.0
      %2908 = vmatmul.mubr.f32.gmra.mrb[0].mxu0 %v1201
      %v2909 = vpop.f32.mrb[0].mxu0
      %v2910 = vadd.f32 0.0, %v2909
      %v2911 = vpop.f32.mrb[0].mxu0
      %2912 = vmatprep.mubr.f32.mxu0 0.0
      %2913 = vmatmul.mubr.f32.gmra.mrb[0].mxu0 %v1204
      %v2914 = vpop.f32.mrb[0].mxu0
      %v2915 = vadd.f32 0.0, %v2914
      %v2916 = vpop.f32.mrb[0].mxu0
      %2917 = vdwg.mxu0
      %v2918 = vadd.f32 %v2831, %v2905
      %v2919 = vadd.f32 %v2832, %v2910
      %v2920 = vadd.f32 %v2833, %v2915
      %2921 = vrot.lane.b32.xlu0 %v2227, 117
      %v2922 = vpop.permute.xlu0 %2921
      %v2923 = vsel %vm537, %v2922, 0
      %2925 = vmatprep.subr.mxu0 0.0
      %2926 = vmatpush1.msra.mxu0 %v2923
      %2927 = vmatprep.subr.mxu0 0.0
      %2928 = vmatpush1.msra.mxu0 0.0
      %2929 = vmatprep.subr.mxu0 0.0
      %2930 = vmatpush1.msra.mxu0 0.0
      %2931 = vmatprep.subr.mxu0 0.0
      %2932 = vmatpush1.msra.mxu0 0.0
      %2933 = vmatprep.subr.mxu0 0.0
      %2934 = vmatpush1.msra.mxu0 0.0
      %2935 = vmatprep.subr.mxu0 0.0
      %2936 = vmatpush1.msra.mxu0 0.0
      %2937 = vmatprep.subr.mxu0 0.0
      %2938 = vmatpush1.msra.mxu0 0.0
      %2939 = vmatprep.subr.mxu0 0.0
      %2940 = vmatpush1.msra.mxu0 0.0
      %2941 = vmatprep.subr.mxu0 0.0
      %2942 = vmatpush1.msra.mxu0 0.0
      %2943 = vmatprep.subr.mxu0 0.0
      %2944 = vmatpush1.msra.mxu0 0.0
      %2945 = vmatprep.subr.mxu0 0.0
      %2946 = vmatpush1.msra.mxu0 0.0
      %2947 = vmatprep.subr.mxu0 0.0
      %2948 = vmatpush1.msra.mxu0 0.0
      %2949 = vmatprep.subr.mxu0 0.0
      %2950 = vmatpush1.msra.mxu0 0.0
      %2951 = vmatprep.subr.mxu0 0.0
      %2952 = vmatpush1.msra.mxu0 0.0
      %2953 = vmatprep.subr.mxu0 0.0
      %2954 = vmatpush1.msra.mxu0 0.0
      %2955 = vmatprep.subr.mxu0 0.0
      %2956 = vmatpush1.msra.mxu0 0.0
      %2957 = vmatprep.subr.mxu0 0.0
      %2958 = vmatpush1.msra.mxu0 0.0
      %2959 = vmatprep.subr.mxu0 0.0
      %2960 = vmatpush1.msra.mxu0 0.0
      %2961 = vmatprep.subr.mxu0 0.0
      %2962 = vmatpush1.msra.mxu0 0.0
      %2963 = vmatprep.subr.mxu0 0.0
      %2964 = vmatpush1.msra.mxu0 0.0
      %2965 = vmatprep.subr.mxu0 0.0
      %2966 = vmatpush1.msra.mxu0 0.0
      %2967 = vmatprep.subr.mxu0 0.0
      %2968 = vmatpush1.msra.mxu0 0.0
      %2969 = vmatprep.subr.mxu0 0.0
      %2970 = vmatpush1.msra.mxu0 0.0
      %2971 = vmatprep.subr.mxu0 0.0
      %2972 = vmatpush1.msra.mxu0 0.0
      %2973 = vmatprep.subr.mxu0 0.0
      %2974 = vmatpush1.msra.mxu0 0.0
      %2975 = vmatprep.subr.mxu0 0.0
      %2976 = vmatpush1.msra.mxu0 0.0
      %2977 = vmatprep.subr.mxu0 0.0
      %2978 = vmatpush1.msra.mxu0 0.0
      %2979 = vmatprep.subr.mxu0 0.0
      %2980 = vmatpush1.msra.mxu0 0.0
      %2981 = vmatprep.subr.mxu0 0.0
      %2982 = vmatpush1.msra.mxu0 0.0
      %2983 = vmatprep.subr.mxu0 0.0
      %2984 = vmatpush1.msra.mxu0 0.0
      %2985 = vmatprep.subr.mxu0 0.0
      %2986 = vmatpush1.msra.mxu0 0.0
      %2987 = vmatprep.subr.mxu0 0.0
      %2988 = vmatpush1.msra.mxu0 0.0
      %2989 = vmatprep.mubr.f32.mxu0 0.0
      %2990 = vmatmul.mubr.f32.gmra.mrb[0].mxu0 %v1294
      %v2991 = vpop.f32.mrb[0].mxu0
      %v2992 = vadd.f32 0.0, %v2991
      %v2993 = vpop.f32.mrb[0].mxu0
      %2994 = vmatprep.mubr.f32.mxu0 0.0
      %2995 = vmatmul.mubr.f32.gmra.mrb[0].mxu0 %v1297
      %v2996 = vpop.f32.mrb[0].mxu0
      %v2997 = vadd.f32 0.0, %v2996
      %v2998 = vpop.f32.mrb[0].mxu0
      %2999 = vmatprep.mubr.f32.mxu0 0.0
      %3000 = vmatmul.mubr.f32.gmra.mrb[0].mxu0 %v1300
      %v3001 = vpop.f32.mrb[0].mxu0
      %v3002 = vadd.f32 0.0, %v3001
      %v3003 = vpop.f32.mrb[0].mxu0
      %3004 = vdwg.mxu0
      %v3005 = vadd.f32 %v2918, %v2992
      %v3006 = vadd.f32 %v2919, %v2997
      %v3007 = vadd.f32 %v2920, %v3002
      %v3008 = vadd.f32 %v3005, %v1390
      %v3009 = vadd.f32 %v3006, %v1395
      %v3010 = vadd.f32 %v3007, %v1400
      %v3011 = vmax.f32 %v3008, 0.0
      %v3012 = vmax.f32 %v3009, 0.0
      %v3013 = vmax.f32 %v3010, 0.0
      %v3014 = vsel %vm1413, %v3011, 0.0
      %v3015 = vsel %vm1413, %v3012, 0.0
      %v3016 = vsel %vm1413, %v3013, 0.0
      %3020 = vrot.lane.b32.xlu0 %v3014, 10
      %v3021 = vpop.permute.xlu0 %3020
      %3022 = vrot.lane.b32.xlu0 %v3015, 10
      %v3023 = vpop.permute.xlu0 %3022
      %3024 = vrot.lane.b32.xlu0 %v3016, 10
      %v3025 = vpop.permute.xlu0 %3024
      %vm3029 = vcmask 736336
      %3030 = vst.msk [vmem:[%s496] sm:$0xff] %vm3029, %v3021
      %3031 = vst.msk [vmem:[%s496 + $0x8] sm:$0xff] %vm3029, %v3023
      %3032 = vst.msk [vmem:[%s496 + $0x10] sm:$0xff] %vm3029, %v3025
      %v3033 = vld [vmem:[%s906] sm:$0xf]
      %v3034 = vld [vmem:[%s809] sm:$0xf]
      %3036 = vrot.lane.b32.xlu0 %v3034, 127
      %v3037 = vpop.permute.xlu0 %3036
      %v3038 = vsel %vm537, %v3037, 0
      %3040 = vmatprep.subr.mxu0 0.0
      %3041 = vmatpush1.msra.mxu0 %v3038
      %3042 = vmatprep.subr.mxu0 0.0
      %3043 = vmatpush1.msra.mxu0 0.0
      %3044 = vmatprep.subr.mxu0 0.0
      %3045 = vmatpush1.msra.mxu0 0.0
      %3046 = vmatprep.subr.mxu0 0.0
      %3047 = vmatpush1.msra.mxu0 0.0
      %3048 = vmatprep.subr.mxu0 0.0
      %3049 = vmatpush1.msra.mxu0 0.0
      %3050 = vmatprep.subr.mxu0 0.0
      %3051 = vmatpush1.msra.mxu0 0.0
      %3052 = vmatprep.subr.mxu0 0.0
      %3053 = vmatpush1.msra.mxu0 0.0
      %3054 = vmatprep.subr.mxu0 0.0
      %3055 = vmatpush1.msra.mxu0 0.0
      %3056 = vmatprep.subr.mxu0 0.0
      %3057 = vmatpush1.msra.mxu0 0.0
      %3058 = vmatprep.subr.mxu0 0.0
      %3059 = vmatpush1.msra.mxu0 0.0
      %3060 = vmatprep.subr.mxu0 0.0
      %3061 = vmatpush1.msra.mxu0 0.0
      %3062 = vmatprep.subr.mxu0 0.0
      %3063 = vmatpush1.msra.mxu0 0.0
      %3064 = vmatprep.subr.mxu0 0.0
      %3065 = vmatpush1.msra.mxu0 0.0
      %3066 = vmatprep.subr.mxu0 0.0
      %3067 = vmatpush1.msra.mxu0 0.0
      %3068 = vmatprep.subr.mxu0 0.0
      %3069 = vmatpush1.msra.mxu0 0.0
      %3070 = vmatprep.subr.mxu0 0.0
      %3071 = vmatpush1.msra.mxu0 0.0
      %3072 = vmatprep.subr.mxu0 0.0
      %3073 = vmatpush1.msra.mxu0 0.0
      %3074 = vmatprep.subr.mxu0 0.0
      %3075 = vmatpush1.msra.mxu0 0.0
      %3076 = vmatprep.subr.mxu0 0.0
      %3077 = vmatpush1.msra.mxu0 0.0
      %3078 = vmatprep.subr.mxu0 0.0
      %3079 = vmatpush1.msra.mxu0 0.0
      %3080 = vmatprep.subr.mxu0 0.0
      %3081 = vmatpush1.msra.mxu0 0.0
      %3082 = vmatprep.subr.mxu0 0.0
      %3083 = vmatpush1.msra.mxu0 0.0
      %3084 = vmatprep.subr.mxu0 0.0
      %3085 = vmatpush1.msra.mxu0 0.0
      %3086 = vmatprep.subr.mxu0 0.0
      %3087 = vmatpush1.msra.mxu0 0.0
      %3088 = vmatprep.subr.mxu0 0.0
      %3089 = vmatpush1.msra.mxu0 0.0
      %3090 = vmatprep.subr.mxu0 0.0
      %3091 = vmatpush1.msra.mxu0 0.0
      %3092 = vmatprep.subr.mxu0 0.0
      %3093 = vmatpush1.msra.mxu0 0.0
      %3094 = vmatprep.subr.mxu0 0.0
      %3095 = vmatpush1.msra.mxu0 0.0
      %3096 = vmatprep.subr.mxu0 0.0
      %3097 = vmatpush1.msra.mxu0 0.0
      %3098 = vmatprep.subr.mxu0 0.0
      %3099 = vmatpush1.msra.mxu0 0.0
      %3100 = vmatprep.subr.mxu0 0.0
      %3101 = vmatpush1.msra.mxu0 0.0
      %3102 = vmatprep.subr.mxu0 0.0
      %3103 = vmatpush1.msra.mxu0 0.0
      %3104 = vmatprep.mubr.f32.mxu0 0.0
      %3105 = vmatmul.mubr.f32.gmra.mrb[0].mxu0 %v529
      %v3106 = vpop.f32.mrb[0].mxu0
      %v3107 = vadd.f32 0.0, %v3106
      %v3108 = vpop.f32.mrb[0].mxu0
      %3109 = vmatprep.mubr.f32.mxu0 0.0
      %3110 = vmatmul.mubr.f32.gmra.mrb[0].mxu0 %v532
      %v3111 = vpop.f32.mrb[0].mxu0
      %v3112 = vadd.f32 0.0, %v3111
      %v3113 = vpop.f32.mrb[0].mxu0
      %3114 = vmatprep.mubr.f32.mxu0 0.0
      %3115 = vmatmul.mubr.f32.gmra.mrb[0].mxu0 %v535
      %v3116 = vpop.f32.mrb[0].mxu0
      %v3117 = vadd.f32 0.0, %v3116
      %v3118 = vpop.f32.mrb[0].mxu0
      %3119 = vdwg.mxu0
      %v3121 = vsel %vm537, %v3033, 0
      %3123 = vmatprep.subr.mxu0 0.0
      %3124 = vmatpush1.msra.mxu0 %v3121
      %3125 = vmatprep.subr.mxu0 0.0
      %3126 = vmatpush1.msra.mxu0 0.0
      %3127 = vmatprep.subr.mxu0 0.0
      %3128 = vmatpush1.msra.mxu0 0.0
      %3129 = vmatprep.subr.mxu0 0.0
      %3130 = vmatpush1.msra.mxu0 0.0
      %3131 = vmatprep.subr.mxu0 0.0
      %3132 = vmatpush1.msra.mxu0 0.0
      %3133 = vmatprep.subr.mxu0 0.0
      %3134 = vmatpush1.msra.mxu0 0.0
      %3135 = vmatprep.subr.mxu0 0.0
      %3136 = vmatpush1.msra.mxu0 0.0
      %3137 = vmatprep.subr.mxu0 0.0
      %3138 = vmatpush1.msra.mxu0 0.0
      %3139 = vmatprep.subr.mxu0 0.0
      %3140 = vmatpush1.msra.mxu0 0.0
      %3141 = vmatprep.subr.mxu0 0.0
      %3142 = vmatpush1.msra.mxu0 0.0
      %3143 = vmatprep.subr.mxu0 0.0
      %3144 = vmatpush1.msra.mxu0 0.0
      %3145 = vmatprep.subr.mxu0 0.0
      %3146 = vmatpush1.msra.mxu0 0.0
      %3147 = vmatprep.subr.mxu0 0.0
      %3148 = vmatpush1.msra.mxu0 0.0
      %3149 = vmatprep.subr.mxu0 0.0
      %3150 = vmatpush1.msra.mxu0 0.0
      %3151 = vmatprep.subr.mxu0 0.0
      %3152 = vmatpush1.msra.mxu0 0.0
      %3153 = vmatprep.subr.mxu0 0.0
      %3154 = vmatpush1.msra.mxu0 0.0
      %3155 = vmatprep.subr.mxu0 0.0
      %3156 = vmatpush1.msra.mxu0 0.0
      %3157 = vmatprep.subr.mxu0 0.0
      %3158 = vmatpush1.msra.mxu0 0.0
      %3159 = vmatprep.subr.mxu0 0.0
      %3160 = vmatpush1.msra.mxu0 0.0
      %3161 = vmatprep.subr.mxu0 0.0
      %3162 = vmatpush1.msra.mxu0 0.0
      %3163 = vmatprep.subr.mxu0 0.0
      %3164 = vmatpush1.msra.mxu0 0.0
      %3165 = vmatprep.subr.mxu0 0.0
      %3166 = vmatpush1.msra.mxu0 0.0
      %3167 = vmatprep.subr.mxu0 0.0
      %3168 = vmatpush1.msra.mxu0 0.0
      %3169 = vmatprep.subr.mxu0 0.0
      %3170 = vmatpush1.msra.mxu0 0.0
      %3171 = vmatprep.subr.mxu0 0.0
      %3172 = vmatpush1.msra.mxu0 0.0
      %3173 = vmatprep.subr.mxu0 0.0
      %3174 = vmatpush1.msra.mxu0 0.0
      %3175 = vmatprep.subr.mxu0 0.0
      %3176 = vmatpush1.msra.mxu0 0.0
      %3177 = vmatprep.subr.mxu0 0.0
      %3178 = vmatpush1.msra.mxu0 0.0
      %3179 = vmatprep.subr.mxu0 0.0
      %3180 = vmatpush1.msra.mxu0 0.0
      %3181 = vmatprep.subr.mxu0 0.0
      %3182 = vmatpush1.msra.mxu0 0.0
      %3183 = vmatprep.subr.mxu0 0.0
      %3184 = vmatpush1.msra.mxu0 0.0
      %3185 = vmatprep.subr.mxu0 0.0
      %3186 = vmatpush1.msra.mxu0 0.0
      %3187 = vmatprep.mubr.f32.mxu0 0.0
      %3188 = vmatmul.mubr.f32.gmra.mrb[0].mxu0 %v622
      %v3189 = vpop.f32.mrb[0].mxu0
      %v3190 = vadd.f32 %v3107, %v3189
      %v3191 = vpop.f32.mrb[0].mxu0
      %3192 = vmatprep.mubr.f32.mxu0 0.0
      %3193 = vmatmul.mubr.f32.gmra.mrb[0].mxu0 %v625
      %v3194 = vpop.f32.mrb[0].mxu0
      %v3195 = vadd.f32 %v3112, %v3194
      %v3196 = vpop.f32.mrb[0].mxu0
      %3197 = vmatprep.mubr.f32.mxu0 0.0
      %3198 = vmatmul.mubr.f32.gmra.mrb[0].mxu0 %v628
      %v3199 = vpop.f32.mrb[0].mxu0
      %v3200 = vadd.f32 %v3117, %v3199
      %v3201 = vpop.f32.mrb[0].mxu0
      %3202 = vdwg.mxu0
      %3203 = vrot.lane.b32.xlu0 %v3033, 127
      %v3204 = vpop.permute.xlu0 %3203
      %v3205 = vsel %vm537, %v3204, 0
      %3207 = vmatprep.subr.mxu0 0.0
      %3208 = vmatpush1.msra.mxu0 %v3205
      %3209 = vmatprep.subr.mxu0 0.0
      %3210 = vmatpush1.msra.mxu0 0.0
      %3211 = vmatprep.subr.mxu0 0.0
      %3212 = vmatpush1.msra.mxu0 0.0
      %3213 = vmatprep.subr.mxu0 0.0
      %3214 = vmatpush1.msra.mxu0 0.0
      %3215 = vmatprep.subr.mxu0 0.0
      %3216 = vmatpush1.msra.mxu0 0.0
      %3217 = vmatprep.subr.mxu0 0.0
      %3218 = vmatpush1.msra.mxu0 0.0
      %3219 = vmatprep.subr.mxu0 0.0
      %3220 = vmatpush1.msra.mxu0 0.0
      %3221 = vmatprep.subr.mxu0 0.0
      %3222 = vmatpush1.msra.mxu0 0.0
      %3223 = vmatprep.subr.mxu0 0.0
      %3224 = vmatpush1.msra.mxu0 0.0
      %3225 = vmatprep.subr.mxu0 0.0
      %3226 = vmatpush1.msra.mxu0 0.0
      %3227 = vmatprep.subr.mxu0 0.0
      %3228 = vmatpush1.msra.mxu0 0.0
      %3229 = vmatprep.subr.mxu0 0.0
      %3230 = vmatpush1.msra.mxu0 0.0
      %3231 = vmatprep.subr.mxu0 0.0
      %3232 = vmatpush1.msra.mxu0 0.0
      %3233 = vmatprep.subr.mxu0 0.0
      %3234 = vmatpush1.msra.mxu0 0.0
      %3235 = vmatprep.subr.mxu0 0.0
      %3236 = vmatpush1.msra.mxu0 0.0
      %3237 = vmatprep.subr.mxu0 0.0
      %3238 = vmatpush1.msra.mxu0 0.0
      %3239 = vmatprep.subr.mxu0 0.0
      %3240 = vmatpush1.msra.mxu0 0.0
      %3241 = vmatprep.subr.mxu0 0.0
      %3242 = vmatpush1.msra.mxu0 0.0
      %3243 = vmatprep.subr.mxu0 0.0
      %3244 = vmatpush1.msra.mxu0 0.0
      %3245 = vmatprep.subr.mxu0 0.0
      %3246 = vmatpush1.msra.mxu0 0.0
      %3247 = vmatprep.subr.mxu0 0.0
      %3248 = vmatpush1.msra.mxu0 0.0
      %3249 = vmatprep.subr.mxu0 0.0
      %3250 = vmatpush1.msra.mxu0 0.0
      %3251 = vmatprep.subr.mxu0 0.0
      %3252 = vmatpush1.msra.mxu0 0.0
      %3253 = vmatprep.subr.mxu0 0.0
      %3254 = vmatpush1.msra.mxu0 0.0
      %3255 = vmatprep.subr.mxu0 0.0
      %3256 = vmatpush1.msra.mxu0 0.0
      %3257 = vmatprep.subr.mxu0 0.0
      %3258 = vmatpush1.msra.mxu0 0.0
      %3259 = vmatprep.subr.mxu0 0.0
      %3260 = vmatpush1.msra.mxu0 0.0
      %3261 = vmatprep.subr.mxu0 0.0
      %3262 = vmatpush1.msra.mxu0 0.0
      %3263 = vmatprep.subr.mxu0 0.0
      %3264 = vmatpush1.msra.mxu0 0.0
      %3265 = vmatprep.subr.mxu0 0.0
      %3266 = vmatpush1.msra.mxu0 0.0
      %3267 = vmatprep.subr.mxu0 0.0
      %3268 = vmatpush1.msra.mxu0 0.0
      %3269 = vmatprep.subr.mxu0 0.0
      %3270 = vmatpush1.msra.mxu0 0.0
      %3271 = vmatprep.mubr.f32.mxu0 0.0
      %3272 = vmatmul.mubr.f32.gmra.mrb[0].mxu0 %v716
      %v3273 = vpop.f32.mrb[0].mxu0
      %v3274 = vadd.f32 0.0, %v3273
      %v3275 = vpop.f32.mrb[0].mxu0
      %3276 = vmatprep.mubr.f32.mxu0 0.0
      %3277 = vmatmul.mubr.f32.gmra.mrb[0].mxu0 %v719
      %v3278 = vpop.f32.mrb[0].mxu0
      %v3279 = vadd.f32 0.0, %v3278
      %v3280 = vpop.f32.mrb[0].mxu0
      %3281 = vmatprep.mubr.f32.mxu0 0.0
      %3282 = vmatmul.mubr.f32.gmra.mrb[0].mxu0 %v722
      %v3283 = vpop.f32.mrb[0].mxu0
      %v3284 = vadd.f32 0.0, %v3283
      %v3285 = vpop.f32.mrb[0].mxu0
      %3286 = vdwg.mxu0
      %v3287 = vadd.f32 %v3190, %v3274
      %v3288 = vadd.f32 %v3195, %v3279
      %v3289 = vadd.f32 %v3200, %v3284
      %v3290 = vld [vmem:[%s525] sm:$0xf]
      %3292 = vrot.lane.b32.xlu0 %v3290, 118
      %v3293 = vpop.permute.xlu0 %3292
      %v3294 = vsel %vm537, %v3293, 0
      %3296 = vmatprep.subr.mxu0 0.0
      %3297 = vmatpush1.msra.mxu0 %v3294
      %3298 = vmatprep.subr.mxu0 0.0
      %3299 = vmatpush1.msra.mxu0 0.0
      %3300 = vmatprep.subr.mxu0 0.0
      %3301 = vmatpush1.msra.mxu0 0.0
      %3302 = vmatprep.subr.mxu0 0.0
      %3303 = vmatpush1.msra.mxu0 0.0
      %3304 = vmatprep.subr.mxu0 0.0
      %3305 = vmatpush1.msra.mxu0 0.0
      %3306 = vmatprep.subr.mxu0 0.0
      %3307 = vmatpush1.msra.mxu0 0.0
      %3308 = vmatprep.subr.mxu0 0.0
      %3309 = vmatpush1.msra.mxu0 0.0
      %3310 = vmatprep.subr.mxu0 0.0
      %3311 = vmatpush1.msra.mxu0 0.0
      %3312 = vmatprep.subr.mxu0 0.0
      %3313 = vmatpush1.msra.mxu0 0.0
      %3314 = vmatprep.subr.mxu0 0.0
      %3315 = vmatpush1.msra.mxu0 0.0
      %3316 = vmatprep.subr.mxu0 0.0
      %3317 = vmatpush1.msra.mxu0 0.0
      %3318 = vmatprep.subr.mxu0 0.0
      %3319 = vmatpush1.msra.mxu0 0.0
      %3320 = vmatprep.subr.mxu0 0.0
      %3321 = vmatpush1.msra.mxu0 0.0
      %3322 = vmatprep.subr.mxu0 0.0
      %3323 = vmatpush1.msra.mxu0 0.0
      %3324 = vmatprep.subr.mxu0 0.0
      %3325 = vmatpush1.msra.mxu0 0.0
      %3326 = vmatprep.subr.mxu0 0.0
      %3327 = vmatpush1.msra.mxu0 0.0
      %3328 = vmatprep.subr.mxu0 0.0
      %3329 = vmatpush1.msra.mxu0 0.0
      %3330 = vmatprep.subr.mxu0 0.0
      %3331 = vmatpush1.msra.mxu0 0.0
      %3332 = vmatprep.subr.mxu0 0.0
      %3333 = vmatpush1.msra.mxu0 0.0
      %3334 = vmatprep.subr.mxu0 0.0
      %3335 = vmatpush1.msra.mxu0 0.0
      %3336 = vmatprep.subr.mxu0 0.0
      %3337 = vmatpush1.msra.mxu0 0.0
      %3338 = vmatprep.subr.mxu0 0.0
      %3339 = vmatpush1.msra.mxu0 0.0
      %3340 = vmatprep.subr.mxu0 0.0
      %3341 = vmatpush1.msra.mxu0 0.0
      %3342 = vmatprep.subr.mxu0 0.0
      %3343 = vmatpush1.msra.mxu0 0.0
      %3344 = vmatprep.subr.mxu0 0.0
      %3345 = vmatpush1.msra.mxu0 0.0
      %3346 = vmatprep.subr.mxu0 0.0
      %3347 = vmatpush1.msra.mxu0 0.0
      %3348 = vmatprep.subr.mxu0 0.0
      %3349 = vmatpush1.msra.mxu0 0.0
      %3350 = vmatprep.subr.mxu0 0.0
      %3351 = vmatpush1.msra.mxu0 0.0
      %3352 = vmatprep.subr.mxu0 0.0
      %3353 = vmatpush1.msra.mxu0 0.0
      %3354 = vmatprep.subr.mxu0 0.0
      %3355 = vmatpush1.msra.mxu0 0.0
      %3356 = vmatprep.subr.mxu0 0.0
      %3357 = vmatpush1.msra.mxu0 0.0
      %3358 = vmatprep.subr.mxu0 0.0
      %3359 = vmatpush1.msra.mxu0 0.0
      %3360 = vmatprep.mubr.f32.mxu0 0.0
      %3361 = vmatmul.mubr.f32.gmra.mrb[0].mxu0 %v812
      %v3362 = vpop.f32.mrb[0].mxu0
      %v3363 = vadd.f32 0.0, %v3362
      %v3364 = vpop.f32.mrb[0].mxu0
      %3365 = vmatprep.mubr.f32.mxu0 0.0
      %3366 = vmatmul.mubr.f32.gmra.mrb[0].mxu0 %v815
      %v3367 = vpop.f32.mrb[0].mxu0
      %v3368 = vadd.f32 0.0, %v3367
      %v3369 = vpop.f32.mrb[0].mxu0
      %3370 = vmatprep.mubr.f32.mxu0 0.0
      %3371 = vmatmul.mubr.f32.gmra.mrb[0].mxu0 %v818
      %v3372 = vpop.f32.mrb[0].mxu0
      %v3373 = vadd.f32 0.0, %v3372
      %v3374 = vpop.f32.mrb[0].mxu0
      %3375 = vdwg.mxu0
      %v3376 = vadd.f32 %v3287, %v3363
      %v3377 = vadd.f32 %v3288, %v3368
      %v3378 = vadd.f32 %v3289, %v3373
      %v3379 = vld [vmem:[%s434] sm:$0xf]
      %3381 = vrot.lane.b32.xlu0 %v3379, 117
      %v3382 = vpop.permute.xlu0 %3381
      %v3383 = vsel %vm537, %v3382, 0
      %3385 = vmatprep.subr.mxu0 0.0
      %3386 = vmatpush1.msra.mxu0 %v3383
      %3387 = vmatprep.subr.mxu0 0.0
      %3388 = vmatpush1.msra.mxu0 0.0
      %3389 = vmatprep.subr.mxu0 0.0
      %3390 = vmatpush1.msra.mxu0 0.0
      %3391 = vmatprep.subr.mxu0 0.0
      %3392 = vmatpush1.msra.mxu0 0.0
      %3393 = vmatprep.subr.mxu0 0.0
      %3394 = vmatpush1.msra.mxu0 0.0
      %3395 = vmatprep.subr.mxu0 0.0
      %3396 = vmatpush1.msra.mxu0 0.0
      %3397 = vmatprep.subr.mxu0 0.0
      %3398 = vmatpush1.msra.mxu0 0.0
      %3399 = vmatprep.subr.mxu0 0.0
      %3400 = vmatpush1.msra.mxu0 0.0
      %3401 = vmatprep.subr.mxu0 0.0
      %3402 = vmatpush1.msra.mxu0 0.0
      %3403 = vmatprep.subr.mxu0 0.0
      %3404 = vmatpush1.msra.mxu0 0.0
      %3405 = vmatprep.subr.mxu0 0.0
      %3406 = vmatpush1.msra.mxu0 0.0
      %3407 = vmatprep.subr.mxu0 0.0
      %3408 = vmatpush1.msra.mxu0 0.0
      %3409 = vmatprep.subr.mxu0 0.0
      %3410 = vmatpush1.msra.mxu0 0.0
      %3411 = vmatprep.subr.mxu0 0.0
      %3412 = vmatpush1.msra.mxu0 0.0
      %3413 = vmatprep.subr.mxu0 0.0
      %3414 = vmatpush1.msra.mxu0 0.0
      %3415 = vmatprep.subr.mxu0 0.0
      %3416 = vmatpush1.msra.mxu0 0.0
      %3417 = vmatprep.subr.mxu0 0.0
      %3418 = vmatpush1.msra.mxu0 0.0
      %3419 = vmatprep.subr.mxu0 0.0
      %3420 = vmatpush1.msra.mxu0 0.0
      %3421 = vmatprep.subr.mxu0 0.0
      %3422 = vmatpush1.msra.mxu0 0.0
      %3423 = vmatprep.subr.mxu0 0.0
      %3424 = vmatpush1.msra.mxu0 0.0
      %3425 = vmatprep.subr.mxu0 0.0
      %3426 = vmatpush1.msra.mxu0 0.0
      %3427 = vmatprep.subr.mxu0 0.0
      %3428 = vmatpush1.msra.mxu0 0.0
      %3429 = vmatprep.subr.mxu0 0.0
      %3430 = vmatpush1.msra.mxu0 0.0
      %3431 = vmatprep.subr.mxu0 0.0
      %3432 = vmatpush1.msra.mxu0 0.0
      %3433 = vmatprep.subr.mxu0 0.0
      %3434 = vmatpush1.msra.mxu0 0.0
      %3435 = vmatprep.subr.mxu0 0.0
      %3436 = vmatpush1.msra.mxu0 0.0
      %3437 = vmatprep.subr.mxu0 0.0
      %3438 = vmatpush1.msra.mxu0 0.0
      %3439 = vmatprep.subr.mxu0 0.0
      %3440 = vmatpush1.msra.mxu0 0.0
      %3441 = vmatprep.subr.mxu0 0.0
      %3442 = vmatpush1.msra.mxu0 0.0
      %3443 = vmatprep.subr.mxu0 0.0
      %3444 = vmatpush1.msra.mxu0 0.0
      %3445 = vmatprep.subr.mxu0 0.0
      %3446 = vmatpush1.msra.mxu0 0.0
      %3447 = vmatprep.subr.mxu0 0.0
      %3448 = vmatpush1.msra.mxu0 0.0
      %3449 = vmatprep.mubr.f32.mxu0 0.0
      %3450 = vmatmul.mubr.f32.gmra.mrb[0].mxu0 %v909
      %v3451 = vpop.f32.mrb[0].mxu0
      %v3452 = vadd.f32 0.0, %v3451
      %v3453 = vpop.f32.mrb[0].mxu0
      %3454 = vmatprep.mubr.f32.mxu0 0.0
      %3455 = vmatmul.mubr.f32.gmra.mrb[0].mxu0 %v912
      %v3456 = vpop.f32.mrb[0].mxu0
      %v3457 = vadd.f32 0.0, %v3456
      %v3458 = vpop.f32.mrb[0].mxu0
      %3459 = vmatprep.mubr.f32.mxu0 0.0
      %3460 = vmatmul.mubr.f32.gmra.mrb[0].mxu0 %v915
      %v3461 = vpop.f32.mrb[0].mxu0
      %v3462 = vadd.f32 0.0, %v3461
      %v3463 = vpop.f32.mrb[0].mxu0
      %3464 = vdwg.mxu0
      %v3465 = vadd.f32 %v3376, %v3452
      %v3466 = vadd.f32 %v3377, %v3457
      %v3467 = vadd.f32 %v3378, %v3462
      %3468 = vrot.lane.b32.xlu0 %v3290, 117
      %v3469 = vpop.permute.xlu0 %3468
      %v3470 = vsel %vm537, %v3469, 0
      %3472 = vmatprep.subr.mxu0 0.0
      %3473 = vmatpush1.msra.mxu0 %v3470
      %3474 = vmatprep.subr.mxu0 0.0
      %3475 = vmatpush1.msra.mxu0 0.0
      %3476 = vmatprep.subr.mxu0 0.0
      %3477 = vmatpush1.msra.mxu0 0.0
      %3478 = vmatprep.subr.mxu0 0.0
      %3479 = vmatpush1.msra.mxu0 0.0
      %3480 = vmatprep.subr.mxu0 0.0
      %3481 = vmatpush1.msra.mxu0 0.0
      %3482 = vmatprep.subr.mxu0 0.0
      %3483 = vmatpush1.msra.mxu0 0.0
      %3484 = vmatprep.subr.mxu0 0.0
      %3485 = vmatpush1.msra.mxu0 0.0
      %3486 = vmatprep.subr.mxu0 0.0
      %3487 = vmatpush1.msra.mxu0 0.0
      %3488 = vmatprep.subr.mxu0 0.0
      %3489 = vmatpush1.msra.mxu0 0.0
      %3490 = vmatprep.subr.mxu0 0.0
      %3491 = vmatpush1.msra.mxu0 0.0
      %3492 = vmatprep.subr.mxu0 0.0
      %3493 = vmatpush1.msra.mxu0 0.0
      %3494 = vmatprep.subr.mxu0 0.0
      %3495 = vmatpush1.msra.mxu0 0.0
      %3496 = vmatprep.subr.mxu0 0.0
      %3497 = vmatpush1.msra.mxu0 0.0
      %3498 = vmatprep.subr.mxu0 0.0
      %3499 = vmatpush1.msra.mxu0 0.0
      %3500 = vmatprep.subr.mxu0 0.0
      %3501 = vmatpush1.msra.mxu0 0.0
      %3502 = vmatprep.subr.mxu0 0.0
      %3503 = vmatpush1.msra.mxu0 0.0
      %3504 = vmatprep.subr.mxu0 0.0
      %3505 = vmatpush1.msra.mxu0 0.0
      %3506 = vmatprep.subr.mxu0 0.0
      %3507 = vmatpush1.msra.mxu0 0.0
      %3508 = vmatprep.subr.mxu0 0.0
      %3509 = vmatpush1.msra.mxu0 0.0
      %3510 = vmatprep.subr.mxu0 0.0
      %3511 = vmatpush1.msra.mxu0 0.0
      %3512 = vmatprep.subr.mxu0 0.0
      %3513 = vmatpush1.msra.mxu0 0.0
      %3514 = vmatprep.subr.mxu0 0.0
      %3515 = vmatpush1.msra.mxu0 0.0
      %3516 = vmatprep.subr.mxu0 0.0
      %3517 = vmatpush1.msra.mxu0 0.0
      %3518 = vmatprep.subr.mxu0 0.0
      %3519 = vmatpush1.msra.mxu0 0.0
      %3520 = vmatprep.subr.mxu0 0.0
      %3521 = vmatpush1.msra.mxu0 0.0
      %3522 = vmatprep.subr.mxu0 0.0
      %3523 = vmatpush1.msra.mxu0 0.0
      %3524 = vmatprep.subr.mxu0 0.0
      %3525 = vmatpush1.msra.mxu0 0.0
      %3526 = vmatprep.subr.mxu0 0.0
      %3527 = vmatpush1.msra.mxu0 0.0
      %3528 = vmatprep.subr.mxu0 0.0
      %3529 = vmatpush1.msra.mxu0 0.0
      %3530 = vmatprep.subr.mxu0 0.0
      %3531 = vmatpush1.msra.mxu0 0.0
      %3532 = vmatprep.subr.mxu0 0.0
      %3533 = vmatpush1.msra.mxu0 0.0
      %3534 = vmatprep.subr.mxu0 0.0
      %3535 = vmatpush1.msra.mxu0 0.0
      %3536 = vmatprep.mubr.f32.mxu0 0.0
      %3537 = vmatmul.mubr.f32.gmra.mrb[0].mxu0 %v1006
      %v3538 = vpop.f32.mrb[0].mxu0
      %v3539 = vadd.f32 0.0, %v3538
      %v3540 = vpop.f32.mrb[0].mxu0
      %3541 = vmatprep.mubr.f32.mxu0 0.0
      %3542 = vmatmul.mubr.f32.gmra.mrb[0].mxu0 %v1009
      %v3543 = vpop.f32.mrb[0].mxu0
      %v3544 = vadd.f32 0.0, %v3543
      %v3545 = vpop.f32.mrb[0].mxu0
      %3546 = vmatprep.mubr.f32.mxu0 0.0
      %3547 = vmatmul.mubr.f32.gmra.mrb[0].mxu0 %v1012
      %v3548 = vpop.f32.mrb[0].mxu0
      %v3549 = vadd.f32 0.0, %v3548
      %v3550 = vpop.f32.mrb[0].mxu0
      %3551 = vdwg.mxu0
      %v3552 = vadd.f32 %v3465, %v3539
      %v3553 = vadd.f32 %v3466, %v3544
      %v3554 = vadd.f32 %v3467, %v3549
      %3555 = vrot.lane.b32.xlu0 %v3033, 118
      %v3556 = vpop.permute.xlu0 %3555
      %v3557 = vsel %vm537, %v3556, 0
      %3559 = vmatprep.subr.mxu0 0.0
      %3560 = vmatpush1.msra.mxu0 %v3557
      %3561 = vmatprep.subr.mxu0 0.0
      %3562 = vmatpush1.msra.mxu0 0.0
      %3563 = vmatprep.subr.mxu0 0.0
      %3564 = vmatpush1.msra.mxu0 0.0
      %3565 = vmatprep.subr.mxu0 0.0
      %3566 = vmatpush1.msra.mxu0 0.0
      %3567 = vmatprep.subr.mxu0 0.0
      %3568 = vmatpush1.msra.mxu0 0.0
      %3569 = vmatprep.subr.mxu0 0.0
      %3570 = vmatpush1.msra.mxu0 0.0
      %3571 = vmatprep.subr.mxu0 0.0
      %3572 = vmatpush1.msra.mxu0 0.0
      %3573 = vmatprep.subr.mxu0 0.0
      %3574 = vmatpush1.msra.mxu0 0.0
      %3575 = vmatprep.subr.mxu0 0.0
      %3576 = vmatpush1.msra.mxu0 0.0
      %3577 = vmatprep.subr.mxu0 0.0
      %3578 = vmatpush1.msra.mxu0 0.0
      %3579 = vmatprep.subr.mxu0 0.0
      %3580 = vmatpush1.msra.mxu0 0.0
      %3581 = vmatprep.subr.mxu0 0.0
      %3582 = vmatpush1.msra.mxu0 0.0
      %3583 = vmatprep.subr.mxu0 0.0
      %3584 = vmatpush1.msra.mxu0 0.0
      %3585 = vmatprep.subr.mxu0 0.0
      %3586 = vmatpush1.msra.mxu0 0.0
      %3587 = vmatprep.subr.mxu0 0.0
      %3588 = vmatpush1.msra.mxu0 0.0
      %3589 = vmatprep.subr.mxu0 0.0
      %3590 = vmatpush1.msra.mxu0 0.0
      %3591 = vmatprep.subr.mxu0 0.0
      %3592 = vmatpush1.msra.mxu0 0.0
      %3593 = vmatprep.subr.mxu0 0.0
      %3594 = vmatpush1.msra.mxu0 0.0
      %3595 = vmatprep.subr.mxu0 0.0
      %3596 = vmatpush1.msra.mxu0 0.0
      %3597 = vmatprep.subr.mxu0 0.0
      %3598 = vmatpush1.msra.mxu0 0.0
      %3599 = vmatprep.subr.mxu0 0.0
      %3600 = vmatpush1.msra.mxu0 0.0
      %3601 = vmatprep.subr.mxu0 0.0
      %3602 = vmatpush1.msra.mxu0 0.0
      %3603 = vmatprep.subr.mxu0 0.0
      %3604 = vmatpush1.msra.mxu0 0.0
      %3605 = vmatprep.subr.mxu0 0.0
      %3606 = vmatpush1.msra.mxu0 0.0
      %3607 = vmatprep.subr.mxu0 0.0
      %3608 = vmatpush1.msra.mxu0 0.0
      %3609 = vmatprep.subr.mxu0 0.0
      %3610 = vmatpush1.msra.mxu0 0.0
      %3611 = vmatprep.subr.mxu0 0.0
      %3612 = vmatpush1.msra.mxu0 0.0
      %3613 = vmatprep.subr.mxu0 0.0
      %3614 = vmatpush1.msra.mxu0 0.0
      %3615 = vmatprep.subr.mxu0 0.0
      %3616 = vmatpush1.msra.mxu0 0.0
      %3617 = vmatprep.subr.mxu0 0.0
      %3618 = vmatpush1.msra.mxu0 0.0
      %3619 = vmatprep.subr.mxu0 0.0
      %3620 = vmatpush1.msra.mxu0 0.0
      %3621 = vmatprep.subr.mxu0 0.0
      %3622 = vmatpush1.msra.mxu0 0.0
      %3623 = vmatprep.mubr.f32.mxu0 0.0
      %3624 = vmatmul.mubr.f32.gmra.mrb[0].mxu0 %v1102
      %v3625 = vpop.f32.mrb[0].mxu0
      %v3626 = vadd.f32 0.0, %v3625
      %v3627 = vpop.f32.mrb[0].mxu0
      %3628 = vmatprep.mubr.f32.mxu0 0.0
      %3629 = vmatmul.mubr.f32.gmra.mrb[0].mxu0 %v1105
      %v3630 = vpop.f32.mrb[0].mxu0
      %v3631 = vadd.f32 0.0, %v3630
      %v3632 = vpop.f32.mrb[0].mxu0
      %3633 = vmatprep.mubr.f32.mxu0 0.0
      %3634 = vmatmul.mubr.f32.gmra.mrb[0].mxu0 %v1108
      %v3635 = vpop.f32.mrb[0].mxu0
      %v3636 = vadd.f32 0.0, %v3635
      %v3637 = vpop.f32.mrb[0].mxu0
      %3638 = vdwg.mxu0
      %v3639 = vadd.f32 %v3552, %v3626
      %v3640 = vadd.f32 %v3553, %v3631
      %v3641 = vadd.f32 %v3554, %v3636
      %3642 = vrot.lane.b32.xlu0 %v3034, 117
      %v3643 = vpop.permute.xlu0 %3642
      %v3644 = vsel %vm537, %v3643, 0
      %3646 = vmatprep.subr.mxu0 0.0
      %3647 = vmatpush1.msra.mxu0 %v3644
      %3648 = vmatprep.subr.mxu0 0.0
      %3649 = vmatpush1.msra.mxu0 0.0
      %3650 = vmatprep.subr.mxu0 0.0
      %3651 = vmatpush1.msra.mxu0 0.0
      %3652 = vmatprep.subr.mxu0 0.0
      %3653 = vmatpush1.msra.mxu0 0.0
      %3654 = vmatprep.subr.mxu0 0.0
      %3655 = vmatpush1.msra.mxu0 0.0
      %3656 = vmatprep.subr.mxu0 0.0
      %3657 = vmatpush1.msra.mxu0 0.0
      %3658 = vmatprep.subr.mxu0 0.0
      %3659 = vmatpush1.msra.mxu0 0.0
      %3660 = vmatprep.subr.mxu0 0.0
      %3661 = vmatpush1.msra.mxu0 0.0
      %3662 = vmatprep.subr.mxu0 0.0
      %3663 = vmatpush1.msra.mxu0 0.0
      %3664 = vmatprep.subr.mxu0 0.0
      %3665 = vmatpush1.msra.mxu0 0.0
      %3666 = vmatprep.subr.mxu0 0.0
      %3667 = vmatpush1.msra.mxu0 0.0
      %3668 = vmatprep.subr.mxu0 0.0
      %3669 = vmatpush1.msra.mxu0 0.0
      %3670 = vmatprep.subr.mxu0 0.0
      %3671 = vmatpush1.msra.mxu0 0.0
      %3672 = vmatprep.subr.mxu0 0.0
      %3673 = vmatpush1.msra.mxu0 0.0
      %3674 = vmatprep.subr.mxu0 0.0
      %3675 = vmatpush1.msra.mxu0 0.0
      %3676 = vmatprep.subr.mxu0 0.0
      %3677 = vmatpush1.msra.mxu0 0.0
      %3678 = vmatprep.subr.mxu0 0.0
      %3679 = vmatpush1.msra.mxu0 0.0
      %3680 = vmatprep.subr.mxu0 0.0
      %3681 = vmatpush1.msra.mxu0 0.0
      %3682 = vmatprep.subr.mxu0 0.0
      %3683 = vmatpush1.msra.mxu0 0.0
      %3684 = vmatprep.subr.mxu0 0.0
      %3685 = vmatpush1.msra.mxu0 0.0
      %3686 = vmatprep.subr.mxu0 0.0
      %3687 = vmatpush1.msra.mxu0 0.0
      %3688 = vmatprep.subr.mxu0 0.0
      %3689 = vmatpush1.msra.mxu0 0.0
      %3690 = vmatprep.subr.mxu0 0.0
      %3691 = vmatpush1.msra.mxu0 0.0
      %3692 = vmatprep.subr.mxu0 0.0
      %3693 = vmatpush1.msra.mxu0 0.0
      %3694 = vmatprep.subr.mxu0 0.0
      %3695 = vmatpush1.msra.mxu0 0.0
      %3696 = vmatprep.subr.mxu0 0.0
      %3697 = vmatpush1.msra.mxu0 0.0
      %3698 = vmatprep.subr.mxu0 0.0
      %3699 = vmatpush1.msra.mxu0 0.0
      %3700 = vmatprep.subr.mxu0 0.0
      %3701 = vmatpush1.msra.mxu0 0.0
      %3702 = vmatprep.subr.mxu0 0.0
      %3703 = vmatpush1.msra.mxu0 0.0
      %3704 = vmatprep.subr.mxu0 0.0
      %3705 = vmatpush1.msra.mxu0 0.0
      %3706 = vmatprep.subr.mxu0 0.0
      %3707 = vmatpush1.msra.mxu0 0.0
      %3708 = vmatprep.subr.mxu0 0.0
      %3709 = vmatpush1.msra.mxu0 0.0
      %3710 = vmatprep.mubr.f32.mxu0 0.0
      %3711 = vmatmul.mubr.f32.gmra.mrb[0].mxu0 %v1198
      %v3712 = vpop.f32.mrb[0].mxu0
      %v3713 = vadd.f32 0.0, %v3712
      %v3714 = vpop.f32.mrb[0].mxu0
      %3715 = vmatprep.mubr.f32.mxu0 0.0
      %3716 = vmatmul.mubr.f32.gmra.mrb[0].mxu0 %v1201
      %v3717 = vpop.f32.mrb[0].mxu0
      %v3718 = vadd.f32 0.0, %v3717
      %v3719 = vpop.f32.mrb[0].mxu0
      %3720 = vmatprep.mubr.f32.mxu0 0.0
      %3721 = vmatmul.mubr.f32.gmra.mrb[0].mxu0 %v1204
      %v3722 = vpop.f32.mrb[0].mxu0
      %v3723 = vadd.f32 0.0, %v3722
      %v3724 = vpop.f32.mrb[0].mxu0
      %3725 = vdwg.mxu0
      %v3726 = vadd.f32 %v3639, %v3713
      %v3727 = vadd.f32 %v3640, %v3718
      %v3728 = vadd.f32 %v3641, %v3723
      %3729 = vrot.lane.b32.xlu0 %v3033, 117
      %v3730 = vpop.permute.xlu0 %3729
      %v3731 = vsel %vm537, %v3730, 0
      %3733 = vmatprep.subr.mxu0 0.0
      %3734 = vmatpush1.msra.mxu0 %v3731
      %3735 = vmatprep.subr.mxu0 0.0
      %3736 = vmatpush1.msra.mxu0 0.0
      %3737 = vmatprep.subr.mxu0 0.0
      %3738 = vmatpush1.msra.mxu0 0.0
      %3739 = vmatprep.subr.mxu0 0.0
      %3740 = vmatpush1.msra.mxu0 0.0
      %3741 = vmatprep.subr.mxu0 0.0
      %3742 = vmatpush1.msra.mxu0 0.0
      %3743 = vmatprep.subr.mxu0 0.0
      %3744 = vmatpush1.msra.mxu0 0.0
      %3745 = vmatprep.subr.mxu0 0.0
      %3746 = vmatpush1.msra.mxu0 0.0
      %3747 = vmatprep.subr.mxu0 0.0
      %3748 = vmatpush1.msra.mxu0 0.0
      %3749 = vmatprep.subr.mxu0 0.0
      %3750 = vmatpush1.msra.mxu0 0.0
      %3751 = vmatprep.subr.mxu0 0.0
      %3752 = vmatpush1.msra.mxu0 0.0
      %3753 = vmatprep.subr.mxu0 0.0
      %3754 = vmatpush1.msra.mxu0 0.0
      %3755 = vmatprep.subr.mxu0 0.0
      %3756 = vmatpush1.msra.mxu0 0.0
      %3757 = vmatprep.subr.mxu0 0.0
      %3758 = vmatpush1.msra.mxu0 0.0
      %3759 = vmatprep.subr.mxu0 0.0
      %3760 = vmatpush1.msra.mxu0 0.0
      %3761 = vmatprep.subr.mxu0 0.0
      %3762 = vmatpush1.msra.mxu0 0.0
      %3763 = vmatprep.subr.mxu0 0.0
      %3764 = vmatpush1.msra.mxu0 0.0
      %3765 = vmatprep.subr.mxu0 0.0
      %3766 = vmatpush1.msra.mxu0 0.0
      %3767 = vmatprep.subr.mxu0 0.0
      %3768 = vmatpush1.msra.mxu0 0.0
      %3769 = vmatprep.subr.mxu0 0.0
      %3770 = vmatpush1.msra.mxu0 0.0
      %3771 = vmatprep.subr.mxu0 0.0
      %3772 = vmatpush1.msra.mxu0 0.0
      %3773 = vmatprep.subr.mxu0 0.0
      %3774 = vmatpush1.msra.mxu0 0.0
      %3775 = vmatprep.subr.mxu0 0.0
      %3776 = vmatpush1.msra.mxu0 0.0
      %3777 = vmatprep.subr.mxu0 0.0
      %3778 = vmatpush1.msra.mxu0 0.0
      %3779 = vmatprep.subr.mxu0 0.0
      %3780 = vmatpush1.msra.mxu0 0.0
      %3781 = vmatprep.subr.mxu0 0.0
      %3782 = vmatpush1.msra.mxu0 0.0
      %3783 = vmatprep.subr.mxu0 0.0
      %3784 = vmatpush1.msra.mxu0 0.0
      %3785 = vmatprep.subr.mxu0 0.0
      %3786 = vmatpush1.msra.mxu0 0.0
      %3787 = vmatprep.subr.mxu0 0.0
      %3788 = vmatpush1.msra.mxu0 0.0
      %3789 = vmatprep.subr.mxu0 0.0
      %3790 = vmatpush1.msra.mxu0 0.0
      %3791 = vmatprep.subr.mxu0 0.0
      %3792 = vmatpush1.msra.mxu0 0.0
      %3793 = vmatprep.subr.mxu0 0.0
      %3794 = vmatpush1.msra.mxu0 0.0
      %3795 = vmatprep.subr.mxu0 0.0
      %3796 = vmatpush1.msra.mxu0 0.0
      %3797 = vmatprep.mubr.f32.mxu0 0.0
      %3798 = vmatmul.mubr.f32.gmra.mrb[0].mxu0 %v1294
      %v3799 = vpop.f32.mrb[0].mxu0
      %v3800 = vadd.f32 0.0, %v3799
      %v3801 = vpop.f32.mrb[0].mxu0
      %3802 = vmatprep.mubr.f32.mxu0 0.0
      %3803 = vmatmul.mubr.f32.gmra.mrb[0].mxu0 %v1297
      %v3804 = vpop.f32.mrb[0].mxu0
      %v3805 = vadd.f32 0.0, %v3804
      %v3806 = vpop.f32.mrb[0].mxu0
      %3807 = vmatprep.mubr.f32.mxu0 0.0
      %3808 = vmatmul.mubr.f32.gmra.mrb[0].mxu0 %v1300
      %v3809 = vpop.f32.mrb[0].mxu0
      %v3810 = vadd.f32 0.0, %v3809
      %v3811 = vpop.f32.mrb[0].mxu0
      %3812 = vdwg.mxu0
      %v3813 = vadd.f32 %v3726, %v3800
      %v3814 = vadd.f32 %v3727, %v3805
      %v3815 = vadd.f32 %v3728, %v3810
      %v3816 = vadd.f32 %v3813, %v1390
      %v3817 = vadd.f32 %v3814, %v1395
      %v3818 = vadd.f32 %v3815, %v1400
      %v3819 = vmax.f32 %v3816, 0.0
      %v3820 = vmax.f32 %v3817, 0.0
      %v3821 = vmax.f32 %v3818, 0.0
      %v3822 = vsel %vm1413, %v3819, 0.0
      %v3823 = vsel %vm1413, %v3820, 0.0
      %v3824 = vsel %vm1413, %v3821, 0.0
      %3828 = vrot.lane.b32.xlu0 %v3822, 11
      %v3829 = vpop.permute.xlu0 %3828
      %3830 = vrot.lane.b32.xlu0 %v3823, 11
      %v3831 = vpop.permute.xlu0 %3830
      %3832 = vrot.lane.b32.xlu0 %v3824, 11
      %v3833 = vpop.permute.xlu0 %3832
      %vm3837 = vcmask 744536
      %3838 = vst.msk [vmem:[#allocation2] sm:$0xff] %vm3837, %v3829
      %3839 = vst.msk [vmem:[#allocation2 + $0x8] sm:$0xff] %vm3837, %v3831
      %3840 = vst.msk [vmem:[#allocation2 + $0x10] sm:$0xff] %vm3837, %v3833
      %v3841 = vld [vmem:[#allocation2] sm:$0xff]
      %v3842 = vld [vmem:[#allocation2 + $0x8] sm:$0xff]
      %v3843 = vld [vmem:[#allocation2 + $0x10] sm:$0xff]
      %3845 = vset.pattern.permute.xlu0 0
      %3846 = vperm.xlu0 %3845, %v471
      %v3847 = vpop.permute.xlu0 %3846
      %3850 = vset.pattern.permute.xlu0 0
      %3851 = vperm.xlu0 %3850, %v472
      %v3852 = vpop.permute.xlu0 %3851
      %3855 = vset.pattern.permute.xlu0 0
      %3856 = vperm.xlu0 %3855, %v473
      %v3857 = vpop.permute.xlu0 %3856
      %v3859 = vmul.f32 %v3847, %v3841
      %v3860 = vmul.f32 %v3852, %v3842
      %v3861 = vmul.f32 %v3857, %v3843
      %v3862 = vadd.f32 %v3859, 0.0
      %v3863 = vadd.f32 %v3860, 0.0
      %v3864 = vadd.f32 %v3861, 0.0
      %v3865 = vld [vmem:[%s434] sm:$0xf]
      %3867 = vset.pattern.permute.xlu0 0
      %3868 = vperm.xlu0 %3867, %v484
      %v3869 = vpop.permute.xlu0 %3868
      %v3871 = vmul.f32 %v3869, %v3865
      %v3872 = vadd.f32 %v3871, 0.0
      %v3873 = vld [vmem:[%s496] sm:$0xff]
      %v3874 = vld [vmem:[%s496 + $0x8] sm:$0xff]
      %v3875 = vld [vmem:[%s496 + $0x10] sm:$0xff]
      %3876 = vset.pattern.permute.xlu0 1
      %3877 = vperm.xlu0 %3876, %v471
      %v3878 = vpop.permute.xlu0 %3877
      %3880 = vset.pattern.permute.xlu0 1
      %3881 = vperm.xlu0 %3880, %v472
      %v3882 = vpop.permute.xlu0 %3881
      %3884 = vset.pattern.permute.xlu0 1
      %3885 = vperm.xlu0 %3884, %v473
      %v3886 = vpop.permute.xlu0 %3885
      %v3888 = vmul.f32 %v3878, %v3873
      %v3889 = vmul.f32 %v3882, %v3874
      %v3890 = vmul.f32 %v3886, %v3875
      %v3891 = vadd.f32 %v3862, %v3888
      %v3892 = vadd.f32 %v3863, %v3889
      %v3893 = vadd.f32 %v3864, %v3890
      %v3894 = vld [vmem:[%s525] sm:$0xf]
      %3895 = vset.pattern.permute.xlu0 1
      %3896 = vperm.xlu0 %3895, %v484
      %v3897 = vpop.permute.xlu0 %3896
      %v3899 = vmul.f32 %v3897, %v3894
      %v3900 = vadd.f32 %v3872, %v3899
      %3901 = vset.pattern.permute.xlu0 2
      %3902 = vperm.xlu0 %3901, %v471
      %v3903 = vpop.permute.xlu0 %3902
      %3905 = vset.pattern.permute.xlu0 2
      %3906 = vperm.xlu0 %3905, %v472
      %v3907 = vpop.permute.xlu0 %3906
      %3909 = vset.pattern.permute.xlu0 2
      %3910 = vperm.xlu0 %3909, %v473
      %v3911 = vpop.permute.xlu0 %3910
      %v3913 = vmul.f32 %v3903, %v3841
      %v3914 = vmul.f32 %v3907, %v3842
      %v3915 = vmul.f32 %v3911, %v3843
      %3919 = vrot.lane.b32.xlu0 %v3913, 127
      %v3920 = vpop.permute.xlu0 %3919
      %3921 = vrot.lane.b32.xlu0 %v3914, 127
      %v3922 = vpop.permute.xlu0 %3921
      %3923 = vrot.lane.b32.xlu0 %v3915, 127
      %v3924 = vpop.permute.xlu0 %3923
      %v3928 = vadd.f32 %v3891, %v3920
      %v3929 = vadd.f32 %v3892, %v3922
      %v3930 = vadd.f32 %v3893, %v3924
      %3931 = vset.pattern.permute.xlu0 2
      %3932 = vperm.xlu0 %3931, %v484
      %v3933 = vpop.permute.xlu0 %3932
      %v3935 = vmul.f32 %v3933, %v3865
      %3937 = vrot.lane.b32.xlu0 %v3935, 127
      %v3938 = vpop.permute.xlu0 %3937
      %v3940 = vadd.f32 %v3900, %v3938
      %v3941 = vld [vmem:[%s503] sm:$0xff]
      %v3942 = vld [vmem:[%s503 + $0x8] sm:$0xff]
      %v3943 = vld [vmem:[%s503 + $0x10] sm:$0xff]
      %3944 = vset.pattern.permute.xlu0 3
      %3945 = vperm.xlu0 %3944, %v471
      %v3946 = vpop.permute.xlu0 %3945
      %3948 = vset.pattern.permute.xlu0 3
      %3949 = vperm.xlu0 %3948, %v472
      %v3950 = vpop.permute.xlu0 %3949
      %3952 = vset.pattern.permute.xlu0 3
      %3953 = vperm.xlu0 %3952, %v473
      %v3954 = vpop.permute.xlu0 %3953
      %v3956 = vmul.f32 %v3946, %v3941
      %v3957 = vmul.f32 %v3950, %v3942
      %v3958 = vmul.f32 %v3954, %v3943
      %v3959 = vadd.f32 %v3928, %v3956
      %v3960 = vadd.f32 %v3929, %v3957
      %v3961 = vadd.f32 %v3930, %v3958
      %v3962 = vld [vmem:[%s809] sm:$0xf]
      %3963 = vset.pattern.permute.xlu0 3
      %3964 = vperm.xlu0 %3963, %v484
      %v3965 = vpop.permute.xlu0 %3964
      %v3967 = vmul.f32 %v3965, %v3962
      %v3968 = vadd.f32 %v3940, %v3967
      %v3969 = vld [vmem:[%s510] sm:$0xff]
      %v3970 = vld [vmem:[%s510 + $0x8] sm:$0xff]
      %v3971 = vld [vmem:[%s510 + $0x10] sm:$0xff]
      %3972 = vset.pattern.permute.xlu0 4
      %3973 = vperm.xlu0 %3972, %v471
      %v3974 = vpop.permute.xlu0 %3973
      %3976 = vset.pattern.permute.xlu0 4
      %3977 = vperm.xlu0 %3976, %v472
      %v3978 = vpop.permute.xlu0 %3977
      %3980 = vset.pattern.permute.xlu0 4
      %3981 = vperm.xlu0 %3980, %v473
      %v3982 = vpop.permute.xlu0 %3981
      %v3984 = vmul.f32 %v3974, %v3969
      %v3985 = vmul.f32 %v3978, %v3970
      %v3986 = vmul.f32 %v3982, %v3971
      %v3987 = vadd.f32 %v3959, %v3984
      %v3988 = vadd.f32 %v3960, %v3985
      %v3989 = vadd.f32 %v3961, %v3986
      %v3990 = vld [vmem:[%s906] sm:$0xf]
      %3991 = vset.pattern.permute.xlu0 4
      %3992 = vperm.xlu0 %3991, %v484
      %v3993 = vpop.permute.xlu0 %3992
      %v3995 = vmul.f32 %v3993, %v3990
      %v3996 = vadd.f32 %v3968, %v3995
      %3997 = vset.pattern.permute.xlu0 5
      %3998 = vperm.xlu0 %3997, %v471
      %v3999 = vpop.permute.xlu0 %3998
      %4001 = vset.pattern.permute.xlu0 5
      %4002 = vperm.xlu0 %4001, %v472
      %v4003 = vpop.permute.xlu0 %4002
      %4005 = vset.pattern.permute.xlu0 5
      %4006 = vperm.xlu0 %4005, %v473
      %v4007 = vpop.permute.xlu0 %4006
      %v4009 = vmul.f32 %v3999, %v3941
      %v4010 = vmul.f32 %v4003, %v3942
      %v4011 = vmul.f32 %v4007, %v3943
      %4015 = vrot.lane.b32.xlu0 %v4009, 127
      %v4016 = vpop.permute.xlu0 %4015
      %4017 = vrot.lane.b32.xlu0 %v4010, 127
      %v4018 = vpop.permute.xlu0 %4017
      %4019 = vrot.lane.b32.xlu0 %v4011, 127
      %v4020 = vpop.permute.xlu0 %4019
      %v4024 = vadd.f32 %v3987, %v4016
      %v4025 = vadd.f32 %v3988, %v4018
      %v4026 = vadd.f32 %v3989, %v4020
      %4027 = vset.pattern.permute.xlu0 5
      %4028 = vperm.xlu0 %4027, %v484
      %v4029 = vpop.permute.xlu0 %4028
      %v4031 = vmul.f32 %v4029, %v3962
      %4033 = vrot.lane.b32.xlu0 %v4031, 127
      %v4034 = vpop.permute.xlu0 %4033
      %v4036 = vadd.f32 %v3996, %v4034
      %4037 = vset.pattern.permute.xlu0 6
      %4038 = vperm.xlu0 %4037, %v471
      %v4039 = vpop.permute.xlu0 %4038
      %4041 = vset.pattern.permute.xlu0 6
      %4042 = vperm.xlu0 %4041, %v472
      %v4043 = vpop.permute.xlu0 %4042
      %4045 = vset.pattern.permute.xlu0 6
      %4046 = vperm.xlu0 %4045, %v473
      %v4047 = vpop.permute.xlu0 %4046
      %v4049 = vmul.f32 %v4039, %v3841
      %v4050 = vmul.f32 %v4043, %v3842
      %v4051 = vmul.f32 %v4047, %v3843
      %4055 = vrot.lane.b32.xlu0 %v4049, 118
      %v4056 = vpop.permute.xlu0 %4055
      %4057 = vrot.lane.b32.xlu0 %v4050, 118
      %v4058 = vpop.permute.xlu0 %4057
      %4059 = vrot.lane.b32.xlu0 %v4051, 118
      %v4060 = vpop.permute.xlu0 %4059
      %v4064 = vadd.f32 %v4024, %v4056
      %v4065 = vadd.f32 %v4025, %v4058
      %v4066 = vadd.f32 %v4026, %v4060
      %4067 = vset.pattern.permute.xlu0 6
      %4068 = vperm.xlu0 %4067, %v484
      %v4069 = vpop.permute.xlu0 %4068
      %v4071 = vmul.f32 %v4069, %v3865
      %4073 = vrot.lane.b32.xlu0 %v4071, 118
      %v4074 = vpop.permute.xlu0 %4073
      %v4076 = vadd.f32 %v4036, %v4074
      %4077 = vset.pattern.permute.xlu0 7
      %4078 = vperm.xlu0 %4077, %v471
      %v4079 = vpop.permute.xlu0 %4078
      %4081 = vset.pattern.permute.xlu0 7
      %4082 = vperm.xlu0 %4081, %v472
      %v4083 = vpop.permute.xlu0 %4082
      %4085 = vset.pattern.permute.xlu0 7
      %4086 = vperm.xlu0 %4085, %v473
      %v4087 = vpop.permute.xlu0 %4086
      %v4089 = vmul.f32 %v4079, %v3873
      %v4090 = vmul.f32 %v4083, %v3874
      %v4091 = vmul.f32 %v4087, %v3875
      %4095 = vrot.lane.b32.xlu0 %v4089, 118
      %v4096 = vpop.permute.xlu0 %4095
      %4097 = vrot.lane.b32.xlu0 %v4090, 118
      %v4098 = vpop.permute.xlu0 %4097
      %4099 = vrot.lane.b32.xlu0 %v4091, 118
      %v4100 = vpop.permute.xlu0 %4099
      %v4104 = vadd.f32 %v4064, %v4096
      %v4105 = vadd.f32 %v4065, %v4098
      %v4106 = vadd.f32 %v4066, %v4100
      %4107 = vset.pattern.permute.xlu0 7
      %4108 = vperm.xlu0 %4107, %v484
      %v4109 = vpop.permute.xlu0 %4108
      %v4111 = vmul.f32 %v4109, %v3894
      %4113 = vrot.lane.b32.xlu0 %v4111, 118
      %v4114 = vpop.permute.xlu0 %4113
      %v4116 = vadd.f32 %v4076, %v4114
      %4117 = vset.pattern.permute.xlu0 8
      %4118 = vperm.xlu0 %4117, %v471
      %v4119 = vpop.permute.xlu0 %4118
      %4121 = vset.pattern.permute.xlu0 8
      %4122 = vperm.xlu0 %4121, %v472
      %v4123 = vpop.permute.xlu0 %4122
      %4125 = vset.pattern.permute.xlu0 8
      %4126 = vperm.xlu0 %4125, %v473
      %v4127 = vpop.permute.xlu0 %4126
      %v4129 = vmul.f32 %v4119, %v3841
      %v4130 = vmul.f32 %v4123, %v3842
      %v4131 = vmul.f32 %v4127, %v3843
      %4135 = vrot.lane.b32.xlu0 %v4129, 117
      %v4136 = vpop.permute.xlu0 %4135
      %4137 = vrot.lane.b32.xlu0 %v4130, 117
      %v4138 = vpop.permute.xlu0 %4137
      %4139 = vrot.lane.b32.xlu0 %v4131, 117
      %v4140 = vpop.permute.xlu0 %4139
      %v4144 = vadd.f32 %v4104, %v4136
      %v4145 = vadd.f32 %v4105, %v4138
      %v4146 = vadd.f32 %v4106, %v4140
      %4147 = vset.pattern.permute.xlu0 8
      %4148 = vperm.xlu0 %4147, %v484
      %v4149 = vpop.permute.xlu0 %4148
      %v4151 = vmul.f32 %v4149, %v3865
      %4153 = vrot.lane.b32.xlu0 %v4151, 117
      %v4154 = vpop.permute.xlu0 %4153
      %v4156 = vadd.f32 %v4116, %v4154
      %4158 = vset.pattern.permute.xlu0 0
      %4159 = vperm.xlu0 %4158, %v485
      %v4160 = vpop.permute.xlu0 %4159
      %v4162 = vadd.f32 %v4156, %v4160
      %4164 = vset.pattern.permute.xlu0 0
      %4165 = vperm.xlu0 %4164, %v474
      %v4166 = vpop.permute.xlu0 %4165
      %4169 = vset.pattern.permute.xlu0 0
      %4170 = vperm.xlu0 %4169, %v475
      %v4171 = vpop.permute.xlu0 %4170
      %4174 = vset.pattern.permute.xlu0 0
      %4175 = vperm.xlu0 %4174, %v476
      %v4176 = vpop.permute.xlu0 %4175
      %v4178 = vadd.f32 %v4144, %v4166
      %v4179 = vadd.f32 %v4145, %v4171
      %v4180 = vadd.f32 %v4146, %v4176
      %v4181 = vsel %vm1413, %v4178, 0.0
      %v4182 = vsel %vm1413, %v4179, 0.0
      %v4183 = vsel %vm1413, %v4180, 0.0
      %4187 = vrot.lane.b32.xlu0 %v4181, 11
      %v4188 = vpop.permute.xlu0 %4187
      %4189 = vrot.lane.b32.xlu0 %v4182, 11
      %v4190 = vpop.permute.xlu0 %4189
      %4191 = vrot.lane.b32.xlu0 %v4183, 11
      %v4192 = vpop.permute.xlu0 %4191
      %4196 = vst.msk [vmem:[#allocation3] sm:$0xff] %vm3837, %v4188
      %4197 = vst.msk [vmem:[#allocation3 + $0x8] sm:$0xff] %vm3837, %v4190
      %4198 = vst.msk [vmem:[#allocation3 + $0x10] sm:$0xff] %vm3837, %v4192
      %v4199 = vld [vmem:[#allocation3] sm:$0xff]
      %v4200 = vld [vmem:[#allocation3 + $0x8] sm:$0xff]
      %v4201 = vld [vmem:[#allocation3 + $0x10] sm:$0xff]
      %4203 = vset.pattern.permute.xlu0 0
      %4204 = vperm.xlu0 %4203, %v477
      %v4205 = vpop.permute.xlu0 %4204
      %4208 = vset.pattern.permute.xlu0 0
      %4209 = vperm.xlu0 %4208, %v478
      %v4210 = vpop.permute.xlu0 %4209
      %4213 = vset.pattern.permute.xlu0 0
      %4214 = vperm.xlu0 %4213, %v479
      %v4215 = vpop.permute.xlu0 %4214
      %v4217 = vmul.f32 %v4205, %v4199
      %v4218 = vmul.f32 %v4210, %v4200
      %v4219 = vmul.f32 %v4215, %v4201
      %v4220 = vadd.f32 %v4217, 0.0
      %v4221 = vadd.f32 %v4218, 0.0
      %v4222 = vadd.f32 %v4219, 0.0
      %4223 = vset.pattern.permute.xlu0 1
      %4224 = vperm.xlu0 %4223, %v477
      %v4225 = vpop.permute.xlu0 %4224
      %4227 = vset.pattern.permute.xlu0 1
      %4228 = vperm.xlu0 %4227, %v478
      %v4229 = vpop.permute.xlu0 %4228
      %4231 = vset.pattern.permute.xlu0 1
      %4232 = vperm.xlu0 %4231, %v479
      %v4233 = vpop.permute.xlu0 %4232
      %v4235 = vmul.f32 %v4225, %v4199
      %v4236 = vmul.f32 %v4229, %v4200
      %v4237 = vmul.f32 %v4233, %v4201
      %4241 = vrot.lane.b32.xlu0 %v4235, 127
      %v4242 = vpop.permute.xlu0 %4241
      %4243 = vrot.lane.b32.xlu0 %v4236, 127
      %v4244 = vpop.permute.xlu0 %4243
      %4245 = vrot.lane.b32.xlu0 %v4237, 127
      %v4246 = vpop.permute.xlu0 %4245
      %v4250 = vadd.f32 %v4220, %v4242
      %v4251 = vadd.f32 %v4221, %v4244
      %v4252 = vadd.f32 %v4222, %v4246
      %4253 = vset.pattern.permute.xlu0 2
      %4254 = vperm.xlu0 %4253, %v477
      %v4255 = vpop.permute.xlu0 %4254
      %4257 = vset.pattern.permute.xlu0 2
      %4258 = vperm.xlu0 %4257, %v478
      %v4259 = vpop.permute.xlu0 %4258
      %4261 = vset.pattern.permute.xlu0 2
      %4262 = vperm.xlu0 %4261, %v479
      %v4263 = vpop.permute.xlu0 %4262
      %v4265 = vmul.f32 %v4255, %v4199
      %v4266 = vmul.f32 %v4259, %v4200
      %v4267 = vmul.f32 %v4263, %v4201
      %4271 = vrot.lane.b32.xlu0 %v4265, 126
      %v4272 = vpop.permute.xlu0 %4271
      %4273 = vrot.lane.b32.xlu0 %v4266, 126
      %v4274 = vpop.permute.xlu0 %4273
      %4275 = vrot.lane.b32.xlu0 %v4267, 126
      %v4276 = vpop.permute.xlu0 %4275
      %v4280 = vadd.f32 %v4250, %v4272
      %v4281 = vadd.f32 %v4251, %v4274
      %v4282 = vadd.f32 %v4252, %v4276
      %4283 = vset.pattern.permute.xlu0 3
      %4284 = vperm.xlu0 %4283, %v477
      %v4285 = vpop.permute.xlu0 %4284
      %4287 = vset.pattern.permute.xlu0 3
      %4288 = vperm.xlu0 %4287, %v478
      %v4289 = vpop.permute.xlu0 %4288
      %4291 = vset.pattern.permute.xlu0 3
      %4292 = vperm.xlu0 %4291, %v479
      %v4293 = vpop.permute.xlu0 %4292
      %v4295 = vmul.f32 %v4285, %v4199
      %v4296 = vmul.f32 %v4289, %v4200
      %v4297 = vmul.f32 %v4293, %v4201
      %4301 = vrot.lane.b32.xlu0 %v4295, 118
      %v4302 = vpop.permute.xlu0 %4301
      %4303 = vrot.lane.b32.xlu0 %v4296, 118
      %v4304 = vpop.permute.xlu0 %4303
      %4305 = vrot.lane.b32.xlu0 %v4297, 118
      %v4306 = vpop.permute.xlu0 %4305
      %v4310 = vadd.f32 %v4280, %v4302
      %v4311 = vadd.f32 %v4281, %v4304
      %v4312 = vadd.f32 %v4282, %v4306
      %4313 = vset.pattern.permute.xlu0 4
      %4314 = vperm.xlu0 %4313, %v477
      %v4315 = vpop.permute.xlu0 %4314
      %4317 = vset.pattern.permute.xlu0 4
      %4318 = vperm.xlu0 %4317, %v478
      %v4319 = vpop.permute.xlu0 %4318
      %4321 = vset.pattern.permute.xlu0 4
      %4322 = vperm.xlu0 %4321, %v479
      %v4323 = vpop.permute.xlu0 %4322
      %v4325 = vmul.f32 %v4315, %v4199
      %v4326 = vmul.f32 %v4319, %v4200
      %v4327 = vmul.f32 %v4323, %v4201
      %4331 = vrot.lane.b32.xlu0 %v4325, 117
      %v4332 = vpop.permute.xlu0 %4331
      %4333 = vrot.lane.b32.xlu0 %v4326, 117
      %v4334 = vpop.permute.xlu0 %4333
      %4335 = vrot.lane.b32.xlu0 %v4327, 117
      %v4336 = vpop.permute.xlu0 %4335
      %v4340 = vadd.f32 %v4310, %v4332
      %v4341 = vadd.f32 %v4311, %v4334
      %v4342 = vadd.f32 %v4312, %v4336
      %4343 = vset.pattern.permute.xlu0 5
      %4344 = vperm.xlu0 %4343, %v477
      %v4345 = vpop.permute.xlu0 %4344
      %4347 = vset.pattern.permute.xlu0 5
      %4348 = vperm.xlu0 %4347, %v478
      %v4349 = vpop.permute.xlu0 %4348
      %4351 = vset.pattern.permute.xlu0 5
      %4352 = vperm.xlu0 %4351, %v479
      %v4353 = vpop.permute.xlu0 %4352
      %v4355 = vmul.f32 %v4345, %v4199
      %v4356 = vmul.f32 %v4349, %v4200
      %v4357 = vmul.f32 %v4353, %v4201
      %4361 = vrot.lane.b32.xlu0 %v4355, 116
      %v4362 = vpop.permute.xlu0 %4361
      %4363 = vrot.lane.b32.xlu0 %v4356, 116
      %v4364 = vpop.permute.xlu0 %4363
      %4365 = vrot.lane.b32.xlu0 %v4357, 116
      %v4366 = vpop.permute.xlu0 %4365
      %v4370 = vadd.f32 %v4340, %v4362
      %v4371 = vadd.f32 %v4341, %v4364
      %v4372 = vadd.f32 %v4342, %v4366
      %4373 = vset.pattern.permute.xlu0 6
      %4374 = vperm.xlu0 %4373, %v477
      %v4375 = vpop.permute.xlu0 %4374
      %4377 = vset.pattern.permute.xlu0 6
      %4378 = vperm.xlu0 %4377, %v478
      %v4379 = vpop.permute.xlu0 %4378
      %4381 = vset.pattern.permute.xlu0 6
      %4382 = vperm.xlu0 %4381, %v479
      %v4383 = vpop.permute.xlu0 %4382
      %v4385 = vmul.f32 %v4375, %v4199
      %v4386 = vmul.f32 %v4379, %v4200
      %v4387 = vmul.f32 %v4383, %v4201
      %4391 = vrot.lane.b32.xlu0 %v4385, 108
      %v4392 = vpop.permute.xlu0 %4391
      %4393 = vrot.lane.b32.xlu0 %v4386, 108
      %v4394 = vpop.permute.xlu0 %4393
      %4395 = vrot.lane.b32.xlu0 %v4387, 108
      %v4396 = vpop.permute.xlu0 %4395
      %v4400 = vadd.f32 %v4370, %v4392
      %v4401 = vadd.f32 %v4371, %v4394
      %v4402 = vadd.f32 %v4372, %v4396
      %4403 = vset.pattern.permute.xlu0 7
      %4404 = vperm.xlu0 %4403, %v477
      %v4405 = vpop.permute.xlu0 %4404
      %4407 = vset.pattern.permute.xlu0 7
      %4408 = vperm.xlu0 %4407, %v478
      %v4409 = vpop.permute.xlu0 %4408
      %4411 = vset.pattern.permute.xlu0 7
      %4412 = vperm.xlu0 %4411, %v479
      %v4413 = vpop.permute.xlu0 %4412
      %v4415 = vmul.f32 %v4405, %v4199
      %v4416 = vmul.f32 %v4409, %v4200
      %v4417 = vmul.f32 %v4413, %v4201
      %4421 = vrot.lane.b32.xlu0 %v4415, 107
      %v4422 = vpop.permute.xlu0 %4421
      %4423 = vrot.lane.b32.xlu0 %v4416, 107
      %v4424 = vpop.permute.xlu0 %4423
      %4425 = vrot.lane.b32.xlu0 %v4417, 107
      %v4426 = vpop.permute.xlu0 %4425
      %v4430 = vadd.f32 %v4400, %v4422
      %v4431 = vadd.f32 %v4401, %v4424
      %v4432 = vadd.f32 %v4402, %v4426
      %4433 = vset.pattern.permute.xlu0 8
      %4434 = vperm.xlu0 %4433, %v477
      %v4435 = vpop.permute.xlu0 %4434
      %4437 = vset.pattern.permute.xlu0 8
      %4438 = vperm.xlu0 %4437, %v478
      %v4439 = vpop.permute.xlu0 %4438
      %4441 = vset.pattern.permute.xlu0 8
      %4442 = vperm.xlu0 %4441, %v479
      %v4443 = vpop.permute.xlu0 %4442
      %v4445 = vmul.f32 %v4435, %v4199
      %v4446 = vmul.f32 %v4439, %v4200
      %v4447 = vmul.f32 %v4443, %v4201
      %4451 = vrot.lane.b32.xlu0 %v4445, 106
      %v4452 = vpop.permute.xlu0 %4451
      %4453 = vrot.lane.b32.xlu0 %v4446, 106
      %v4454 = vpop.permute.xlu0 %4453
      %4455 = vrot.lane.b32.xlu0 %v4447, 106
      %v4456 = vpop.permute.xlu0 %4455
      %v4460 = vadd.f32 %v4430, %v4452
      %v4461 = vadd.f32 %v4431, %v4454
      %v4462 = vadd.f32 %v4432, %v4456
      %4464 = vset.pattern.permute.xlu0 0
      %4465 = vperm.xlu0 %4464, %v480
      %v4466 = vpop.permute.xlu0 %4465
      %4469 = vset.pattern.permute.xlu0 0
      %4470 = vperm.xlu0 %4469, %v481
      %v4471 = vpop.permute.xlu0 %4470
      %4474 = vset.pattern.permute.xlu0 0
      %4475 = vperm.xlu0 %4474, %v482
      %v4476 = vpop.permute.xlu0 %4475
      %v4478 = vadd.f32 %v4460, %v4466
      %v4479 = vadd.f32 %v4461, %v4471
      %v4480 = vadd.f32 %v4462, %v4476
      %v4481 = vmax.f32 %v4478, 0.0
      %v4482 = vmax.f32 %v4479, 0.0
      %v4483 = vmax.f32 %v4480, 0.0
      %v4485 = vsel %vm527, %v486, 0
      %v4488 = vsel %vm537, %v4162, 0
      %4490 = vmatprep.subr.mxu0 0.0
      %4491 = vmatpush1.msra.mxu0 %v4488
      %4492 = vmatprep.subr.mxu0 0.0
      %4493 = vmatpush1.msra.mxu0 0.0
      %4494 = vmatprep.subr.mxu0 0.0
      %4495 = vmatpush1.msra.mxu0 0.0
      %4496 = vmatprep.subr.mxu0 0.0
      %4497 = vmatpush1.msra.mxu0 0.0
      %4498 = vmatprep.subr.mxu0 0.0
      %4499 = vmatpush1.msra.mxu0 0.0
      %4500 = vmatprep.subr.mxu0 0.0
      %4501 = vmatpush1.msra.mxu0 0.0
      %4502 = vmatprep.subr.mxu0 0.0
      %4503 = vmatpush1.msra.mxu0 0.0
      %4504 = vmatprep.subr.mxu0 0.0
      %4505 = vmatpush1.msra.mxu0 0.0
      %4506 = vmatprep.subr.mxu0 0.0
      %4507 = vmatpush1.msra.mxu0 0.0
      %4508 = vmatprep.subr.mxu0 0.0
      %4509 = vmatpush1.msra.mxu0 0.0
      %4510 = vmatprep.subr.mxu0 0.0
      %4511 = vmatpush1.msra.mxu0 0.0
      %4512 = vmatprep.subr.mxu0 0.0
      %4513 = vmatpush1.msra.mxu0 0.0
      %4514 = vmatprep.subr.mxu0 0.0
      %4515 = vmatpush1.msra.mxu0 0.0
      %4516 = vmatprep.subr.mxu0 0.0
      %4517 = vmatpush1.msra.mxu0 0.0
      %4518 = vmatprep.subr.mxu0 0.0
      %4519 = vmatpush1.msra.mxu0 0.0
      %4520 = vmatprep.subr.mxu0 0.0
      %4521 = vmatpush1.msra.mxu0 0.0
      %4522 = vmatprep.subr.mxu0 0.0
      %4523 = vmatpush1.msra.mxu0 0.0
      %4524 = vmatprep.subr.mxu0 0.0
      %4525 = vmatpush1.msra.mxu0 0.0
      %4526 = vmatprep.subr.mxu0 0.0
      %4527 = vmatpush1.msra.mxu0 0.0
      %4528 = vmatprep.subr.mxu0 0.0
      %4529 = vmatpush1.msra.mxu0 0.0
      %4530 = vmatprep.subr.mxu0 0.0
      %4531 = vmatpush1.msra.mxu0 0.0
      %4532 = vmatprep.subr.mxu0 0.0
      %4533 = vmatpush1.msra.mxu0 0.0
      %4534 = vmatprep.subr.mxu0 0.0
      %4535 = vmatpush1.msra.mxu0 0.0
      %4536 = vmatprep.subr.mxu0 0.0
      %4537 = vmatpush1.msra.mxu0 0.0
      %4538 = vmatprep.subr.mxu0 0.0
      %4539 = vmatpush1.msra.mxu0 0.0
      %4540 = vmatprep.subr.mxu0 0.0
      %4541 = vmatpush1.msra.mxu0 0.0
      %4542 = vmatprep.subr.mxu0 0.0
      %4543 = vmatpush1.msra.mxu0 0.0
      %4544 = vmatprep.subr.mxu0 0.0
      %4545 = vmatpush1.msra.mxu0 0.0
      %4546 = vmatprep.subr.mxu0 0.0
      %4547 = vmatpush1.msra.mxu0 0.0
      %4548 = vmatprep.subr.mxu0 0.0
      %4549 = vmatpush1.msra.mxu0 0.0
      %4550 = vmatprep.subr.mxu0 0.0
      %4551 = vmatpush1.msra.mxu0 0.0
      %4552 = vmatprep.subr.mxu0 0.0
      %4553 = vmatpush1.msra.mxu0 0.0
      %4554 = vmatprep.mubr.f32.mxu0 0.0
      %4555 = vmatmul.mubr.f32.gmra.mrb[0].mxu0 %v4485
      %v4556 = vpop.f32.mrb[0].mxu0
      %v4557 = vadd.f32 0.0, %v4556
      %v4558 = vpop.f32.mrb[0].mxu0
      %4559 = vdwg.mxu0
      %vm4560 = vcmask 195584
      %v4562 = vsel %vm4560, %v483, 0
      %4564 = vmatprep.subr.mxu0 0.0
      %4565 = vmatpush1.msra.mxu0 %v4481
      %4566 = vmatprep.subr.mxu0 0.0
      %4567 = vmatpush1.msra.mxu0 %v4482
      %4568 = vmatprep.subr.mxu0 0.0
      %4569 = vmatpush1.msra.mxu0 %v4483
      %4570 = vmatprep.subr.mxu0 0.0
      %4571 = vmatpush1.msra.mxu0 0.0
      %4572 = vmatprep.subr.mxu0 0.0
      %4573 = vmatpush1.msra.mxu0 0.0
      %4574 = vmatprep.subr.mxu0 0.0
      %4575 = vmatpush1.msra.mxu0 0.0
      %4576 = vmatprep.subr.mxu0 0.0
      %4577 = vmatpush1.msra.mxu0 0.0
      %4578 = vmatprep.subr.mxu0 0.0
      %4579 = vmatpush1.msra.mxu0 0.0
      %4580 = vmatprep.subr.mxu0 0.0
      %4581 = vmatpush1.msra.mxu0 0.0
      %4582 = vmatprep.subr.mxu0 0.0
      %4583 = vmatpush1.msra.mxu0 0.0
      %4584 = vmatprep.subr.mxu0 0.0
      %4585 = vmatpush1.msra.mxu0 0.0
      %4586 = vmatprep.subr.mxu0 0.0
      %4587 = vmatpush1.msra.mxu0 0.0
      %4588 = vmatprep.subr.mxu0 0.0
      %4589 = vmatpush1.msra.mxu0 0.0
      %4590 = vmatprep.subr.mxu0 0.0
      %4591 = vmatpush1.msra.mxu0 0.0
      %4592 = vmatprep.subr.mxu0 0.0
      %4593 = vmatpush1.msra.mxu0 0.0
      %4594 = vmatprep.subr.mxu0 0.0
      %4595 = vmatpush1.msra.mxu0 0.0
      %4596 = vmatprep.subr.mxu0 0.0
      %4597 = vmatpush1.msra.mxu0 0.0
      %4598 = vmatprep.subr.mxu0 0.0
      %4599 = vmatpush1.msra.mxu0 0.0
      %4600 = vmatprep.subr.mxu0 0.0
      %4601 = vmatpush1.msra.mxu0 0.0
      %4602 = vmatprep.subr.mxu0 0.0
      %4603 = vmatpush1.msra.mxu0 0.0
      %4604 = vmatprep.subr.mxu0 0.0
      %4605 = vmatpush1.msra.mxu0 0.0
      %4606 = vmatprep.subr.mxu0 0.0
      %4607 = vmatpush1.msra.mxu0 0.0
      %4608 = vmatprep.subr.mxu0 0.0
      %4609 = vmatpush1.msra.mxu0 0.0
      %4610 = vmatprep.subr.mxu0 0.0
      %4611 = vmatpush1.msra.mxu0 0.0
      %4612 = vmatprep.subr.mxu0 0.0
      %4613 = vmatpush1.msra.mxu0 0.0
      %4614 = vmatprep.subr.mxu0 0.0
      %4615 = vmatpush1.msra.mxu0 0.0
      %4616 = vmatprep.subr.mxu0 0.0
      %4617 = vmatpush1.msra.mxu0 0.0
      %4618 = vmatprep.subr.mxu0 0.0
      %4619 = vmatpush1.msra.mxu0 0.0
      %4620 = vmatprep.subr.mxu0 0.0
      %4621 = vmatpush1.msra.mxu0 0.0
      %4622 = vmatprep.subr.mxu0 0.0
      %4623 = vmatpush1.msra.mxu0 0.0
      %4624 = vmatprep.subr.mxu0 0.0
      %4625 = vmatpush1.msra.mxu0 0.0
      %4626 = vmatprep.subr.mxu0 0.0
      %4627 = vmatpush1.msra.mxu0 0.0
      %4628 = vmatprep.mubr.f32.mxu0 0.0
      %4629 = vmatmul.mubr.f32.gmra.mrb[0].mxu0 %v4562
      %v4630 = vpop.f32.mrb[0].mxu0
      %v4631 = vadd.f32 %v4557, %v4630
      %v4632 = vpop.f32.mrb[0].mxu0
      %4633 = vdwg.mxu0
      %4635 = vset.pattern.permute.xlu0 0
      %4636 = vperm.xlu0 %4635, %v487
      %v4637 = vpop.permute.xlu0 %4636
      %v4639 = vadd.f32 %v4631, %v4637
      %v4640 = vmax.f32 %v4639, 0.0
      %4641 = vst.msk [vmem:[%s438] sm:$0xff] %vm1417, %v4640
      %p4642 = scmp.lt.s32.totalorder %s24, 1
      %s4643 = scalar_select %p4642, %s24, 1
      %s4644 = smul.addr %s4643, 8
      %s4645 = scalar_lea.vmem %s13, %s4644
      // Predicated region
      $region73: #{gelayer_down_pallas.1} parent=71 // pred_check
        %p4646 = pneg %p320
      $region74: #{gelayer_down_pallas.1} parent=71 // pred_check_branch
        %4648 = sbr.rel (%p4646) target = $region76
      $region75: #{gelayer_down_pallas.1} parent=71 // pred_region
        _
      $region76: #{gelayer_down_pallas.1} parent=71 // pred_fallthru
        _
    $region72: #{gelayer_down_pallas.1} parent=5 // pred_fallthru
      _
    %p4649 = scmp.le.s32.totalorder 2, %s19
    // Predicated region
    $region77: #{gelayer_down_pallas.1} parent=5 // pred_check
      %p4650 = pneg %p4649
    $region78: #{gelayer_down_pallas.1} parent=5 // pred_check_branch
      %4652 = sbr.rel (%p4650) target = $region80
    $region79: #{gelayer_down_pallas.1} parent=5 // pred_region
      %s4653 = ssub.s32 %s19, 2
      // Predicated region
      $region81: #{gelayer_down_pallas.1} parent=79 // pred_check
        %p4654 = pneg %p326
      $region82: #{gelayer_down_pallas.1} parent=79 // pred_check_branch
        %4656 = sbr.rel (%p4654) target = $region84
      $region83: #{gelayer_down_pallas.1} parent=79 // pred_region
        %p4657 = scmp.lt.s32.totalorder %s25, 1
        %s4658 = scalar_select %p4657, %s25, 1
        %s4659 = smul.addr %s4658, 8
        %s4660 = scalar_lea.vmem %s13, %s4659
      $region84: #{gelayer_down_pallas.1} parent=79 // pred_fallthru
        _
    $region80: #{gelayer_down_pallas.1} parent=5 // pred_fallthru
      _
  $region6: #{gelayer_down_pallas.1} parent=0 // loop_footer
    %s23 = sadd.s32 1, %s19
  $region7: #{gelayer_down_pallas.1} parent=0 // loop_footer_branch
    %18 = sbr.rel target = $region3
  $region8: #{gelayer_down_pallas.1} parent=0 // loop_exit
    _

</llo_original>
